<compile_context>
chip_gen: v5e
topology: v5e:2x2
jax: 0.10.0
libtpu: 0.0.40
codegen_flags: <defaults>
</compile_context>

<pallas_src>
import functools
import math

import jax
import jax.numpy as jnp
from jax.experimental import pallas as pl
from jax.experimental.pallas import tpu as pltpu


# VMEM budget: v7x has only 64 MiB physical VMEM (32 MiB scoped default);
# cap well under that so the same kernels compile on v5e / v6e / v7x.
_VMEM_LIMIT_BYTES = 48 * 1024 * 1024


def _pick_tile(dim, target, align):
    """Largest tile <= target that divides `dim` and is a multiple of `align`.

    Falls back to the full dim (single block) when no such tile exists, which
    keeps the (8, 128) block-shape constraint satisfied for small problems.
    """
    if dim <= target or dim % align != 0:
        return dim
    t = (min(target, dim) // align) * align
    while t >= align:
        if dim % t == 0:
            return t
        t -= align
    return dim


# ----------------------------------------------------------------------------
# In-kernel math helpers
# ----------------------------------------------------------------------------
def _erf(x):
    # Abramowitz–Stegun 7.1.26 polynomial, |err| < 1.5e-7 (effectively exact
    # for f32).  Uses only exp/abs/mul/div which lower cleanly on Mosaic.
    sign = jnp.where(x >= 0.0, 1.0, -1.0)
    ax = jnp.abs(x)
    t = 1.0 / (1.0 + 0.3275911 * ax)
    poly = ((((1.061405429 * t - 1.453152027) * t + 1.421413741) * t
             - 0.284496736) * t + 0.254829592) * t
    return sign * (1.0 - poly * jnp.exp(-ax * ax))


def _gelu_exact(x):
    # PyTorch nn.GELU default (erf-based), as used by BertIntermediate("gelu").
    return 0.5 * x * (1.0 + _erf(x * (1.0 / math.sqrt(2.0))))


# ----------------------------------------------------------------------------
# Pallas kernels
# ----------------------------------------------------------------------------
def _dense_kernel(x_ref, w_ref, b_ref, o_ref, acc_ref, *, gelu):
    """Tiled matmul: (TM,TK)x(TK,TN), f32 accumulator, optional fused GELU."""
    @pl.when(pl.program_id(2) == 0)
    def _():
        acc_ref[...] = jnp.zeros_like(acc_ref)

    # bf16 MXU operands, f32 accumulation.
    acc_ref[...] += jnp.dot(
        x_ref[...].astype(jnp.bfloat16),
        w_ref[...].astype(jnp.bfloat16),
        preferred_element_type=jnp.float32)

    @pl.when(pl.program_id(2) == pl.num_programs(2) - 1)
    def _():
        y = acc_ref[...] + b_ref[...]
        if gelu:
            y = _gelu_exact(y)
        o_ref[...] = y.astype(o_ref.dtype)


def _dense_res_ln_kernel(x_ref, w_ref, b_ref, res_ref, g_ref, bln_ref,
                         o_ref, acc_ref, *, eps):
    """Tiled matmul fused with bias + residual add + LayerNorm (TN == N)."""
    @pl.when(pl.program_id(2) == 0)
    def _():
        acc_ref[...] = jnp.zeros_like(acc_ref)

    acc_ref[...] += jnp.dot(
        x_ref[...].astype(jnp.bfloat16),
        w_ref[...].astype(jnp.bfloat16),
        preferred_element_type=jnp.float32)

    @pl.when(pl.program_id(2) == pl.num_programs(2) - 1)
    def _():
        h = acc_ref[...] + b_ref[...] + res_ref[...]
        mu = jnp.mean(h, axis=-1, keepdims=True)
        var = jnp.mean((h - mu) * (h - mu), axis=-1, keepdims=True)
        inv = jax.lax.rsqrt(var + eps)
        o_ref[...] = ((h - mu) * inv * g_ref[...] + bln_ref[...]).astype(o_ref.dtype)


def _attention_kernel(q_ref, k_ref, v_ref, m_ref, o_ref, *,
                      n_heads, head_dim, scale):
    """Per-batch multi-head attention straight from the (S, H) layout.

    q_ref: (Sq, H), k_ref/v_ref: (Skv, H), m_ref: (Sq, Skv) additive mask,
    o_ref: (Sq, H).  Heads are static lane slices of H; the context is
    re-assembled and stored lane-dense into H (no XLA transposes needed).
    """
    q = q_ref[...]
    k = k_ref[...]
    v = v_ref[...]
    mask = m_ref[...]
    dn = (((1,), (1,)), ((), ()))  # contract last dims; no transpose of K.

    ctx_heads = []
    for h in range(n_heads):
        sl = slice(h * head_dim, (h + 1) * head_dim)
        qh = q[:, sl].astype(jnp.bfloat16)
        kh = k[:, sl].astype(jnp.bfloat16)
        vh = v[:, sl].astype(jnp.bfloat16)
        s = jax.lax.dot_general(qh, kh, dn,
                                preferred_element_type=jnp.float32) * scale
        s = s + mask
        s = s - jnp.max(s, axis=-1, keepdims=True)
        p = jnp.exp(s)
        # EUP reciprocal (otherwise-idle slot) for the softmax denominator.
        p = p * pl.reciprocal(jnp.sum(p, axis=-1, keepdims=True), approx=True)
        ctx_heads.append(jnp.dot(p.astype(jnp.bfloat16), vh,
                                 preferred_element_type=jnp.float32))
    o_ref[...] = jnp.concatenate(ctx_heads, axis=-1).astype(o_ref.dtype)


# ----------------------------------------------------------------------------
# Pallas wrappers
# ----------------------------------------------------------------------------
def pallas_dense(x, w, b, *, gelu=False, residual=None, ln_gamma=None,
                 ln_beta=None, ln_eps=1e-12, tm=None, tn=None, tk=None):
    """y = x @ w + b, optionally fused with GELU or residual+LayerNorm.

    Tiled over (M, N, K); bias / gamma / beta get their own (1, TN) BlockSpecs
    so they stay resident per N-tile.  When fusing LayerNorm, TN == N (the LN
    reduction needs the full feature dim in one tile).
    """
    M, K = x.shape
    N = w.shape[1]
    fuse_ln = ln_gamma is not None

    TM = _pick_tile(M, tm if tm is not None else 256, 8)
    TK = _pick_tile(K, tk if tk is not None else 512, 128)
    TN = N if fuse_ln else _pick_tile(N, tn if tn is not None else 512, 128)
    grid = (M // TM, N // TN, K // TK)

    in_specs = [
        pl.BlockSpec((TM, TK), lambda i, j, k: (i, k)),
        pl.BlockSpec((TK, TN), lambda i, j, k: (k, j)),
        pl.BlockSpec((1, TN), lambda i, j, k: (0, j)),
    ]
    args = [x, w, b.reshape(1, N)]
    if fuse_ln:
        in_specs += [
            pl.BlockSpec((TM, TN), lambda i, j, k: (i, j)),
            pl.BlockSpec((1, TN), lambda i, j, k: (0, j)),
            pl.BlockSpec((1, TN), lambda i, j, k: (0, j)),
        ]
        args += [residual, ln_gamma.reshape(1, N), ln_beta.reshape(1, N)]
        kern = functools.partial(_dense_res_ln_kernel, eps=ln_eps)
    else:
        kern = functools.partial(_dense_kernel, gelu=gelu)

    return pl.pallas_call(
        kern,
        out_shape=jax.ShapeDtypeStruct((M, N), jnp.float32),
        grid_spec=pltpu.PrefetchScalarGridSpec(
            num_scalar_prefetch=0,
            grid=grid,
            in_specs=in_specs,
            out_specs=pl.BlockSpec((TM, TN), lambda i, j, k: (i, j)),
            scratch_shapes=[pltpu.VMEM((TM, TN), jnp.float32)],
        ),
        compiler_params=pltpu.CompilerParams(
            dimension_semantics=("parallel", "parallel", "arbitrary"),
            vmem_limit_bytes=_VMEM_LIMIT_BYTES),
    )(*args)


def pallas_attention(q, k, v, mask_add, *, n_heads, head_dim, scale):
    # q: (B, Sq, H), k/v: (B, Skv, H), mask_add: (B, Sq, Skv) additive mask.
    B, Sq, H = q.shape
    Skv = k.shape[1]
    return pl.pallas_call(
        functools.partial(_attention_kernel, n_heads=n_heads,
                          head_dim=head_dim, scale=scale),
        out_shape=jax.ShapeDtypeStruct((B, Sq, H), jnp.float32),
        grid=(B,),
        in_specs=[
            pl.BlockSpec((None, Sq, H), lambda b: (b, 0, 0)),
            pl.BlockSpec((None, Skv, H), lambda b: (b, 0, 0)),
            pl.BlockSpec((None, Skv, H), lambda b: (b, 0, 0)),
            pl.BlockSpec((None, Sq, Skv), lambda b: (b, 0, 0)),
        ],
        out_specs=pl.BlockSpec((None, Sq, H), lambda b: (b, 0, 0)),
        compiler_params=pltpu.CompilerParams(
            dimension_semantics=("parallel",),
            vmem_limit_bytes=_VMEM_LIMIT_BYTES),
    )(q, k, v, mask_add)


# ----------------------------------------------------------------------------
# TableLayerSimple / TableEncoderSimple forward
# ----------------------------------------------------------------------------
def bert_layer(hidden, mask_add, p, *, n_heads, head_dim, dense_tm=None):
    """One TableLayerSimple applied to the combined [tok ; ent] stream."""
    B, S, H = hidden.shape
    x2d = hidden.reshape(B * S, H)

    # Fused Q|K|V projection of the shared stream (one MXU pass; K/V of the
    # concatenated encoder stream are computed exactly once per layer).
    qkv = pallas_dense(x2d, p["wqkv"], p["bqkv"], tm=dense_tm).reshape(B, S, 3 * H)
    q = qkv[:, :, :H]
    k = qkv[:, :, H:2 * H]
    v = qkv[:, :, 2 * H:]

    ctx = pallas_attention(q, k, v, mask_add, n_heads=n_heads,
                           head_dim=head_dim,
                           scale=1.0 / math.sqrt(head_dim))        # (B, S, H)

    # BertSelfOutput: dense + residual + LayerNorm in a single kernel.
    attn_out = pallas_dense(ctx.reshape(B * S, H), p["wo"], p["bo"],
                            residual=x2d, ln_gamma=p["ln1_g"],
                            ln_beta=p["ln1_b"], tm=dense_tm)

    # BertIntermediate: dense + exact (erf) GELU.
    inter = pallas_dense(attn_out, p["wi"], p["bi"], gelu=True, tm=dense_tm)

    # BertOutput: dense + residual + LayerNorm in a single kernel.
    out = pallas_dense(inter, p["wo2"], p["bo2"],
                       residual=attn_out, ln_gamma=p["ln2_g"],
                       ln_beta=p["ln2_b"], tm=dense_tm)
    return out.reshape(B, S, H)


def table_encoder_simple(tok_hidden_states, tok_attention_mask,
                         ent_hidden_states, ent_attention_mask,
                         layer_params, *, n_heads, head_dim, dense_tm=None):
    """Mirrors TableEncoderSimple.forward (output_attentions=False,
    output_hidden_states=False).

    Masks are additive "extended" masks of shape (B, Sq, Skv) with
    Skv = S_tok + S_ent (0 = keep, -1e4 = masked), as in the HF convention.
    """
    parts, masks = [], []
    if tok_hidden_states is not None:
        parts.append(tok_hidden_states)
        masks.append(tok_attention_mask)
    if ent_hidden_states is not None:
        parts.append(ent_hidden_states)
        masks.append(ent_attention_mask)
    hidden = parts[0] if len(parts) == 1 else jnp.concatenate(parts, axis=1)
    mask = masks[0] if len(masks) == 1 else jnp.concatenate(masks, axis=1)

    for p in layer_params:
        hidden = bert_layer(hidden, mask, p, n_heads=n_heads,
                            head_dim=head_dim, dense_tm=dense_tm)

    if tok_hidden_states is not None and ent_hidden_states is not None:
        s_tok = tok_hidden_states.shape[1]
        return (hidden[:, :s_tok],), (hidden[:, s_tok:],)
    if tok_hidden_states is not None:
        return (hidden,), (None,)
    return (None,), (hidden,)


# ----------------------------------------------------------------------------
# Pure-JAX reference (per-stream, layer-by-layer, like the PyTorch module)
# ----------------------------------------------------------------------------
def _split_heads(x, n_heads, head_dim):
    B, S, _ = x.shape
    return x.reshape(B, S, n_heads, head_dim).transpose(0, 2, 1, 3)


def _ref_block(hidden, enc, mask_add, p, *, n_heads, head_dim):
    B, Sq, H = hidden.shape
    wq, wk, wv = p["wqkv"][:, :H], p["wqkv"][:, H:2 * H], p["wqkv"][:, 2 * H:]
    bq, bk, bv = p["bqkv"][:H], p["bqkv"][H:2 * H], p["bqkv"][2 * H:]
    q = _split_heads(hidden @ wq + bq, n_heads, head_dim)
    k = _split_heads(enc @ wk + bk, n_heads, head_dim)
    v = _split_heads(enc @ wv + bv, n_heads, head_dim)
    scores = jnp.einsum("bhqd,bhkd->bhqk", q, k) / math.sqrt(head_dim)
    scores = scores + mask_add[:, None, :, :]
    probs = jax.nn.softmax(scores, axis=-1)
    ctx = jnp.einsum("bhqk,bhkd->bhqd", probs, v)
    ctx = ctx.transpose(0, 2, 1, 3).reshape(B, Sq, H)

    def ln(x, g, b):
        mu = x.mean(-1, keepdims=True)
        var = ((x - mu) ** 2).mean(-1, keepdims=True)
        return (x - mu) * jax.lax.rsqrt(var + 1e-12) * g + b

    attn_out = ln(ctx @ p["wo"] + p["bo"] + hidden, p["ln1_g"], p["ln1_b"])
    inter = jax.nn.gelu(attn_out @ p["wi"] + p["bi"], approximate=False)
    return ln(inter @ p["wo2"] + p["bo2"] + attn_out, p["ln2_g"], p["ln2_b"])


def _ref_encoder(tok, tok_mask, ent, ent_mask, layers, *, n_heads, head_dim):
    for p in layers:
        enc = jnp.concatenate([tok, ent], axis=1)
        tok_new = _ref_block(tok, enc, tok_mask, p,
                             n_heads=n_heads, head_dim=head_dim)
        ent_new = _ref_block(ent, enc, ent_mask, p,
                             n_heads=n_heads, head_dim=head_dim)
        tok, ent = tok_new, ent_new
    return tok, ent


# ----------------------------------------------------------------------------
# Main
# ----------------------------------------------------------------------------
if __name__ == "__main__":
    B, S_TOK, S_ENT = 2, 8, 8
    HIDDEN, N_HEADS, INTER, NUM_LAYERS = 32, 4, 64, 2
    HEAD_DIM = HIDDEN // N_HEADS

    key = jax.random.PRNGKey(0)

    def winit(k, shape):
        return (0.02 * jax.random.normal(k, shape)).astype(jnp.float32)

    def make_layer(k):
        ks = jax.random.split(k, 8)
        return {
            "wqkv": winit(ks[0], (HIDDEN, 3 * HIDDEN)),
            "bqkv": winit(ks[1], (3 * HIDDEN,)),
            "wo": winit(ks[2], (HIDDEN, HIDDEN)), "bo": winit(ks[3], (HIDDEN,)),
            "ln1_g": jnp.ones((HIDDEN,), jnp.float32),
            "ln1_b": jnp.zeros((HIDDEN,), jnp.float32),
            "wi": winit(ks[4], (HIDDEN, INTER)), "bi": winit(ks[5], (INTER,)),
            "wo2": winit(ks[6], (INTER, HIDDEN)), "bo2": winit(ks[7], (HIDDEN,)),
            "ln2_g": jnp.ones((HIDDEN,), jnp.float32),
            "ln2_b": jnp.zeros((HIDDEN,), jnp.float32),
        }

    key, *lkeys = jax.random.split(key, NUM_LAYERS + 1)
    layers = [make_layer(k) for k in lkeys]

    key, k_tok, k_ent = jax.random.split(key, 3)
    tok_hidden = jax.random.normal(k_tok, (B, S_TOK, HIDDEN), jnp.float32)
    ent_hidden = jax.random.normal(k_ent, (B, S_ENT, HIDDEN), jnp.float32)

    # Binary KV-visibility masks over [tok ; ent]; last entity slot masked out.
    S_KV = S_TOK + S_ENT
    kv_valid = jnp.ones((B, S_KV), jnp.float32).at[:, -1].set(0.0)
    tok_mask_add = ((1.0 - kv_valid) * -10000.0)[:, None, :] * jnp.ones(
        (1, S_TOK, 1), jnp.float32)                              # (B, S_TOK, S_KV)
    ent_mask_add = ((1.0 - kv_valid) * -10000.0)[:, None, :] * jnp.ones(
        (1, S_ENT, 1), jnp.float32)                              # (B, S_ENT, S_KV)

    # dense_tm=8 at these tiny shapes so the tiled (M, N, K) path is actually
    # exercised with a multi-step parallel grid axis (defaults: 256/512/512).
    encoder = jax.jit(functools.partial(
        table_encoder_simple, n_heads=N_HEADS, head_dim=HEAD_DIM, dense_tm=8))
    (tok_out,), (ent_out,) = encoder(tok_hidden, tok_mask_add,
                                     ent_hidden, ent_mask_add, layers)
    jax.block_until_ready(tok_out)
    jax.block_until_ready(ent_out)

    # Spot-check against the pure-JAX per-stream reference.  Tolerances are
    # loosened vs pure-f32 because matmul operands run through the MXU in bf16.
    tok_ref, ent_ref = _ref_encoder(tok_hidden, tok_mask_add, ent_hidden,
                                    ent_mask_add, layers,
                                    n_heads=N_HEADS, head_dim=HEAD_DIM)
    assert jnp.allclose(tok_out, tok_ref, atol=2e-2, rtol=2e-2), (
        float(jnp.max(jnp.abs(tok_out - tok_ref))))
    assert jnp.allclose(ent_out, ent_ref, atol=2e-2, rtol=2e-2), (
        float(jnp.max(jnp.abs(ent_out - ent_ref))))

    print("KERNEL_OK")
</pallas_src>

<mosaic_0001>
module attributes {stable_mosaic.version = 11 : i64} {
  func.func @_dense_kernel(%arg0: i32, %arg1: i32, %arg2: i32, %arg3: memref<8x32xf32, #tpu.memory_space<vmem>>, %arg4: memref<32x96xf32, #tpu.memory_space<vmem>>, %arg5: memref<1x96xf32, #tpu.memory_space<vmem>>, %arg6: memref<8x96xf32, #tpu.memory_space<vmem>>, %arg7: memref<8x96xf32, #tpu.memory_space<vmem>>) attributes {dimension_semantics = [#tpu.dimension_semantics<parallel>, #tpu.dimension_semantics<parallel>, #tpu.dimension_semantics<arbitrary>], iteration_bounds = array<i64: 4, 1, 1>, scalar_prefetch = 0 : i64, scratch_operands = 1 : i64, tpu.core_type = #tpu.core_type<tc>, window_params = [{transform_indices = @transform_0, window_bounds = array<i64: 8, 32>}, {transform_indices = @transform_1, window_bounds = array<i64: 32, 96>}, {transform_indices = @transform_2, window_bounds = array<i64: 1, 96>}, {transform_indices = @transform_3, window_bounds = array<i64: 8, 96>}]} {
    %c0_i32 = arith.constant 0 : i32
    %0 = arith.cmpi eq, %arg2, %c0_i32 : i32
    %1 = arith.extui %0 : i1 to i32
    %c0_i32_0 = arith.constant 0 : i32
    %2 = arith.cmpi ne, %1, %c0_i32_0 : i32
    scf.if %2 {
      %cst_10 = arith.constant 0.000000e+00 : f32
      %14 = vector.broadcast %cst_10 : f32 to vector<8x96xf32>
      %c0_11 = arith.constant 0 : index
      %c0_12 = arith.constant 0 : index
      %15 = vector.load %arg7[%c0_11, %c0_12] : memref<8x96xf32, #tpu.memory_space<vmem>>, vector<8x96xf32>
      tpu.vector_store %arg7[%c0_11, %c0_12], %14 {strides = array<i32>} : memref<8x96xf32, #tpu.memory_space<vmem>>, vector<8x96xf32>,
    } else {
    }
    %c0 = arith.constant 0 : index
    %c0_1 = arith.constant 0 : index
    %3 = vector.load %arg7[%c0, %c0_1] : memref<8x96xf32, #tpu.memory_space<vmem>>, vector<8x96xf32>
    %c0_2 = arith.constant 0 : index
    %c0_3 = arith.constant 0 : index
    %4 = vector.load %arg3[%c0_2, %c0_3] : memref<8x32xf32, #tpu.memory_space<vmem>>, vector<8x32xf32>
    %5 = arith.truncf %4 : vector<8x32xf32> to vector<8x32xbf16>
    %c0_4 = arith.constant 0 : index
    %c0_5 = arith.constant 0 : index
    %6 = vector.load %arg4[%c0_4, %c0_5] : memref<32x96xf32, #tpu.memory_space<vmem>>, vector<32x96xf32>
    %7 = arith.truncf %6 : vector<32x96xf32> to vector<32x96xbf16>
    %cst = arith.constant dense<0.000000e+00> : vector<8x96xf32>
    %8 = tpu.matmul %5, %7, %cst {dimension_numbers = #tpu.dot_dimension_numbers<[1], [0], [0], [1], [0, 0, 1, 1], [], []>} : vector<8x32xbf16>, vector<32x96xbf16>, vector<8x96xf32> -> vector<8x96xf32>
    %9 = arith.addf %3, %8 : vector<8x96xf32>
    %c0_6 = arith.constant 0 : index
    %c0_7 = arith.constant 0 : index
    %10 = vector.load %arg7[%c0_6, %c0_7] : memref<8x96xf32, #tpu.memory_space<vmem>>, vector<8x96xf32>
    tpu.vector_store %arg7[%c0_6, %c0_7], %9 {strides = array<i32>} : memref<8x96xf32, #tpu.memory_space<vmem>>, vector<8x96xf32>,
    %c0_i32_8 = arith.constant 0 : i32
    %11 = arith.cmpi eq, %arg2, %c0_i32_8 : i32
    %12 = arith.extui %11 : i1 to i32
    %c0_i32_9 = arith.constant 0 : i32
    %13 = arith.cmpi ne, %12, %c0_i32_9 : i32
    scf.if %13 {
      %c0_10 = arith.constant 0 : index
      %c0_11 = arith.constant 0 : index
      %14 = vector.load %arg7[%c0_10, %c0_11] : memref<8x96xf32, #tpu.memory_space<vmem>>, vector<8x96xf32>
      %c0_12 = arith.constant 0 : index
      %c0_13 = arith.constant 0 : index
      %15 = vector.load %arg5[%c0_12, %c0_13] : memref<1x96xf32, #tpu.memory_space<vmem>>, vector<1x96xf32>
      %16 = vector.broadcast %15 : vector<1x96xf32> to vector<8x96xf32>
      %17 = arith.addf %14, %16 : vector<8x96xf32>
      %c0_14 = arith.constant 0 : index
      %c0_15 = arith.constant 0 : index
      %18 = vector.load %arg6[%c0_14, %c0_15] : memref<8x96xf32, #tpu.memory_space<vmem>>, vector<8x96xf32>
      tpu.vector_store %arg6[%c0_14, %c0_15], %17 {strides = array<i32>} : memref<8x96xf32, #tpu.memory_space<vmem>>, vector<8x96xf32>,
    } else {
    }
    return
  }
  func.func @transform_0(%arg0: i32, %arg1: i32, %arg2: i32) -> (i32, i32) {
    %c0_i32 = arith.constant 0 : i32
    return %arg0, %arg2 : i32, i32
  }
  func.func @transform_1(%arg0: i32, %arg1: i32, %arg2: i32) -> (i32, i32) {
    %c0_i32 = arith.constant 0 : i32
    return %arg2, %arg1 : i32, i32
  }
  func.func @transform_2(%arg0: i32, %arg1: i32, %arg2: i32) -> (i32, i32) {
    %c0_i32 = arith.constant 0 : i32
    %c0_i32_0 = arith.constant 0 : i32
    return %c0_i32, %arg1 : i32, i32
  }
  func.func @transform_3(%arg0: i32, %arg1: i32, %arg2: i32) -> (i32, i32) {
    %c0_i32 = arith.constant 0 : i32
    return %arg0, %arg1 : i32, i32
  }
}

module attributes {stable_mosaic.version = 11 : i64} {
  func.func @_attention_kernel(%arg0: i32, %arg1: memref<1x16x32xf32, #tpu.memory_space<vmem>>, %arg2: memref<1x16x32xf32, #tpu.memory_space<vmem>>, %arg3: memref<1x16x32xf32, #tpu.memory_space<vmem>>, %arg4: memref<1x16x16xf32, #tpu.memory_space<vmem>>, %arg5: memref<1x16x32xf32, #tpu.memory_space<vmem>>) attributes {dimension_semantics = [#tpu.dimension_semantics<parallel>], iteration_bounds = array<i64: 2>, scalar_prefetch = 0 : i64, scratch_operands = 0 : i64, tpu.core_type = #tpu.core_type<tc>, window_params = [{transform_indices = @transform_0, window_bounds = array<i64: 1, 16, 32>}, {transform_indices = @transform_1, window_bounds = array<i64: 1, 16, 32>}, {transform_indices = @transform_2, window_bounds = array<i64: 1, 16, 32>}, {transform_indices = @transform_3, window_bounds = array<i64: 1, 16, 16>}, {transform_indices = @transform_4, window_bounds = array<i64: 1, 16, 32>}]} {
    %c0 = arith.constant 0 : index
    %c0_0 = arith.constant 0 : index
    %c0_1 = arith.constant 0 : index
    %0 = vector.load %arg1[%c0, %c0_0, %c0_1] : memref<1x16x32xf32, #tpu.memory_space<vmem>>, vector<1x16x32xf32>
    %1 = vector.shape_cast %0 : vector<1x16x32xf32> to vector<16x32xf32>
    %c0_2 = arith.constant 0 : index
    %c0_3 = arith.constant 0 : index
    %c0_4 = arith.constant 0 : index
    %2 = vector.load %arg2[%c0_2, %c0_3, %c0_4] : memref<1x16x32xf32, #tpu.memory_space<vmem>>, vector<1x16x32xf32>
    %3 = vector.shape_cast %2 : vector<1x16x32xf32> to vector<16x32xf32>
    %c0_5 = arith.constant 0 : index
    %c0_6 = arith.constant 0 : index
    %c0_7 = arith.constant 0 : index
    %4 = vector.load %arg3[%c0_5, %c0_6, %c0_7] : memref<1x16x32xf32, #tpu.memory_space<vmem>>, vector<1x16x32xf32>
    %5 = vector.shape_cast %4 : vector<1x16x32xf32> to vector<16x32xf32>
    %c0_8 = arith.constant 0 : index
    %c0_9 = arith.constant 0 : index
    %c0_10 = arith.constant 0 : index
    %6 = vector.load %arg4[%c0_8, %c0_9, %c0_10] : memref<1x16x16xf32, #tpu.memory_space<vmem>>, vector<1x16x16xf32>
    %7 = vector.shape_cast %6 : vector<1x16x16xf32> to vector<16x16xf32>
    %8 = vector.extract_strided_slice %1 {offsets = [0, 0], sizes = [16, 8], strides = [1, 1]} : vector<16x32xf32> to vector<16x8xf32>
    %9 = arith.truncf %8 : vector<16x8xf32> to vector<16x8xbf16>
    %10 = vector.extract_strided_slice %3 {offsets = [0, 0], sizes = [16, 8], strides = [1, 1]} : vector<16x32xf32> to vector<16x8xf32>
    %11 = arith.truncf %10 : vector<16x8xf32> to vector<16x8xbf16>
    %12 = vector.extract_strided_slice %5 {offsets = [0, 0], sizes = [16, 8], strides = [1, 1]} : vector<16x32xf32> to vector<16x8xf32>
    %13 = arith.truncf %12 : vector<16x8xf32> to vector<16x8xbf16>
    %cst = arith.constant dense<0.000000e+00> : vector<16x16xf32>
    %14 = tpu.matmul %9, %11, %cst {dimension_numbers = #tpu.dot_dimension_numbers<[1], [1], [0], [0], [0, 0, 1, 0], [], []>} : vector<16x8xbf16>, vector<16x8xbf16>, vector<16x16xf32> -> vector<16x16xf32>
    %cst_11 = arith.constant 0.353553385 : f32
    %15 = vector.broadcast %cst_11 : f32 to vector<16x16xf32>
    %16 = arith.mulf %14, %15 : vector<16x16xf32>
    %17 = arith.addf %16, %7 : vector<16x16xf32>
    %cst_12 = arith.constant dense<0xFF800000> : vector<16xf32>
    %18 = vector.multi_reduction <maximumf>, %17, %cst_12 [1] : vector<16x16xf32> to vector<16xf32>
    %19 = vector.shape_cast %18 : vector<16xf32> to vector<16x1xf32>
    %20 = vector.broadcast %19 : vector<16x1xf32> to vector<16x16xf32>
    %21 = arith.subf %17, %20 : vector<16x16xf32>
    %22 = math.exp %21 : vector<16x16xf32>
    %cst_13 = arith.constant dense<0.000000e+00> : vector<16xf32>
    %23 = vector.multi_reduction <add>, %22, %cst_13 [1] : vector<16x16xf32> to vector<16xf32>
    %24 = vector.shape_cast %23 : vector<16xf32> to vector<16x1xf32>
    %25 = tpu.reciprocal %24 {approx = true} : vector<16x1xf32> -> vector<16x1xf32>
    %26 = vector.broadcast %25 : vector<16x1xf32> to vector<16x16xf32>
    %27 = arith.mulf %22, %26 : vector<16x16xf32>
    %28 = arith.truncf %27 : vector<16x16xf32> to vector<16x16xbf16>
    %cst_14 = arith.constant dense<0.000000e+00> : vector<16x8xf32>
    %29 = tpu.matmul %28, %13, %cst_14 {dimension_numbers = #tpu.dot_dimension_numbers<[1], [0], [0], [1], [0, 0, 1, 1], [], []>} : vector<16x16xbf16>, vector<16x8xbf16>, vector<16x8xf32> -> vector<16x8xf32>
    %30 = vector.extract_strided_slice %1 {offsets = [0, 8], sizes = [16, 8], strides = [1, 1]} : vector<16x32xf32> to vector<16x8xf32>
    %31 = arith.truncf %30 : vector<16x8xf32> to vector<16x8xbf16>
    %32 = vector.extract_strided_slice %3 {offsets = [0, 8], sizes = [16, 8], strides = [1, 1]} : vector<16x32xf32> to vector<16x8xf32>
    %33 = arith.truncf %32 : vector<16x8xf32> to vector<16x8xbf16>
    %34 = vector.extract_strided_slice %5 {offsets = [0, 8], sizes = [16, 8], strides = [1, 1]} : vector<16x32xf32> to vector<16x8xf32>
    %35 = arith.truncf %34 : vector<16x8xf32> to vector<16x8xbf16>
    %cst_15 = arith.constant dense<0.000000e+00> : vector<16x16xf32>
    %36 = tpu.matmul %31, %33, %cst_15 {dimension_numbers = #tpu.dot_dimension_numbers<[1], [1], [0], [0], [0, 0, 1, 0], [], []>} : vector<16x8xbf16>, vector<16x8xbf16>, vector<16x16xf32> -> vector<16x16xf32>
    %cst_16 = arith.constant 0.353553385 : f32
    %37 = vector.broadcast %cst_16 : f32 to vector<16x16xf32>
    %38 = arith.mulf %36, %37 : vector<16x16xf32>
    %39 = arith.addf %38, %7 : vector<16x16xf32>
    %cst_17 = arith.constant dense<0xFF800000> : vector<16xf32>
    %40 = vector.multi_reduction <maximumf>, %39, %cst_17 [1] : vector<16x16xf32> to vector<16xf32>
    %41 = vector.shape_cast %40 : vector<16xf32> to vector<16x1xf32>
    %42 = vector.broadcast %41 : vector<16x1xf32> to vector<16x16xf32>
    %43 = arith.subf %39, %42 : vector<16x16xf32>
    %44 = math.exp %43 : vector<16x16xf32>
    %cst_18 = arith.constant dense<0.000000e+00> : vector<16xf32>
    %45 = vector.multi_reduction <add>, %44, %cst_18 [1] : vector<16x16xf32> to vector<16xf32>
    %46 = vector.shape_cast %45 : vector<16xf32> to vector<16x1xf32>
    %47 = tpu.reciprocal %46 {approx = true} : vector<16x1xf32> -> vector<16x1xf32>
    %48 = vector.broadcast %47 : vector<16x1xf32> to vector<16x16xf32>
    %49 = arith.mulf %44, %48 : vector<16x16xf32>
    %50 = arith.truncf %49 : vector<16x16xf32> to vector<16x16xbf16>
    %cst_19 = arith.constant dense<0.000000e+00> : vector<16x8xf32>
    %51 = tpu.matmul %50, %35, %cst_19 {dimension_numbers = #tpu.dot_dimension_numbers<[1], [0], [0], [1], [0, 0, 1, 1], [], []>} : vector<16x16xbf16>, vector<16x8xbf16>, vector<16x8xf32> -> vector<16x8xf32>
    %52 = vector.extract_strided_slice %1 {offsets = [0, 16], sizes = [16, 8], strides = [1, 1]} : vector<16x32xf32> to vector<16x8xf32>
    %53 = arith.truncf %52 : vector<16x8xf32> to vector<16x8xbf16>
    %54 = vector.extract_strided_slice %3 {offsets = [0, 16], sizes = [16, 8], strides = [1, 1]} : vector<16x32xf32> to vector<16x8xf32>
    %55 = arith.truncf %54 : vector<16x8xf32> to vector<16x8xbf16>
    %56 = vector.extract_strided_slice %5 {offsets = [0, 16], sizes = [16, 8], strides = [1, 1]} : vector<16x32xf32> to vector<16x8xf32>
    %57 = arith.truncf %56 : vector<16x8xf32> to vector<16x8xbf16>
    %cst_20 = arith.constant dense<0.000000e+00> : vector<16x16xf32>
    %58 = tpu.matmul %53, %55, %cst_20 {dimension_numbers = #tpu.dot_dimension_numbers<[1], [1], [0], [0], [0, 0, 1, 0], [], []>} : vector<16x8xbf16>, vector<16x8xbf16>, vector<16x16xf32> -> vector<16x16xf32>
    %cst_21 = arith.constant 0.353553385 : f32
    %59 = vector.broadcast %cst_21 : f32 to vector<16x16xf32>
    %60 = arith.mulf %58, %59 : vector<16x16xf32>
    %61 = arith.addf %60, %7 : vector<16x16xf32>
    %cst_22 = arith.constant dense<0xFF800000> : vector<16xf32>
    %62 = vector.multi_reduction <maximumf>, %61, %cst_22 [1] : vector<16x16xf32> to vector<16xf32>
    %63 = vector.shape_cast %62 : vector<16xf32> to vector<16x1xf32>
    %64 = vector.broadcast %63 : vector<16x1xf32> to vector<16x16xf32>
    %65 = arith.subf %61, %64 : vector<16x16xf32>
    %66 = math.exp %65 : vector<16x16xf32>
    %cst_23 = arith.constant dense<0.000000e+00> : vector<16xf32>
    %67 = vector.multi_reduction <add>, %66, %cst_23 [1] : vector<16x16xf32> to vector<16xf32>
    %68 = vector.shape_cast %67 : vector<16xf32> to vector<16x1xf32>
    %69 = tpu.reciprocal %68 {approx = true} : vector<16x1xf32> -> vector<16x1xf32>
    %70 = vector.broadcast %69 : vector<16x1xf32> to vector<16x16xf32>
    %71 = arith.mulf %66, %70 : vector<16x16xf32>
    %72 = arith.truncf %71 : vector<16x16xf32> to vector<16x16xbf16>
    %cst_24 = arith.constant dense<0.000000e+00> : vector<16x8xf32>
    %73 = tpu.matmul %72, %57, %cst_24 {dimension_numbers = #tpu.dot_dimension_numbers<[1], [0], [0], [1], [0, 0, 1, 1], [], []>} : vector<16x16xbf16>, vector<16x8xbf16>, vector<16x8xf32> -> vector<16x8xf32>
    %74 = vector.extract_strided_slice %1 {offsets = [0, 24], sizes = [16, 8], strides = [1, 1]} : vector<16x32xf32> to vector<16x8xf32>
    %75 = arith.truncf %74 : vector<16x8xf32> to vector<16x8xbf16>
    %76 = vector.extract_strided_slice %3 {offsets = [0, 24], sizes = [16, 8], strides = [1, 1]} : vector<16x32xf32> to vector<16x8xf32>
    %77 = arith.truncf %76 : vector<16x8xf32> to vector<16x8xbf16>
    %78 = vector.extract_strided_slice %5 {offsets = [0, 24], sizes = [16, 8], strides = [1, 1]} : vector<16x32xf32> to vector<16x8xf32>
    %79 = arith.truncf %78 : vector<16x8xf32> to vector<16x8xbf16>
    %cst_25 = arith.constant dense<0.000000e+00> : vector<16x16xf32>
    %80 = tpu.matmul %75, %77, %cst_25 {dimension_numbers = #tpu.dot_dimension_numbers<[1], [1], [0], [0], [0, 0, 1, 0], [], []>} : vector<16x8xbf16>, vector<16x8xbf16>, vector<16x16xf32> -> vector<16x16xf32>
    %cst_26 = arith.constant 0.353553385 : f32
    %81 = vector.broadcast %cst_26 : f32 to vector<16x16xf32>
    %82 = arith.mulf %80, %81 : vector<16x16xf32>
    %83 = arith.addf %82, %7 : vector<16x16xf32>
    %cst_27 = arith.constant dense<0xFF800000> : vector<16xf32>
    %84 = vector.multi_reduction <maximumf>, %83, %cst_27 [1] : vector<16x16xf32> to vector<16xf32>
    %85 = vector.shape_cast %84 : vector<16xf32> to vector<16x1xf32>
    %86 = vector.broadcast %85 : vector<16x1xf32> to vector<16x16xf32>
    %87 = arith.subf %83, %86 : vector<16x16xf32>
    %88 = math.exp %87 : vector<16x16xf32>
    %cst_28 = arith.constant dense<0.000000e+00> : vector<16xf32>
    %89 = vector.multi_reduction <add>, %88, %cst_28 [1] : vector<16x16xf32> to vector<16xf32>
    %90 = vector.shape_cast %89 : vector<16xf32> to vector<16x1xf32>
    %91 = tpu.reciprocal %90 {approx = true} : vector<16x1xf32> -> vector<16x1xf32>
    %92 = vector.broadcast %91 : vector<16x1xf32> to vector<16x16xf32>
    %93 = arith.mulf %88, %92 : vector<16x16xf32>
    %94 = arith.truncf %93 : vector<16x16xf32> to vector<16x16xbf16>
    %cst_29 = arith.constant dense<0.000000e+00> : vector<16x8xf32>
    %95 = tpu.matmul %94, %79, %cst_29 {dimension_numbers = #tpu.dot_dimension_numbers<[1], [0], [0], [1], [0, 0, 1, 1], [], []>} : vector<16x16xbf16>, vector<16x8xbf16>, vector<16x8xf32> -> vector<16x8xf32>
    %96 = tpu.concatenate %29, %51, %73, %95 in 1 : vector<16x8xf32>, vector<16x8xf32>, vector<16x8xf32>, vector<16x8xf32> -> vector<16x32xf32>
    %c0_30 = arith.constant 0 : index
    %c0_31 = arith.constant 0 : index
    %c0_32 = arith.constant 0 : index
    %97 = vector.load %arg5[%c0_30, %c0_31, %c0_32] : memref<1x16x32xf32, #tpu.memory_space<vmem>>, vector<1x16x32xf32>
    %98 = vector.shape_cast %97 : vector<1x16x32xf32> to vector<16x32xf32>
    %99 = vector.shape_cast %96 : vector<16x32xf32> to vector<1x16x32xf32>
    tpu.vector_store %arg5[%c0_30, %c0_31, %c0_32], %99 {strides = array<i32>} : memref<1x16x32xf32, #tpu.memory_space<vmem>>, vector<1x16x32xf32>,
    return
  }
  func.func @transform_0(%arg0: i32) -> (i32, i32, i32) {
    %c0_i32 = arith.constant 0 : i32
    %c0_i32_0 = arith.constant 0 : i32
    %c0_i32_1 = arith.constant 0 : i32
    return %arg0, %c0_i32, %c0_i32_0 : i32, i32, i32
  }
  func.func @transform_1(%arg0: i32) -> (i32, i32, i32) {
    %c0_i32 = arith.constant 0 : i32
    %c0_i32_0 = arith.constant 0 : i32
    %c0_i32_1 = arith.constant 0 : i32
    return %arg0, %c0_i32, %c0_i32_0 : i32, i32, i32
  }
  func.func @transform_2(%arg0: i32) -> (i32, i32, i32) {
    %c0_i32 = arith.constant 0 : i32
    %c0_i32_0 = arith.constant 0 : i32
    %c0_i32_1 = arith.constant 0 : i32
    return %arg0, %c0_i32, %c0_i32_0 : i32, i32, i32
  }
  func.func @transform_3(%arg0: i32) -> (i32, i32, i32) {
    %c0_i32 = arith.constant 0 : i32
    %c0_i32_0 = arith.constant 0 : i32
    %c0_i32_1 = arith.constant 0 : i32
    return %arg0, %c0_i32, %c0_i32_0 : i32, i32, i32
  }
  func.func @transform_4(%arg0: i32) -> (i32, i32, i32) {
    %c0_i32 = arith.constant 0 : i32
    %c0_i32_0 = arith.constant 0 : i32
    %c0_i32_1 = arith.constant 0 : i32
    return %arg0, %c0_i32, %c0_i32_0 : i32, i32, i32
  }
}

module attributes {stable_mosaic.version = 11 : i64} {
  func.func @_dense_res_ln_kernel(%arg0: i32, %arg1: i32, %arg2: i32, %arg3: memref<8x32xf32, #tpu.memory_space<vmem>>, %arg4: memref<32x32xf32, #tpu.memory_space<vmem>>, %arg5: memref<1x32xf32, #tpu.memory_space<vmem>>, %arg6: memref<8x32xf32, #tpu.memory_space<vmem>>, %arg7: memref<1x32xf32, #tpu.memory_space<vmem>>, %arg8: memref<1x32xf32, #tpu.memory_space<vmem>>, %arg9: memref<8x32xf32, #tpu.memory_space<vmem>>, %arg10: memref<8x32xf32, #tpu.memory_space<vmem>>) attributes {dimension_semantics = [#tpu.dimension_semantics<parallel>, #tpu.dimension_semantics<parallel>, #tpu.dimension_semantics<arbitrary>], iteration_bounds = array<i64: 4, 1, 1>, scalar_prefetch = 0 : i64, scratch_operands = 1 : i64, tpu.core_type = #tpu.core_type<tc>, window_params = [{transform_indices = @transform_0, window_bounds = array<i64: 8, 32>}, {transform_indices = @transform_1, window_bounds = array<i64: 32, 32>}, {transform_indices = @transform_2, window_bounds = array<i64: 1, 32>}, {transform_indices = @transform_3, window_bounds = array<i64: 8, 32>}, {transform_indices = @transform_4, window_bounds = array<i64: 1, 32>}, {transform_indices = @transform_5, window_bounds = array<i64: 1, 32>}, {transform_indices = @transform_6, window_bounds = array<i64: 8, 32>}]} {
    %c0_i32 = arith.constant 0 : i32
    %0 = arith.cmpi eq, %arg2, %c0_i32 : i32
    %1 = arith.extui %0 : i1 to i32
    %c0_i32_0 = arith.constant 0 : i32
    %2 = arith.cmpi ne, %1, %c0_i32_0 : i32
    scf.if %2 {
      %cst_10 = arith.constant 0.000000e+00 : f32
      %14 = vector.broadcast %cst_10 : f32 to vector<8x32xf32>
      %c0_11 = arith.constant 0 : index
      %c0_12 = arith.constant 0 : index
      %15 = vector.load %arg10[%c0_11, %c0_12] : memref<8x32xf32, #tpu.memory_space<vmem>>, vector<8x32xf32>
      tpu.vector_store %arg10[%c0_11, %c0_12], %14 {strides = array<i32>} : memref<8x32xf32, #tpu.memory_space<vmem>>, vector<8x32xf32>,
    } else {
    }
    %c0 = arith.constant 0 : index
    %c0_1 = arith.constant 0 : index
    %3 = vector.load %arg10[%c0, %c0_1] : memref<8x32xf32, #tpu.memory_space<vmem>>, vector<8x32xf32>
    %c0_2 = arith.constant 0 : index
    %c0_3 = arith.constant 0 : index
    %4 = vector.load %arg3[%c0_2, %c0_3] : memref<8x32xf32, #tpu.memory_space<vmem>>, vector<8x32xf32>
    %5 = arith.truncf %4 : vector<8x32xf32> to vector<8x32xbf16>
    %c0_4 = arith.constant 0 : index
    %c0_5 = arith.constant 0 : index
    %6 = vector.load %arg4[%c0_4, %c0_5] : memref<32x32xf32, #tpu.memory_space<vmem>>, vector<32x32xf32>
    %7 = arith.truncf %6 : vector<32x32xf32> to vector<32x32xbf16>
    %cst = arith.constant dense<0.000000e+00> : vector<8x32xf32>
    %8 = tpu.matmul %5, %7, %cst {dimension_numbers = #tpu.dot_dimension_numbers<[1], [0], [0], [1], [0, 0, 1, 1], [], []>} : vector<8x32xbf16>, vector<32x32xbf16>, vector<8x32xf32> -> vector<8x32xf32>
    %9 = arith.addf %3, %8 : vector<8x32xf32>
    %c0_6 = arith.constant 0 : index
    %c0_7 = arith.constant 0 : index
    %10 = vector.load %arg10[%c0_6, %c0_7] : memref<8x32xf32, #tpu.memory_space<vmem>>, vector<8x32xf32>
    tpu.vector_store %arg10[%c0_6, %c0_7], %9 {strides = array<i32>} : memref<8x32xf32, #tpu.memory_space<vmem>>, vector<8x32xf32>,
    %c0_i32_8 = arith.constant 0 : i32
    %11 = arith.cmpi eq, %arg2, %c0_i32_8 : i32
    %12 = arith.extui %11 : i1 to i32
    %c0_i32_9 = arith.constant 0 : i32
    %13 = arith.cmpi ne, %12, %c0_i32_9 : i32
    scf.if %13 {
      %c0_10 = arith.constant 0 : index
      %c0_11 = arith.constant 0 : index
      %14 = vector.load %arg10[%c0_10, %c0_11] : memref<8x32xf32, #tpu.memory_space<vmem>>, vector<8x32xf32>
      %c0_12 = arith.constant 0 : index
      %c0_13 = arith.constant 0 : index
      %15 = vector.load %arg5[%c0_12, %c0_13] : memref<1x32xf32, #tpu.memory_space<vmem>>, vector<1x32xf32>
      %16 = vector.broadcast %15 : vector<1x32xf32> to vector<8x32xf32>
      %17 = arith.addf %14, %16 : vector<8x32xf32>
      %c0_14 = arith.constant 0 : index
      %c0_15 = arith.constant 0 : index
      %18 = vector.load %arg6[%c0_14, %c0_15] : memref<8x32xf32, #tpu.memory_space<vmem>>, vector<8x32xf32>
      %19 = arith.addf %17, %18 : vector<8x32xf32>
      %cst_16 = arith.constant dense<0.000000e+00> : vector<8xf32>
      %20 = vector.multi_reduction <add>, %19, %cst_16 [1] : vector<8x32xf32> to vector<8xf32>
      %21 = vector.shape_cast %20 : vector<8xf32> to vector<8x1xf32>
      %cst_17 = arith.constant 3.200000e+01 : f32
      %22 = vector.broadcast %cst_17 : f32 to vector<8x1xf32>
      %23 = arith.divf %21, %22 : vector<8x1xf32>
      %24 = vector.broadcast %23 : vector<8x1xf32> to vector<8x32xf32>
      %25 = arith.subf %19, %24 : vector<8x32xf32>
      %26 = vector.broadcast %23 : vector<8x1xf32> to vector<8x32xf32>
      %27 = arith.subf %19, %26 : vector<8x32xf32>
      %28 = arith.mulf %25, %27 : vector<8x32xf32>
      %cst_18 = arith.constant dense<0.000000e+00> : vector<8xf32>
      %29 = vector.multi_reduction <add>, %28, %cst_18 [1] : vector<8x32xf32> to vector<8xf32>
      %30 = vector.shape_cast %29 : vector<8xf32> to vector<8x1xf32>
      %cst_19 = arith.constant 3.200000e+01 : f32
      %31 = vector.broadcast %cst_19 : f32 to vector<8x1xf32>
      %32 = arith.divf %30, %31 : vector<8x1xf32>
      %cst_20 = arith.constant 9.99999996E-13 : f32
      %33 = vector.broadcast %cst_20 : f32 to vector<8x1xf32>
      %34 = arith.addf %32, %33 : vector<8x1xf32>
      %35 = math.rsqrt %34 : vector<8x1xf32>
      %36 = vector.broadcast %23 : vector<8x1xf32> to vector<8x32xf32>
      %37 = arith.subf %19, %36 : vector<8x32xf32>
      %38 = vector.broadcast %35 : vector<8x1xf32> to vector<8x32xf32>
      %39 = arith.mulf %37, %38 : vector<8x32xf32>
      %c0_21 = arith.constant 0 : index
      %c0_22 = arith.constant 0 : index
      %40 = vector.load %arg7[%c0_21, %c0_22] : memref<1x32xf32, #tpu.memory_space<vmem>>, vector<1x32xf32>
      %41 = vector.broadcast %40 : vector<1x32xf32> to vector<8x32xf32>
      %42 = arith.mulf %39, %41 : vector<8x32xf32>
      %c0_23 = arith.constant 0 : index
      %c0_24 = arith.constant 0 : index
      %43 = vector.load %arg8[%c0_23, %c0_24] : memref<1x32xf32, #tpu.memory_space<vmem>>, vector<1x32xf32>
      %44 = vector.broadcast %43 : vector<1x32xf32> to vector<8x32xf32>
      %45 = arith.addf %42, %44 : vector<8x32xf32>
      %c0_25 = arith.constant 0 : index
      %c0_26 = arith.constant 0 : index
      %46 = vector.load %arg9[%c0_25, %c0_26] : memref<8x32xf32, #tpu.memory_space<vmem>>, vector<8x32xf32>
      tpu.vector_store %arg9[%c0_25, %c0_26], %45 {strides = array<i32>} : memref<8x32xf32, #tpu.memory_space<vmem>>, vector<8x32xf32>,
    } else {
    }
    return
  }
  func.func @transform_0(%arg0: i32, %arg1: i32, %arg2: i32) -> (i32, i32) {
    %c0_i32 = arith.constant 0 : i32
    return %arg0, %arg2 : i32, i32
  }
  func.func @transform_1(%arg0: i32, %arg1: i32, %arg2: i32) -> (i32, i32) {
    %c0_i32 = arith.constant 0 : i32
    return %arg2, %arg1 : i32, i32
  }
  func.func @transform_2(%arg0: i32, %arg1: i32, %arg2: i32) -> (i32, i32) {
    %c0_i32 = arith.constant 0 : i32
    %c0_i32_0 = arith.constant 0 : i32
    return %c0_i32, %arg1 : i32, i32
  }
  func.func @transform_3(%arg0: i32, %arg1: i32, %arg2: i32) -> (i32, i32) {
    %c0_i32 = arith.constant 0 : i32
    return %arg0, %arg1 : i32, i32
  }
  func.func @transform_4(%arg0: i32, %arg1: i32, %arg2: i32) -> (i32, i32) {
    %c0_i32 = arith.constant 0 : i32
    %c0_i32_0 = arith.constant 0 : i32
    return %c0_i32, %arg1 : i32, i32
  }
  func.func @transform_5(%arg0: i32, %arg1: i32, %arg2: i32) -> (i32, i32) {
    %c0_i32 = arith.constant 0 : i32
    %c0_i32_0 = arith.constant 0 : i32
    return %c0_i32, %arg1 : i32, i32
  }
  func.func @transform_6(%arg0: i32, %arg1: i32, %arg2: i32) -> (i32, i32) {
    %c0_i32 = arith.constant 0 : i32
    return %arg0, %arg1 : i32, i32
  }
}

module attributes {stable_mosaic.version = 11 : i64} {
  func.func @_dense_kernel(%arg0: i32, %arg1: i32, %arg2: i32, %arg3: memref<8x32xf32, #tpu.memory_space<vmem>>, %arg4: memref<32x64xf32, #tpu.memory_space<vmem>>, %arg5: memref<1x64xf32, #tpu.memory_space<vmem>>, %arg6: memref<8x64xf32, #tpu.memory_space<vmem>>, %arg7: memref<8x64xf32, #tpu.memory_space<vmem>>) attributes {dimension_semantics = [#tpu.dimension_semantics<parallel>, #tpu.dimension_semantics<parallel>, #tpu.dimension_semantics<arbitrary>], iteration_bounds = array<i64: 4, 1, 1>, scalar_prefetch = 0 : i64, scratch_operands = 1 : i64, tpu.core_type = #tpu.core_type<tc>, window_params = [{transform_indices = @transform_0, window_bounds = array<i64: 8, 32>}, {transform_indices = @transform_1, window_bounds = array<i64: 32, 64>}, {transform_indices = @transform_2, window_bounds = array<i64: 1, 64>}, {transform_indices = @transform_3, window_bounds = array<i64: 8, 64>}]} {
    %c0_i32 = arith.constant 0 : i32
    %0 = arith.cmpi eq, %arg2, %c0_i32 : i32
    %1 = arith.extui %0 : i1 to i32
    %c0_i32_0 = arith.constant 0 : i32
    %2 = arith.cmpi ne, %1, %c0_i32_0 : i32
    scf.if %2 {
      %cst_10 = arith.constant 0.000000e+00 : f32
      %14 = vector.broadcast %cst_10 : f32 to vector<8x64xf32>
      %c0_11 = arith.constant 0 : index
      %c0_12 = arith.constant 0 : index
      %15 = vector.load %arg7[%c0_11, %c0_12] : memref<8x64xf32, #tpu.memory_space<vmem>>, vector<8x64xf32>
      tpu.vector_store %arg7[%c0_11, %c0_12], %14 {strides = array<i32>} : memref<8x64xf32, #tpu.memory_space<vmem>>, vector<8x64xf32>,
    } else {
    }
    %c0 = arith.constant 0 : index
    %c0_1 = arith.constant 0 : index
    %3 = vector.load %arg7[%c0, %c0_1] : memref<8x64xf32, #tpu.memory_space<vmem>>, vector<8x64xf32>
    %c0_2 = arith.constant 0 : index
    %c0_3 = arith.constant 0 : index
    %4 = vector.load %arg3[%c0_2, %c0_3] : memref<8x32xf32, #tpu.memory_space<vmem>>, vector<8x32xf32>
    %5 = arith.truncf %4 : vector<8x32xf32> to vector<8x32xbf16>
    %c0_4 = arith.constant 0 : index
    %c0_5 = arith.constant 0 : index
    %6 = vector.load %arg4[%c0_4, %c0_5] : memref<32x64xf32, #tpu.memory_space<vmem>>, vector<32x64xf32>
    %7 = arith.truncf %6 : vector<32x64xf32> to vector<32x64xbf16>
    %cst = arith.constant dense<0.000000e+00> : vector<8x64xf32>
    %8 = tpu.matmul %5, %7, %cst {dimension_numbers = #tpu.dot_dimension_numbers<[1], [0], [0], [1], [0, 0, 1, 1], [], []>} : vector<8x32xbf16>, vector<32x64xbf16>, vector<8x64xf32> -> vector<8x64xf32>
    %9 = arith.addf %3, %8 : vector<8x64xf32>
    %c0_6 = arith.constant 0 : index
    %c0_7 = arith.constant 0 : index
    %10 = vector.load %arg7[%c0_6, %c0_7] : memref<8x64xf32, #tpu.memory_space<vmem>>, vector<8x64xf32>
    tpu.vector_store %arg7[%c0_6, %c0_7], %9 {strides = array<i32>} : memref<8x64xf32, #tpu.memory_space<vmem>>, vector<8x64xf32>,
    %c0_i32_8 = arith.constant 0 : i32
    %11 = arith.cmpi eq, %arg2, %c0_i32_8 : i32
    %12 = arith.extui %11 : i1 to i32
    %c0_i32_9 = arith.constant 0 : i32
    %13 = arith.cmpi ne, %12, %c0_i32_9 : i32
    scf.if %13 {
      %c0_10 = arith.constant 0 : index
      %c0_11 = arith.constant 0 : index
      %14 = vector.load %arg7[%c0_10, %c0_11] : memref<8x64xf32, #tpu.memory_space<vmem>>, vector<8x64xf32>
      %c0_12 = arith.constant 0 : index
      %c0_13 = arith.constant 0 : index
      %15 = vector.load %arg5[%c0_12, %c0_13] : memref<1x64xf32, #tpu.memory_space<vmem>>, vector<1x64xf32>
      %16 = vector.broadcast %15 : vector<1x64xf32> to vector<8x64xf32>
      %17 = arith.addf %14, %16 : vector<8x64xf32>
      %cst_14 = arith.constant 5.000000e-01 : f32
      %18 = vector.broadcast %cst_14 : f32 to vector<8x64xf32>
      %19 = arith.mulf %18, %17 : vector<8x64xf32>
      %cst_15 = arith.constant 0.707106769 : f32
      %20 = vector.broadcast %cst_15 : f32 to vector<8x64xf32>
      %21 = arith.mulf %17, %20 : vector<8x64xf32>
      %cst_16 = arith.constant 0.000000e+00 : f32
      %22 = vector.broadcast %cst_16 : f32 to vector<8x64xf32>
      %23 = arith.cmpf oge, %21, %22 : vector<8x64xf32>
      %cst_17 = arith.constant 1.000000e+00 : f32
      %cst_18 = arith.constant -1.000000e+00 : f32
      %24 = vector.broadcast %cst_17 : f32 to vector<8x64xf32>
      %25 = vector.broadcast %cst_18 : f32 to vector<8x64xf32>
      %26 = arith.select %23, %24, %25 : vector<8x64xi1>, vector<8x64xf32>
      %27 = math.absf %21 : vector<8x64xf32>
      %cst_19 = arith.constant 0.327591091 : f32
      %28 = vector.broadcast %cst_19 : f32 to vector<8x64xf32>
      %29 = arith.mulf %28, %27 : vector<8x64xf32>
      %cst_20 = arith.constant 1.000000e+00 : f32
      %30 = vector.broadcast %cst_20 : f32 to vector<8x64xf32>
      %31 = arith.addf %30, %29 : vector<8x64xf32>
      %cst_21 = arith.constant 1.000000e+00 : f32
      %32 = vector.broadcast %cst_21 : f32 to vector<8x64xf32>
      %33 = arith.divf %32, %31 : vector<8x64xf32>
      %cst_22 = arith.constant 1.06140542 : f32
      %34 = vector.broadcast %cst_22 : f32 to vector<8x64xf32>
      %35 = arith.mulf %34, %33 : vector<8x64xf32>
      %cst_23 = arith.constant 1.45315206 : f32
      %36 = vector.broadcast %cst_23 : f32 to vector<8x64xf32>
      %37 = arith.subf %35, %36 : vector<8x64xf32>
      %38 = arith.mulf %37, %33 : vector<8x64xf32>
      %cst_24 = arith.constant 1.42141378 : f32
      %39 = vector.broadcast %cst_24 : f32 to vector<8x64xf32>
      %40 = arith.addf %38, %39 : vector<8x64xf32>
      %41 = arith.mulf %40, %33 : vector<8x64xf32>
      %cst_25 = arith.constant 0.284496725 : f32
      %42 = vector.broadcast %cst_25 : f32 to vector<8x64xf32>
      %43 = arith.subf %41, %42 : vector<8x64xf32>
      %44 = arith.mulf %43, %33 : vector<8x64xf32>
      %cst_26 = arith.constant 0.254829586 : f32
      %45 = vector.broadcast %cst_26 : f32 to vector<8x64xf32>
      %46 = arith.addf %44, %45 : vector<8x64xf32>
      %47 = arith.mulf %46, %33 : vector<8x64xf32>
      %cst_27 = arith.constant 0.000000e+00 : f32
      %48 = vector.broadcast %cst_27 : f32 to vector<8x64xf32>
      %49 = arith.subf %48, %27 : vector<8x64xf32>
      %50 = arith.mulf %49, %27 : vector<8x64xf32>
      %51 = math.exp %50 : vector<8x64xf32>
      %52 = arith.mulf %47, %51 : vector<8x64xf32>
      %cst_28 = arith.constant 1.000000e+00 : f32
      %53 = vector.broadcast %cst_28 : f32 to vector<8x64xf32>
      %54 = arith.subf %53, %52 : vector<8x64xf32>
      %55 = arith.mulf %26, %54 : vector<8x64xf32>
      %cst_29 = arith.constant 1.000000e+00 : f32
      %56 = vector.broadcast %cst_29 : f32 to vector<8x64xf32>
      %57 = arith.addf %56, %55 : vector<8x64xf32>
      %58 = arith.mulf %19, %57 : vector<8x64xf32>
      %c0_30 = arith.constant 0 : index
      %c0_31 = arith.constant 0 : index
      %59 = vector.load %arg6[%c0_30, %c0_31] : memref<8x64xf32, #tpu.memory_space<vmem>>, vector<8x64xf32>
      tpu.vector_store %arg6[%c0_30, %c0_31], %58 {strides = array<i32>} : memref<8x64xf32, #tpu.memory_space<vmem>>, vector<8x64xf32>,
    } else {
    }
    return
  }
  func.func @transform_0(%arg0: i32, %arg1: i32, %arg2: i32) -> (i32, i32) {
    %c0_i32 = arith.constant 0 : i32
    return %arg0, %arg2 : i32, i32
  }
  func.func @transform_1(%arg0: i32, %arg1: i32, %arg2: i32) -> (i32, i32) {
    %c0_i32 = arith.constant 0 : i32
    return %arg2, %arg1 : i32, i32
  }
  func.func @transform_2(%arg0: i32, %arg1: i32, %arg2: i32) -> (i32, i32) {
    %c0_i32 = arith.constant 0 : i32
    %c0_i32_0 = arith.constant 0 : i32
    return %c0_i32, %arg1 : i32, i32
  }
  func.func @transform_3(%arg0: i32, %arg1: i32, %arg2: i32) -> (i32, i32) {
    %c0_i32 = arith.constant 0 : i32
    return %arg0, %arg1 : i32, i32
  }
}

module attributes {stable_mosaic.version = 11 : i64} {
  func.func @_dense_res_ln_kernel(%arg0: i32, %arg1: i32, %arg2: i32, %arg3: memref<8x64xf32, #tpu.memory_space<vmem>>, %arg4: memref<64x32xf32, #tpu.memory_space<vmem>>, %arg5: memref<1x32xf32, #tpu.memory_space<vmem>>, %arg6: memref<8x32xf32, #tpu.memory_space<vmem>>, %arg7: memref<1x32xf32, #tpu.memory_space<vmem>>, %arg8: memref<1x32xf32, #tpu.memory_space<vmem>>, %arg9: memref<8x32xf32, #tpu.memory_space<vmem>>, %arg10: memref<8x32xf32, #tpu.memory_space<vmem>>) attributes {dimension_semantics = [#tpu.dimension_semantics<parallel>, #tpu.dimension_semantics<parallel>, #tpu.dimension_semantics<arbitrary>], iteration_bounds = array<i64: 4, 1, 1>, scalar_prefetch = 0 : i64, scratch_operands = 1 : i64, tpu.core_type = #tpu.core_type<tc>, window_params = [{transform_indices = @transform_0, window_bounds = array<i64: 8, 64>}, {transform_indices = @transform_1, window_bounds = array<i64: 64, 32>}, {transform_indices = @transform_2, window_bounds = array<i64: 1, 32>}, {transform_indices = @transform_3, window_bounds = array<i64: 8, 32>}, {transform_indices = @transform_4, window_bounds = array<i64: 1, 32>}, {transform_indices = @transform_5, window_bounds = array<i64: 1, 32>}, {transform_indices = @transform_6, window_bounds = array<i64: 8, 32>}]} {
    %c0_i32 = arith.constant 0 : i32
    %0 = arith.cmpi eq, %arg2, %c0_i32 : i32
    %1 = arith.extui %0 : i1 to i32
    %c0_i32_0 = arith.constant 0 : i32
    %2 = arith.cmpi ne, %1, %c0_i32_0 : i32
    scf.if %2 {
      %cst_10 = arith.constant 0.000000e+00 : f32
      %14 = vector.broadcast %cst_10 : f32 to vector<8x32xf32>
      %c0_11 = arith.constant 0 : index
      %c0_12 = arith.constant 0 : index
      %15 = vector.load %arg10[%c0_11, %c0_12] : memref<8x32xf32, #tpu.memory_space<vmem>>, vector<8x32xf32>
      tpu.vector_store %arg10[%c0_11, %c0_12], %14 {strides = array<i32>} : memref<8x32xf32, #tpu.memory_space<vmem>>, vector<8x32xf32>,
    } else {
    }
    %c0 = arith.constant 0 : index
    %c0_1 = arith.constant 0 : index
    %3 = vector.load %arg10[%c0, %c0_1] : memref<8x32xf32, #tpu.memory_space<vmem>>, vector<8x32xf32>
    %c0_2 = arith.constant 0 : index
    %c0_3 = arith.constant 0 : index
    %4 = vector.load %arg3[%c0_2, %c0_3] : memref<8x64xf32, #tpu.memory_space<vmem>>, vector<8x64xf32>
    %5 = arith.truncf %4 : vector<8x64xf32> to vector<8x64xbf16>
    %c0_4 = arith.constant 0 : index
    %c0_5 = arith.constant 0 : index
    %6 = vector.load %arg4[%c0_4, %c0_5] : memref<64x32xf32, #tpu.memory_space<vmem>>, vector<64x32xf32>
    %7 = arith.truncf %6 : vector<64x32xf32> to vector<64x32xbf16>
    %cst = arith.constant dense<0.000000e+00> : vector<8x32xf32>
    %8 = tpu.matmul %5, %7, %cst {dimension_numbers = #tpu.dot_dimension_numbers<[1], [0], [0], [1], [0, 0, 1, 1], [], []>} : vector<8x64xbf16>, vector<64x32xbf16>, vector<8x32xf32> -> vector<8x32xf32>
    %9 = arith.addf %3, %8 : vector<8x32xf32>
    %c0_6 = arith.constant 0 : index
    %c0_7 = arith.constant 0 : index
    %10 = vector.load %arg10[%c0_6, %c0_7] : memref<8x32xf32, #tpu.memory_space<vmem>>, vector<8x32xf32>
    tpu.vector_store %arg10[%c0_6, %c0_7], %9 {strides = array<i32>} : memref<8x32xf32, #tpu.memory_space<vmem>>, vector<8x32xf32>,
    %c0_i32_8 = arith.constant 0 : i32
    %11 = arith.cmpi eq, %arg2, %c0_i32_8 : i32
    %12 = arith.extui %11 : i1 to i32
    %c0_i32_9 = arith.constant 0 : i32
    %13 = arith.cmpi ne, %12, %c0_i32_9 : i32
    scf.if %13 {
      %c0_10 = arith.constant 0 : index
      %c0_11 = arith.constant 0 : index
      %14 = vector.load %arg10[%c0_10, %c0_11] : memref<8x32xf32, #tpu.memory_space<vmem>>, vector<8x32xf32>
      %c0_12 = arith.constant 0 : index
      %c0_13 = arith.constant 0 : index
      %15 = vector.load %arg5[%c0_12, %c0_13] : memref<1x32xf32, #tpu.memory_space<vmem>>, vector<1x32xf32>
      %16 = vector.broadcast %15 : vector<1x32xf32> to vector<8x32xf32>
      %17 = arith.addf %14, %16 : vector<8x32xf32>
      %c0_14 = arith.constant 0 : index
      %c0_15 = arith.constant 0 : index
      %18 = vector.load %arg6[%c0_14, %c0_15] : memref<8x32xf32, #tpu.memory_space<vmem>>, vector<8x32xf32>
      %19 = arith.addf %17, %18 : vector<8x32xf32>
      %cst_16 = arith.constant dense<0.000000e+00> : vector<8xf32>
      %20 = vector.multi_reduction <add>, %19, %cst_16 [1] : vector<8x32xf32> to vector<8xf32>
      %21 = vector.shape_cast %20 : vector<8xf32> to vector<8x1xf32>
      %cst_17 = arith.constant 3.200000e+01 : f32
      %22 = vector.broadcast %cst_17 : f32 to vector<8x1xf32>
      %23 = arith.divf %21, %22 : vector<8x1xf32>
      %24 = vector.broadcast %23 : vector<8x1xf32> to vector<8x32xf32>
      %25 = arith.subf %19, %24 : vector<8x32xf32>
      %26 = vector.broadcast %23 : vector<8x1xf32> to vector<8x32xf32>
      %27 = arith.subf %19, %26 : vector<8x32xf32>
      %28 = arith.mulf %25, %27 : vector<8x32xf32>
      %cst_18 = arith.constant dense<0.000000e+00> : vector<8xf32>
      %29 = vector.multi_reduction <add>, %28, %cst_18 [1] : vector<8x32xf32> to vector<8xf32>
      %30 = vector.shape_cast %29 : vector<8xf32> to vector<8x1xf32>
      %cst_19 = arith.constant 3.200000e+01 : f32
      %31 = vector.broadcast %cst_19 : f32 to vector<8x1xf32>
      %32 = arith.divf %30, %31 : vector<8x1xf32>
      %cst_20 = arith.constant 9.99999996E-13 : f32
      %33 = vector.broadcast %cst_20 : f32 to vector<8x1xf32>
      %34 = arith.addf %32, %33 : vector<8x1xf32>
      %35 = math.rsqrt %34 : vector<8x1xf32>
      %36 = vector.broadcast %23 : vector<8x1xf32> to vector<8x32xf32>
      %37 = arith.subf %19, %36 : vector<8x32xf32>
      %38 = vector.broadcast %35 : vector<8x1xf32> to vector<8x32xf32>
      %39 = arith.mulf %37, %38 : vector<8x32xf32>
      %c0_21 = arith.constant 0 : index
      %c0_22 = arith.constant 0 : index
      %40 = vector.load %arg7[%c0_21, %c0_22] : memref<1x32xf32, #tpu.memory_space<vmem>>, vector<1x32xf32>
      %41 = vector.broadcast %40 : vector<1x32xf32> to vector<8x32xf32>
      %42 = arith.mulf %39, %41 : vector<8x32xf32>
      %c0_23 = arith.constant 0 : index
      %c0_24 = arith.constant 0 : index
      %43 = vector.load %arg8[%c0_23, %c0_24] : memref<1x32xf32, #tpu.memory_space<vmem>>, vector<1x32xf32>
      %44 = vector.broadcast %43 : vector<1x32xf32> to vector<8x32xf32>
      %45 = arith.addf %42, %44 : vector<8x32xf32>
      %c0_25 = arith.constant 0 : index
      %c0_26 = arith.constant 0 : index
      %46 = vector.load %arg9[%c0_25, %c0_26] : memref<8x32xf32, #tpu.memory_space<vmem>>, vector<8x32xf32>
      tpu.vector_store %arg9[%c0_25, %c0_26], %45 {strides = array<i32>} : memref<8x32xf32, #tpu.memory_space<vmem>>, vector<8x32xf32>,
    } else {
    }
    return
  }
  func.func @transform_0(%arg0: i32, %arg1: i32, %arg2: i32) -> (i32, i32) {
    %c0_i32 = arith.constant 0 : i32
    return %arg0, %arg2 : i32, i32
  }
  func.func @transform_1(%arg0: i32, %arg1: i32, %arg2: i32) -> (i32, i32) {
    %c0_i32 = arith.constant 0 : i32
    return %arg2, %arg1 : i32, i32
  }
  func.func @transform_2(%arg0: i32, %arg1: i32, %arg2: i32) -> (i32, i32) {
    %c0_i32 = arith.constant 0 : i32
    %c0_i32_0 = arith.constant 0 : i32
    return %c0_i32, %arg1 : i32, i32
  }
  func.func @transform_3(%arg0: i32, %arg1: i32, %arg2: i32) -> (i32, i32) {
    %c0_i32 = arith.constant 0 : i32
    return %arg0, %arg1 : i32, i32
  }
  func.func @transform_4(%arg0: i32, %arg1: i32, %arg2: i32) -> (i32, i32) {
    %c0_i32 = arith.constant 0 : i32
    %c0_i32_0 = arith.constant 0 : i32
    return %c0_i32, %arg1 : i32, i32
  }
  func.func @transform_5(%arg0: i32, %arg1: i32, %arg2: i32) -> (i32, i32) {
    %c0_i32 = arith.constant 0 : i32
    %c0_i32_0 = arith.constant 0 : i32
    return %c0_i32, %arg1 : i32, i32
  }
  func.func @transform_6(%arg0: i32, %arg1: i32, %arg2: i32) -> (i32, i32) {
    %c0_i32 = arith.constant 0 : i32
    return %arg0, %arg1 : i32, i32
  }
}

</mosaic_0001>

<llo_original>
// kernel: table_encoder_simple.10
$region0: #{table_encoder_simple.10}
  #allocation0 [shape = 'u32[]', space=smem, size = 0x4, offset = 0x4, fixed_abs, tag = 'smem constant byte address 0x4 - core index']
  #allocation1 [shape = 'u32[72,128]{1,0:T(1,128)}', space=vmem, size = 0x9000, scoped, tag = 'internal scratch']
  #allocation2 [shape = 'f32[8,96]{1,0:T(8,128)}', space=vmem, size = 0x1000, scoped, tag = 'scratch operand']
  %s0 = inlined_call_operand.vmem [shape: f32[32,32], index: 0, kind: input, shape index: {}]
  %s1 = inlined_call_operand.vmem [shape: f32[32,96], index: 1, kind: input, shape index: {}]
  %s2 = inlined_call_operand.vmem [shape: f32[1,96], index: 2, kind: input, shape index: {}]
  %s3 = inlined_call_operand.vmem [shape: f32[32,96], index: 3, kind: output, shape index: {}]
  %s4 = sld [smem:[#allocation0]]
  $region53: #{table_encoder_simple.10} parent=0
    _
  %s6 = ssub.s32 1, %s4
  %s7 = scalar_select 0, %s6, %s4
  loop: start=0, step=1, limit=6
  $region2: #{table_encoder_simple.10} parent=0 // loop_pre_header
    _
  $region3: #{table_encoder_simple.10} parent=0 // loop_header
    %s9 = sphi 0, %s13
    %p10 = scmp.ge.s32.totalorder %s9, 6
    %s16 = sphi 0, %s35
    %s17 = sphi 0, %s31
    %s18 = sphi 0, %s27
    %s19 = sphi 0, %s16
    %s20 = sphi 0, %s17
    %s21 = sphi 0, %s18
    %s22 = sphi 0, %s19
    %s23 = sphi 0, %s20
    %s24 = sphi 0, %s21
    %s40 = sphi 0, %s42
    %s43 = sphi 0, %s40
    %s44 = sphi 0, %s43
    %s60 = sphi 0, %s44
    %s68 = sphi 0, %s70
    %s71 = sphi 0, %s68
    %s72 = sphi 0, %s71
    %s88 = sphi 0, %s72
    %s94 = sphi 0, %s96
    %s97 = sphi 0, %s94
    %s98 = sphi 0, %s97
    %s114 = sphi 0, %s98
    %s122 = sphi 0, %s124
    %s125 = sphi 0, %s122
    %s126 = sphi 0, %s125
    %s142 = sphi 0, %s126
  $region4: #{table_encoder_simple.10} parent=0 // loop_header_branch
    %12 = sbr.rel (%p10) target = $region8
  $region5: #{table_encoder_simple.10} parent=0 // loop_body
    %s14 = ssub.s32 %s9, 1
    %s15 = ssub.s32 %s9, 2
    %s25 = sadd.s32 1, %s18
    %p26 = scmp.ge.s32.totalorder %s25, 1
    %s27 = scalar_select %p26, 0, %s25
    %s28 = sadd.s32 1, %s17
    %s29 = scalar_select %p26, %s28, %s17
    %p30 = scmp.ge.s32.totalorder %s29, 1
    %s31 = scalar_select %p30, 0, %s29
    %s32 = sadd.s32 1, %s16
    %s33 = scalar_select %p30, %s32, %s16
    %p34 = scmp.ge.s32.totalorder %s33, 4
    %s35 = scalar_select %p34, 0, %s33
    %s36 = ssub.s32 %s16, %s35
    %s37 = ssub.s32 %s18, %s27
    %s38 = sor.u32 %s36, %s37
    %p39 = scmp.eq.s32.totalorder %s38, 0
    %s41 = sadd.s32 %s40, 1
    %s42 = scalar_select %p39, %s40, %s41
    %p45 = pneg %p39
    %p46 = scmp.eq.s32.totalorder %s9, 3
    %p47 = por %p45, %p46
    %p48 = scmp.ne.s32.totalorder %s40, %s43
    %p49 = scmp.eq.s32.totalorder %s9, 0
    %p50 = por %p48, %p49
    %p51 = scmp.ne.s32.totalorder %s40, %s43
    %p52 = scmp.eq.s32.totalorder %s14, 3
    %p53 = por %p51, %p52
    %p54 = scmp.ne.s32.totalorder %s43, %s44
    %p55 = scmp.eq.s32.totalorder %s14, 0
    %p56 = por %p54, %p55
    %p57 = scmp.ne.s32.totalorder %s43, %s44
    %p58 = scmp.eq.s32.totalorder %s15, 3
    %p59 = por %p57, %p58
    %p61 = scmp.ne.s32.totalorder %s44, %s60
    %p62 = scmp.eq.s32.totalorder %s15, 0
    %p63 = por %p61, %p62
    %s64 = ssub.s32 %s18, %s27
    %s65 = ssub.s32 %s17, %s31
    %s66 = sor.u32 %s64, %s65
    %p67 = scmp.eq.s32.totalorder %s66, 0
    %s69 = sadd.s32 %s68, 1
    %s70 = scalar_select %p67, %s68, %s69
    %p73 = pneg %p67
    %p74 = scmp.eq.s32.totalorder %s9, 3
    %p75 = por %p73, %p74
    %p76 = scmp.ne.s32.totalorder %s68, %s71
    %p77 = scmp.eq.s32.totalorder %s9, 0
    %p78 = por %p76, %p77
    %p79 = scmp.ne.s32.totalorder %s68, %s71
    %p80 = scmp.eq.s32.totalorder %s14, 3
    %p81 = por %p79, %p80
    %p82 = scmp.ne.s32.totalorder %s71, %s72
    %p83 = scmp.eq.s32.totalorder %s14, 0
    %p84 = por %p82, %p83
    %p85 = scmp.ne.s32.totalorder %s71, %s72
    %p86 = scmp.eq.s32.totalorder %s15, 3
    %p87 = por %p85, %p86
    %p89 = scmp.ne.s32.totalorder %s72, %s88
    %p90 = scmp.eq.s32.totalorder %s15, 0
    %p91 = por %p89, %p90
    %s92 = ssub.s32 %s17, %s31
    %p93 = scmp.eq.s32.totalorder %s92, 0
    %s95 = sadd.s32 %s94, 1
    %s96 = scalar_select %p93, %s94, %s95
    %p99 = pneg %p93
    %p100 = scmp.eq.s32.totalorder %s9, 3
    %p101 = por %p99, %p100
    %p102 = scmp.ne.s32.totalorder %s94, %s97
    %p103 = scmp.eq.s32.totalorder %s9, 0
    %p104 = por %p102, %p103
    %p105 = scmp.ne.s32.totalorder %s94, %s97
    %p106 = scmp.eq.s32.totalorder %s14, 3
    %p107 = por %p105, %p106
    %p108 = scmp.ne.s32.totalorder %s97, %s98
    %p109 = scmp.eq.s32.totalorder %s14, 0
    %p110 = por %p108, %p109
    %p111 = scmp.ne.s32.totalorder %s97, %s98
    %p112 = scmp.eq.s32.totalorder %s15, 3
    %p113 = por %p111, %p112
    %p115 = scmp.ne.s32.totalorder %s98, %s114
    %p116 = scmp.eq.s32.totalorder %s15, 0
    %p117 = por %p115, %p116
    %s118 = ssub.s32 %s16, %s35
    %s119 = ssub.s32 %s17, %s31
    %s120 = sor.u32 %s118, %s119
    %p121 = scmp.eq.s32.totalorder %s120, 0
    %s123 = sadd.s32 %s122, 1
    %s124 = scalar_select %p121, %s122, %s123
    %p127 = pneg %p121
    %p128 = scmp.eq.s32.totalorder %s9, 3
    %p129 = por %p127, %p128
    %p130 = scmp.ne.s32.totalorder %s122, %s125
    %p131 = scmp.eq.s32.totalorder %s9, 0
    %p132 = por %p130, %p131
    %p133 = scmp.ne.s32.totalorder %s122, %s125
    %p134 = scmp.eq.s32.totalorder %s14, 3
    %p135 = por %p133, %p134
    %p136 = scmp.ne.s32.totalorder %s125, %s126
    %p137 = scmp.eq.s32.totalorder %s14, 0
    %p138 = por %p136, %p137
    %p139 = scmp.ne.s32.totalorder %s125, %s126
    %p140 = scmp.eq.s32.totalorder %s15, 3
    %p141 = por %p139, %p140
    %p143 = scmp.ne.s32.totalorder %s126, %s142
    %p144 = scmp.eq.s32.totalorder %s15, 0
    %p145 = por %p143, %p144
    %p146 = scmp.le.s32.totalorder 1, %s9
    %p147 = scmp.lt.s32.totalorder %s9, 5
    %p148 = pnand %p146, %p147
    %p149 = pneg %p148
    // Predicated region
    $region9: #{table_encoder_simple.10} parent=5 // pred_check
      _
    $region10: #{table_encoder_simple.10} parent=5 // pred_check_branch
      %151 = sbr.rel (%p148) target = $region12
    $region11: #{table_encoder_simple.10} parent=5 // pred_region
      %s152 = ssub.s32 %s9, 1
      // Predicated region
      $region13: #{table_encoder_simple.10} parent=11 // pred_check
        %p153 = pneg %p84
      $region14: #{table_encoder_simple.10} parent=11 // pred_check_branch
        %155 = sbr.rel (%p153) target = $region16
      $region15: #{table_encoder_simple.10} parent=11 // pred_region
        %s156 = smul.u32 4, %s21
        %p157 = scmp.lt.s32.totalorder %s156, 3
        %s158 = scalar_select %p157, %s156, 3
        %p159 = scmp.lt.s32.totalorder %s20, 0
        %s160 = scalar_select %p159, %s20, 0
        %s161 = sadd.s32 %s160, %s158
        %s162 = smul.addr %s161, 8
        %s163 = scalar_lea.vmem %s1, %s162
        %s164 = smul.u32 4, %s21
      $region16: #{table_encoder_simple.10} parent=11 // pred_fallthru
        _
      // Predicated region
      $region17: #{table_encoder_simple.10} parent=11 // pred_check
        %p165 = pneg %p110
      $region18: #{table_encoder_simple.10} parent=11 // pred_check_branch
        %167 = sbr.rel (%p165) target = $region20
      $region19: #{table_encoder_simple.10} parent=11 // pred_region
        %p168 = scmp.lt.s32.totalorder %s20, 0
        %s169 = scalar_select %p168, %s20, 0
        %s170 = scalar_lea.vmem %s2, %s169
      $region20: #{table_encoder_simple.10} parent=11 // pred_fallthru
        _
    $region12: #{table_encoder_simple.10} parent=5 // pred_fallthru
      _
    %p171 = scmp.lt.s32.totalorder %s9, 4
    // Predicated region
    $region21: #{table_encoder_simple.10} parent=5 // pred_check
      %p172 = pneg %p171
    $region22: #{table_encoder_simple.10} parent=5 // pred_check_branch
      %174 = sbr.rel (%p172) target = $region24
    $region23: #{table_encoder_simple.10} parent=5 // pred_region
      // Predicated region
      $region25: #{table_encoder_simple.10} parent=23 // pred_check
        %p175 = pneg %p50
      $region26: #{table_encoder_simple.10} parent=23 // pred_check_branch
        %177 = sbr.rel (%p175) target = $region28
      $region27: #{table_encoder_simple.10} parent=23 // pred_region
        %p178 = scmp.lt.s32.totalorder %s16, 3
        %s179 = scalar_select %p178, %s16, 3
        %p180 = scmp.lt.s32.totalorder %s18, 0
        %s181 = scalar_select %p180, %s18, 0
        %s182 = sadd.s32 %s181, %s179
        %s183 = smul.addr %s182, 8
        %s184 = scalar_lea.vmem %s0, %s183
      $region28: #{table_encoder_simple.10} parent=23 // pred_fallthru
        _
    $region24: #{table_encoder_simple.10} parent=5 // pred_fallthru
      _
    %p185 = scmp.le.s32.totalorder 1, %s9
    %p186 = scmp.lt.s32.totalorder %s9, 5
    %p187 = pnand %p185, %p186
    %p188 = pneg %p187
    // Predicated region
    $region29: #{table_encoder_simple.10} parent=5 // pred_check
      _
    $region30: #{table_encoder_simple.10} parent=5 // pred_check_branch
      %190 = sbr.rel (%p187) target = $region32
    $region31: #{table_encoder_simple.10} parent=5 // pred_region
      %s191 = ssub.s32 %s9, 1
      %p192 = scmp.lt.s32.totalorder %s19, 3
      %s193 = scalar_select %p192, %s19, 3
      %p194 = scmp.lt.s32.totalorder %s21, 0
      %s195 = scalar_select %p194, %s21, 0
      %s196 = sadd.s32 %s195, %s193
      %s197 = smul.addr %s196, 8
      %s198 = scalar_lea.vmem %s0, %s197
      %p199 = pneg %p56
      %p200 = pneg %p53
      %s201 = smul.u32 4, %s21
      %p202 = scmp.lt.s32.totalorder %s201, 3
      %s203 = scalar_select %p202, %s201, 3
      %p204 = scmp.lt.s32.totalorder %s20, 0
      %s205 = scalar_select %p204, %s20, 0
      %s206 = sadd.s32 %s205, %s203
      %s207 = smul.addr %s206, 8
      %s208 = scalar_lea.vmem %s1, %s207
      %p209 = pneg %p84
      %p210 = pneg %p81
      %p211 = scmp.lt.s32.totalorder %s20, 0
      %s212 = scalar_select %p211, %s20, 0
      %s213 = scalar_lea.vmem %s2, %s212
      %p214 = pneg %p110
      %p215 = pneg %p107
      %p216 = pneg %p138
      %p217 = pneg %p135
      %p218 = scmp.lt.s32.totalorder %s19, 3
      %s219 = scalar_select %p218, %s19, 3
      %p220 = scmp.lt.s32.totalorder %s20, 0
      %s221 = scalar_select %p220, %s20, 0
      %s222 = sadd.s32 %s221, %s219
      %s223 = smul.addr %s222, 8
      %s224 = scalar_lea.vmem %s3, %s223
      %p225 = scmp.lt.s32.totalorder %s19, 3
      %s226 = scalar_select %p225, %s19, 3
      %p227 = scmp.lt.s32.totalorder %s21, 0
      %s228 = scalar_select %p227, %s21, 0
      %s229 = sadd.s32 %s228, %s226
      %s230 = smul.addr %s229, 8
      %s231 = scalar_lea.vmem %s0, %s230
      %s232 = smul.u32 4, %s21
      %p233 = scmp.lt.s32.totalorder %s232, 3
      %s234 = scalar_select %p233, %s232, 3
      %p235 = scmp.lt.s32.totalorder %s20, 0
      %s236 = scalar_select %p235, %s20, 0
      %s237 = sadd.s32 %s236, %s234
      %s238 = smul.addr %s237, 8
      %s239 = scalar_lea.vmem %s1, %s238
      %s240 = smul.u32 4, %s21
      %p241 = scmp.lt.s32.totalorder %s20, 0
      %s242 = scalar_select %p241, %s20, 0
      %s243 = scalar_lea.vmem %s2, %s242
      %p244 = scmp.lt.s32.totalorder %s19, 3
      %s245 = scalar_select %p244, %s19, 3
      %p246 = scmp.lt.s32.totalorder %s20, 0
      %s247 = scalar_select %p246, %s20, 0
      %s248 = sadd.s32 %s247, %s245
      %s249 = smul.addr %s248, 8
      %s250 = scalar_lea.vmem %s3, %s249
      %p252 = scmp.eq.s32.totalorder %s21, 0
      // Predicated region
      $region33: #{table_encoder_simple.10} parent=31 // pred_check
        %p253 = pneg %p252
      $region34: #{table_encoder_simple.10} parent=31 // pred_check_branch
        %255 = sbr.rel (%p253) target = $region36
      $region35: #{table_encoder_simple.10} parent=31 // pred_region
        %vm256 = vcmask 785408
        %257 = vst.msk [vmem:[#allocation2] sm:$0xff] %vm256, 0.0
      $region36: #{table_encoder_simple.10} parent=31 // pred_fallthru
        _
      %v258 = vld [vmem:[#allocation2] sm:$0xff]
      %v259 = vld [vmem:[%s231] sm:$0xff]
      %v260 = vpack.c.bf16 %v259, %v259
      %v261 = vld [vmem:[%s239] sm:$0xff]
      %v262 = vld [vmem:[%s239 + $0x8] sm:$0xff]
      %v263 = vld [vmem:[%s239 + $0x10] sm:$0xff]
      %v264 = vld [vmem:[%s239 + $0x18] sm:$0xff]
      %v265 = vpack.c.bf16 %v262, %v261
      %v266 = vpack.c.bf16 %v264, %v263
      %vm267 = vcmask 261120
      %v269 = vsel %vm267, %v260, 0
      %271 = vmatpush.bf16.msra.mxu0 0
      %272 = vmatpush.bf16.msra.mxu0 0
      %273 = vmatpush.bf16.msra.mxu0 0
      %274 = vmatpush.bf16.msra.mxu0 0
      %275 = vmatpush.bf16.msra.mxu0 0
      %276 = vmatpush.bf16.msra.mxu0 0
      %277 = vmatpush.bf16.msra.mxu0 %v266
      %278 = vmatpush.bf16.msra.mxu0 %v265
      %279 = vmatmul.bf16.gmra.mxu0 %v269
      %v280 = vpop.f32.mrf.mxu0
      %v281 = vadd.f32 0.0, %v280
      %v282 = vpop.f32.mrf.mxu0
      %283 = vdwg.mxu0
      %v284 = vadd.f32 %v258, %v281
      %vm285 = vcmask 785408
      %286 = vst.msk [vmem:[#allocation2] sm:$0xff] %vm285, %v284
      // Predicated region
      $region37: #{table_encoder_simple.10} parent=31 // pred_check
        %p287 = pneg %p252
      $region38: #{table_encoder_simple.10} parent=31 // pred_check_branch
        %289 = sbr.rel (%p287) target = $region40
      $region39: #{table_encoder_simple.10} parent=31 // pred_region
        %v290 = vld [vmem:[#allocation2] sm:$0xff]
        %v291 = vld [vmem:[%s243] sm:$0x1]
        %v293 = vperm.slane %v291, 0
        %v295 = vadd.f32 %v290, %v293
        %296 = vst.msk [vmem:[%s250] sm:$0xff] %vm285, %v295
      $region40: #{table_encoder_simple.10} parent=31 // pred_fallthru
        _
      %p297 = scmp.lt.s32.totalorder %s19, 3
      %s298 = scalar_select %p297, %s19, 3
      %p299 = scmp.lt.s32.totalorder %s20, 0
      %s300 = scalar_select %p299, %s20, 0
      %s301 = sadd.s32 %s300, %s298
      %s302 = smul.addr %s301, 8
      %s303 = scalar_lea.vmem %s3, %s302
      // Predicated region
      $region41: #{table_encoder_simple.10} parent=31 // pred_check
        %p304 = pneg %p135
      $region42: #{table_encoder_simple.10} parent=31 // pred_check_branch
        %306 = sbr.rel (%p304) target = $region44
      $region43: #{table_encoder_simple.10} parent=31 // pred_region
        _
      $region44: #{table_encoder_simple.10} parent=31 // pred_fallthru
        _
    $region32: #{table_encoder_simple.10} parent=5 // pred_fallthru
      _
    %p307 = scmp.le.s32.totalorder 2, %s9
    // Predicated region
    $region45: #{table_encoder_simple.10} parent=5 // pred_check
      %p308 = pneg %p307
    $region46: #{table_encoder_simple.10} parent=5 // pred_check_branch
      %310 = sbr.rel (%p308) target = $region48
    $region47: #{table_encoder_simple.10} parent=5 // pred_region
      %s311 = ssub.s32 %s9, 2
      // Predicated region
      $region49: #{table_encoder_simple.10} parent=47 // pred_check
        %p312 = pneg %p141
      $region50: #{table_encoder_simple.10} parent=47 // pred_check_branch
        %314 = sbr.rel (%p312) target = $region52
      $region51: #{table_encoder_simple.10} parent=47 // pred_region
        %p315 = scmp.lt.s32.totalorder %s22, 3
        %s316 = scalar_select %p315, %s22, 3
        %p317 = scmp.lt.s32.totalorder %s23, 0
        %s318 = scalar_select %p317, %s23, 0
        %s319 = sadd.s32 %s318, %s316
        %s320 = smul.addr %s319, 8
        %s321 = scalar_lea.vmem %s3, %s320
      $region52: #{table_encoder_simple.10} parent=47 // pred_fallthru
        _
    $region48: #{table_encoder_simple.10} parent=5 // pred_fallthru
      _
  $region6: #{table_encoder_simple.10} parent=0 // loop_footer
    %s13 = sadd.s32 1, %s9
  $region7: #{table_encoder_simple.10} parent=0 // loop_footer_branch
    %8 = sbr.rel target = $region3
  $region8: #{table_encoder_simple.10} parent=0 // loop_exit
    _

// kernel: table_encoder_simple.13
$region0: #{table_encoder_simple.13}
  #allocation0 [shape = 'u32[]', space=smem, size = 0x4, offset = 0x4, fixed_abs, tag = 'smem constant byte address 0x4 - core index']
  #allocation1 [shape = 'u32[72,128]{1,0:T(1,128)}', space=vmem, size = 0x9000, scoped, tag = 'internal scratch']
  #allocation2 [shape = 'f32[8,64]{1,0:T(8,128)}', space=vmem, size = 0x1000, scoped, tag = 'scratch operand']
  %s0 = inlined_call_operand.vmem [shape: f32[32,32], index: 0, kind: input, shape index: {}]
  %s1 = inlined_call_operand.vmem [shape: f32[32,64], index: 1, kind: input, shape index: {}]
  %s2 = inlined_call_operand.vmem [shape: f32[1,64], index: 2, kind: input, shape index: {}]
  %s3 = inlined_call_operand.vmem [shape: f32[32,64], index: 3, kind: output, shape index: {}]
  %s4 = sld [smem:[#allocation0]]
  $region53: #{table_encoder_simple.13} parent=0
    _
  %s6 = ssub.s32 1, %s4
  %s7 = scalar_select 0, %s6, %s4
  loop: start=0, step=1, limit=6
  $region2: #{table_encoder_simple.13} parent=0 // loop_pre_header
    _
  $region3: #{table_encoder_simple.13} parent=0 // loop_header
    %s9 = sphi 0, %s13
    %p10 = scmp.ge.s32.totalorder %s9, 6
    %s16 = sphi 0, %s35
    %s17 = sphi 0, %s31
    %s18 = sphi 0, %s27
    %s19 = sphi 0, %s16
    %s20 = sphi 0, %s17
    %s21 = sphi 0, %s18
    %s22 = sphi 0, %s19
    %s23 = sphi 0, %s20
    %s24 = sphi 0, %s21
    %s40 = sphi 0, %s42
    %s43 = sphi 0, %s40
    %s44 = sphi 0, %s43
    %s60 = sphi 0, %s44
    %s68 = sphi 0, %s70
    %s71 = sphi 0, %s68
    %s72 = sphi 0, %s71
    %s88 = sphi 0, %s72
    %s94 = sphi 0, %s96
    %s97 = sphi 0, %s94
    %s98 = sphi 0, %s97
    %s114 = sphi 0, %s98
    %s122 = sphi 0, %s124
    %s125 = sphi 0, %s122
    %s126 = sphi 0, %s125
    %s142 = sphi 0, %s126
  $region4: #{table_encoder_simple.13} parent=0 // loop_header_branch
    %12 = sbr.rel (%p10) target = $region8
  $region5: #{table_encoder_simple.13} parent=0 // loop_body
    %s14 = ssub.s32 %s9, 1
    %s15 = ssub.s32 %s9, 2
    %s25 = sadd.s32 1, %s18
    %p26 = scmp.ge.s32.totalorder %s25, 1
    %s27 = scalar_select %p26, 0, %s25
    %s28 = sadd.s32 1, %s17
    %s29 = scalar_select %p26, %s28, %s17
    %p30 = scmp.ge.s32.totalorder %s29, 1
    %s31 = scalar_select %p30, 0, %s29
    %s32 = sadd.s32 1, %s16
    %s33 = scalar_select %p30, %s32, %s16
    %p34 = scmp.ge.s32.totalorder %s33, 4
    %s35 = scalar_select %p34, 0, %s33
    %s36 = ssub.s32 %s16, %s35
    %s37 = ssub.s32 %s18, %s27
    %s38 = sor.u32 %s36, %s37
    %p39 = scmp.eq.s32.totalorder %s38, 0
    %s41 = sadd.s32 %s40, 1
    %s42 = scalar_select %p39, %s40, %s41
    %p45 = pneg %p39
    %p46 = scmp.eq.s32.totalorder %s9, 3
    %p47 = por %p45, %p46
    %p48 = scmp.ne.s32.totalorder %s40, %s43
    %p49 = scmp.eq.s32.totalorder %s9, 0
    %p50 = por %p48, %p49
    %p51 = scmp.ne.s32.totalorder %s40, %s43
    %p52 = scmp.eq.s32.totalorder %s14, 3
    %p53 = por %p51, %p52
    %p54 = scmp.ne.s32.totalorder %s43, %s44
    %p55 = scmp.eq.s32.totalorder %s14, 0
    %p56 = por %p54, %p55
    %p57 = scmp.ne.s32.totalorder %s43, %s44
    %p58 = scmp.eq.s32.totalorder %s15, 3
    %p59 = por %p57, %p58
    %p61 = scmp.ne.s32.totalorder %s44, %s60
    %p62 = scmp.eq.s32.totalorder %s15, 0
    %p63 = por %p61, %p62
    %s64 = ssub.s32 %s18, %s27
    %s65 = ssub.s32 %s17, %s31
    %s66 = sor.u32 %s64, %s65
    %p67 = scmp.eq.s32.totalorder %s66, 0
    %s69 = sadd.s32 %s68, 1
    %s70 = scalar_select %p67, %s68, %s69
    %p73 = pneg %p67
    %p74 = scmp.eq.s32.totalorder %s9, 3
    %p75 = por %p73, %p74
    %p76 = scmp.ne.s32.totalorder %s68, %s71
    %p77 = scmp.eq.s32.totalorder %s9, 0
    %p78 = por %p76, %p77
    %p79 = scmp.ne.s32.totalorder %s68, %s71
    %p80 = scmp.eq.s32.totalorder %s14, 3
    %p81 = por %p79, %p80
    %p82 = scmp.ne.s32.totalorder %s71, %s72
    %p83 = scmp.eq.s32.totalorder %s14, 0
    %p84 = por %p82, %p83
    %p85 = scmp.ne.s32.totalorder %s71, %s72
    %p86 = scmp.eq.s32.totalorder %s15, 3
    %p87 = por %p85, %p86
    %p89 = scmp.ne.s32.totalorder %s72, %s88
    %p90 = scmp.eq.s32.totalorder %s15, 0
    %p91 = por %p89, %p90
    %s92 = ssub.s32 %s17, %s31
    %p93 = scmp.eq.s32.totalorder %s92, 0
    %s95 = sadd.s32 %s94, 1
    %s96 = scalar_select %p93, %s94, %s95
    %p99 = pneg %p93
    %p100 = scmp.eq.s32.totalorder %s9, 3
    %p101 = por %p99, %p100
    %p102 = scmp.ne.s32.totalorder %s94, %s97
    %p103 = scmp.eq.s32.totalorder %s9, 0
    %p104 = por %p102, %p103
    %p105 = scmp.ne.s32.totalorder %s94, %s97
    %p106 = scmp.eq.s32.totalorder %s14, 3
    %p107 = por %p105, %p106
    %p108 = scmp.ne.s32.totalorder %s97, %s98
    %p109 = scmp.eq.s32.totalorder %s14, 0
    %p110 = por %p108, %p109
    %p111 = scmp.ne.s32.totalorder %s97, %s98
    %p112 = scmp.eq.s32.totalorder %s15, 3
    %p113 = por %p111, %p112
    %p115 = scmp.ne.s32.totalorder %s98, %s114
    %p116 = scmp.eq.s32.totalorder %s15, 0
    %p117 = por %p115, %p116
    %s118 = ssub.s32 %s16, %s35
    %s119 = ssub.s32 %s17, %s31
    %s120 = sor.u32 %s118, %s119
    %p121 = scmp.eq.s32.totalorder %s120, 0
    %s123 = sadd.s32 %s122, 1
    %s124 = scalar_select %p121, %s122, %s123
    %p127 = pneg %p121
    %p128 = scmp.eq.s32.totalorder %s9, 3
    %p129 = por %p127, %p128
    %p130 = scmp.ne.s32.totalorder %s122, %s125
    %p131 = scmp.eq.s32.totalorder %s9, 0
    %p132 = por %p130, %p131
    %p133 = scmp.ne.s32.totalorder %s122, %s125
    %p134 = scmp.eq.s32.totalorder %s14, 3
    %p135 = por %p133, %p134
    %p136 = scmp.ne.s32.totalorder %s125, %s126
    %p137 = scmp.eq.s32.totalorder %s14, 0
    %p138 = por %p136, %p137
    %p139 = scmp.ne.s32.totalorder %s125, %s126
    %p140 = scmp.eq.s32.totalorder %s15, 3
    %p141 = por %p139, %p140
    %p143 = scmp.ne.s32.totalorder %s126, %s142
    %p144 = scmp.eq.s32.totalorder %s15, 0
    %p145 = por %p143, %p144
    %p146 = scmp.le.s32.totalorder 1, %s9
    %p147 = scmp.lt.s32.totalorder %s9, 5
    %p148 = pnand %p146, %p147
    %p149 = pneg %p148
    // Predicated region
    $region9: #{table_encoder_simple.13} parent=5 // pred_check
      _
    $region10: #{table_encoder_simple.13} parent=5 // pred_check_branch
      %151 = sbr.rel (%p148) target = $region12
    $region11: #{table_encoder_simple.13} parent=5 // pred_region
      %s152 = ssub.s32 %s9, 1
      // Predicated region
      $region13: #{table_encoder_simple.13} parent=11 // pred_check
        %p153 = pneg %p84
      $region14: #{table_encoder_simple.13} parent=11 // pred_check_branch
        %155 = sbr.rel (%p153) target = $region16
      $region15: #{table_encoder_simple.13} parent=11 // pred_region
        %s156 = smul.u32 4, %s21
        %p157 = scmp.lt.s32.totalorder %s156, 3
        %s158 = scalar_select %p157, %s156, 3
        %p159 = scmp.lt.s32.totalorder %s20, 0
        %s160 = scalar_select %p159, %s20, 0
        %s161 = sadd.s32 %s160, %s158
        %s162 = smul.addr %s161, 8
        %s163 = scalar_lea.vmem %s1, %s162
        %s164 = smul.u32 4, %s21
      $region16: #{table_encoder_simple.13} parent=11 // pred_fallthru
        _
      // Predicated region
      $region17: #{table_encoder_simple.13} parent=11 // pred_check
        %p165 = pneg %p110
      $region18: #{table_encoder_simple.13} parent=11 // pred_check_branch
        %167 = sbr.rel (%p165) target = $region20
      $region19: #{table_encoder_simple.13} parent=11 // pred_region
        %p168 = scmp.lt.s32.totalorder %s20, 0
        %s169 = scalar_select %p168, %s20, 0
        %s170 = scalar_lea.vmem %s2, %s169
      $region20: #{table_encoder_simple.13} parent=11 // pred_fallthru
        _
    $region12: #{table_encoder_simple.13} parent=5 // pred_fallthru
      _
    %p171 = scmp.lt.s32.totalorder %s9, 4
    // Predicated region
    $region21: #{table_encoder_simple.13} parent=5 // pred_check
      %p172 = pneg %p171
    $region22: #{table_encoder_simple.13} parent=5 // pred_check_branch
      %174 = sbr.rel (%p172) target = $region24
    $region23: #{table_encoder_simple.13} parent=5 // pred_region
      // Predicated region
      $region25: #{table_encoder_simple.13} parent=23 // pred_check
        %p175 = pneg %p50
      $region26: #{table_encoder_simple.13} parent=23 // pred_check_branch
        %177 = sbr.rel (%p175) target = $region28
      $region27: #{table_encoder_simple.13} parent=23 // pred_region
        %p178 = scmp.lt.s32.totalorder %s16, 3
        %s179 = scalar_select %p178, %s16, 3
        %p180 = scmp.lt.s32.totalorder %s18, 0
        %s181 = scalar_select %p180, %s18, 0
        %s182 = sadd.s32 %s181, %s179
        %s183 = smul.addr %s182, 8
        %s184 = scalar_lea.vmem %s0, %s183
      $region28: #{table_encoder_simple.13} parent=23 // pred_fallthru
        _
    $region24: #{table_encoder_simple.13} parent=5 // pred_fallthru
      _
    %p185 = scmp.le.s32.totalorder 1, %s9
    %p186 = scmp.lt.s32.totalorder %s9, 5
    %p187 = pnand %p185, %p186
    %p188 = pneg %p187
    // Predicated region
    $region29: #{table_encoder_simple.13} parent=5 // pred_check
      _
    $region30: #{table_encoder_simple.13} parent=5 // pred_check_branch
      %190 = sbr.rel (%p187) target = $region32
    $region31: #{table_encoder_simple.13} parent=5 // pred_region
      %s191 = ssub.s32 %s9, 1
      %p192 = scmp.lt.s32.totalorder %s19, 3
      %s193 = scalar_select %p192, %s19, 3
      %p194 = scmp.lt.s32.totalorder %s21, 0
      %s195 = scalar_select %p194, %s21, 0
      %s196 = sadd.s32 %s195, %s193
      %s197 = smul.addr %s196, 8
      %s198 = scalar_lea.vmem %s0, %s197
      %p199 = pneg %p56
      %p200 = pneg %p53
      %s201 = smul.u32 4, %s21
      %p202 = scmp.lt.s32.totalorder %s201, 3
      %s203 = scalar_select %p202, %s201, 3
      %p204 = scmp.lt.s32.totalorder %s20, 0
      %s205 = scalar_select %p204, %s20, 0
      %s206 = sadd.s32 %s205, %s203
      %s207 = smul.addr %s206, 8
      %s208 = scalar_lea.vmem %s1, %s207
      %p209 = pneg %p84
      %p210 = pneg %p81
      %p211 = scmp.lt.s32.totalorder %s20, 0
      %s212 = scalar_select %p211, %s20, 0
      %s213 = scalar_lea.vmem %s2, %s212
      %p214 = pneg %p110
      %p215 = pneg %p107
      %p216 = pneg %p138
      %p217 = pneg %p135
      %p218 = scmp.lt.s32.totalorder %s19, 3
      %s219 = scalar_select %p218, %s19, 3
      %p220 = scmp.lt.s32.totalorder %s20, 0
      %s221 = scalar_select %p220, %s20, 0
      %s222 = sadd.s32 %s221, %s219
      %s223 = smul.addr %s222, 8
      %s224 = scalar_lea.vmem %s3, %s223
      %p225 = scmp.lt.s32.totalorder %s19, 3
      %s226 = scalar_select %p225, %s19, 3
      %p227 = scmp.lt.s32.totalorder %s21, 0
      %s228 = scalar_select %p227, %s21, 0
      %s229 = sadd.s32 %s228, %s226
      %s230 = smul.addr %s229, 8
      %s231 = scalar_lea.vmem %s0, %s230
      %s232 = smul.u32 4, %s21
      %p233 = scmp.lt.s32.totalorder %s232, 3
      %s234 = scalar_select %p233, %s232, 3
      %p235 = scmp.lt.s32.totalorder %s20, 0
      %s236 = scalar_select %p235, %s20, 0
      %s237 = sadd.s32 %s236, %s234
      %s238 = smul.addr %s237, 8
      %s239 = scalar_lea.vmem %s1, %s238
      %s240 = smul.u32 4, %s21
      %p241 = scmp.lt.s32.totalorder %s20, 0
      %s242 = scalar_select %p241, %s20, 0
      %s243 = scalar_lea.vmem %s2, %s242
      %p244 = scmp.lt.s32.totalorder %s19, 3
      %s245 = scalar_select %p244, %s19, 3
      %p246 = scmp.lt.s32.totalorder %s20, 0
      %s247 = scalar_select %p246, %s20, 0
      %s248 = sadd.s32 %s247, %s245
      %s249 = smul.addr %s248, 8
      %s250 = scalar_lea.vmem %s3, %s249
      %p252 = scmp.eq.s32.totalorder %s21, 0
      // Predicated region
      $region33: #{table_encoder_simple.13} parent=31 // pred_check
        %p253 = pneg %p252
      $region34: #{table_encoder_simple.13} parent=31 // pred_check_branch
        %255 = sbr.rel (%p253) target = $region36
      $region35: #{table_encoder_simple.13} parent=31 // pred_region
        %vm256 = vcmask 523264
        %257 = vst.msk [vmem:[#allocation2] sm:$0xff] %vm256, 0.0
      $region36: #{table_encoder_simple.13} parent=31 // pred_fallthru
        _
      %v258 = vld [vmem:[#allocation2] sm:$0xff]
      %v259 = vld [vmem:[%s231] sm:$0xff]
      %v260 = vpack.c.bf16 %v259, %v259
      %v261 = vld [vmem:[%s239] sm:$0xff]
      %v262 = vld [vmem:[%s239 + $0x8] sm:$0xff]
      %v263 = vld [vmem:[%s239 + $0x10] sm:$0xff]
      %v264 = vld [vmem:[%s239 + $0x18] sm:$0xff]
      %v265 = vpack.c.bf16 %v262, %v261
      %v266 = vpack.c.bf16 %v264, %v263
      %vm267 = vcmask 261120
      %v269 = vsel %vm267, %v260, 0
      %271 = vmatpush.bf16.msra.mxu0 0
      %272 = vmatpush.bf16.msra.mxu0 0
      %273 = vmatpush.bf16.msra.mxu0 0
      %274 = vmatpush.bf16.msra.mxu0 0
      %275 = vmatpush.bf16.msra.mxu0 0
      %276 = vmatpush.bf16.msra.mxu0 0
      %277 = vmatpush.bf16.msra.mxu0 %v266
      %278 = vmatpush.bf16.msra.mxu0 %v265
      %279 = vmatmul.bf16.gmra.mxu0 %v269
      %v280 = vpop.f32.mrf.mxu0
      %v281 = vadd.f32 0.0, %v280
      %v282 = vpop.f32.mrf.mxu0
      %283 = vdwg.mxu0
      %v284 = vadd.f32 %v258, %v281
      %vm285 = vcmask 523264
      %286 = vst.msk [vmem:[#allocation2] sm:$0xff] %vm285, %v284
      // Predicated region
      $region37: #{table_encoder_simple.13} parent=31 // pred_check
        %p287 = pneg %p252
      $region38: #{table_encoder_simple.13} parent=31 // pred_check_branch
        %289 = sbr.rel (%p287) target = $region40
      $region39: #{table_encoder_simple.13} parent=31 // pred_region
        %v290 = vld [vmem:[#allocation2] sm:$0xff]
        %v291 = vld [vmem:[%s243] sm:$0x1]
        %v293 = vperm.slane %v291, 0
        %v295 = vadd.f32 %v290, %v293
        %v296 = vmul.f32 %v295, 0.5
        %v297 = vmul.f32 %v295, 0.70710677
        %vm298 = vcmp.ge.f32.partialorder %v297, 0.0
        %v299 = vsel %vm298, 1.0, -1.0
        %v300 = vand.u32 2147483647, %v297
        %v301 = vmul.f32 %v300, 0.3275911
        %v302 = vadd.f32 %v301, 1.0
        %v303 = vrcp.pop %v302
        %v304 = vmul.f32 %v302, %v303
        %v305 = vsub.f32 1.0, %v304
        %v306 = vmul.f32 %v303, %v305
        %v307 = vadd.f32 %v303, %v306
        %vm308 = vweird.f32 %v302
        %vm309 = vweird.f32 %v303
        %vm310 = vmor %vm308, %vm309
        %v311 = vsel %vm310, %v303, %v307
        %v312 = vand.u32 2147483647, %v302
        %vm313 = vcmp.eq.f32.partialorder %v312, 8.507059e+37
        %v314 = vand.u32 %v302, 2147483648
        %v315 = vor.u32 1.1754944e-38, %v314
        %v316 = vsel %vm313, %v315, %v311
        %v317 = vmul.f32 1.0, %v316
        %v318 = vmul.f32 %v317, 1.0614054
        %v319 = vsub.f32 %v318, 1.4531521
        %v320 = vmul.f32 %v319, %v317
        %v321 = vadd.f32 %v320, 1.4214138
        %v322 = vmul.f32 %v321, %v317
        %v323 = vsub.f32 %v322, 0.28449672
        %v324 = vmul.f32 %v323, %v317
        %v325 = vadd.f32 %v324, 0.2548296
        %v326 = vmul.f32 %v325, %v317
        %v327 = vsub.f32 0.0, %v300
        %v328 = vmul.f32 %v327, %v300
        %v329 = vmul.f32 %v328, 1.442695
        %v330 = vpow.pop %v329
        %v331 = vmul.f32 %v326, %v330
        %v332 = vsub.f32 1.0, %v331
        %v333 = vmul.f32 %v299, %v332
        %v334 = vadd.f32 %v333, 1.0
        %v335 = vmul.f32 %v296, %v334
        %336 = vst.msk [vmem:[%s250] sm:$0xff] %vm285, %v335
      $region40: #{table_encoder_simple.13} parent=31 // pred_fallthru
        _
      %p337 = scmp.lt.s32.totalorder %s19, 3
      %s338 = scalar_select %p337, %s19, 3
      %p339 = scmp.lt.s32.totalorder %s20, 0
      %s340 = scalar_select %p339, %s20, 0
      %s341 = sadd.s32 %s340, %s338
      %s342 = smul.addr %s341, 8
      %s343 = scalar_lea.vmem %s3, %s342
      // Predicated region
      $region41: #{table_encoder_simple.13} parent=31 // pred_check
        %p344 = pneg %p135
      $region42: #{table_encoder_simple.13} parent=31 // pred_check_branch
        %346 = sbr.rel (%p344) target = $region44
      $region43: #{table_encoder_simple.13} parent=31 // pred_region
        _
      $region44: #{table_encoder_simple.13} parent=31 // pred_fallthru
        _
    $region32: #{table_encoder_simple.13} parent=5 // pred_fallthru
      _
    %p347 = scmp.le.s32.totalorder 2, %s9
    // Predicated region
    $region45: #{table_encoder_simple.13} parent=5 // pred_check
      %p348 = pneg %p347
    $region46: #{table_encoder_simple.13} parent=5 // pred_check_branch
      %350 = sbr.rel (%p348) target = $region48
    $region47: #{table_encoder_simple.13} parent=5 // pred_region
      %s351 = ssub.s32 %s9, 2
      // Predicated region
      $region49: #{table_encoder_simple.13} parent=47 // pred_check
        %p352 = pneg %p141
      $region50: #{table_encoder_simple.13} parent=47 // pred_check_branch
        %354 = sbr.rel (%p352) target = $region52
      $region51: #{table_encoder_simple.13} parent=47 // pred_region
        %p355 = scmp.lt.s32.totalorder %s22, 3
        %s356 = scalar_select %p355, %s22, 3
        %p357 = scmp.lt.s32.totalorder %s23, 0
        %s358 = scalar_select %p357, %s23, 0
        %s359 = sadd.s32 %s358, %s356
        %s360 = smul.addr %s359, 8
        %s361 = scalar_lea.vmem %s3, %s360
      $region52: #{table_encoder_simple.13} parent=47 // pred_fallthru
        _
    $region48: #{table_encoder_simple.13} parent=5 // pred_fallthru
      _
  $region6: #{table_encoder_simple.13} parent=0 // loop_footer
    %s13 = sadd.s32 1, %s9
  $region7: #{table_encoder_simple.13} parent=0 // loop_footer_branch
    %8 = sbr.rel target = $region3
  $region8: #{table_encoder_simple.13} parent=0 // loop_exit
    _

// kernel: table_encoder_simple.12
$region0: #{table_encoder_simple.12}
  #allocation0 [shape = 'u32[]', space=smem, size = 0x4, offset = 0x4, fixed_abs, tag = 'smem constant byte address 0x4 - core index']
  #allocation1 [shape = 'u32[72,128]{1,0:T(1,128)}', space=vmem, size = 0x9000, scoped, tag = 'internal scratch']
  #allocation2 [shape = 'f32[8,32]{1,0:T(8,128)}', space=vmem, size = 0x1000, scoped, tag = 'scratch operand']
  %s0 = inlined_call_operand.vmem [shape: f32[32,32], index: 0, kind: input, shape index: {}]
  %s1 = inlined_call_operand.vmem [shape: f32[32,32], index: 1, kind: input, shape index: {}]
  %s2 = inlined_call_operand.vmem [shape: f32[1,32], index: 2, kind: input, shape index: {}]
  %s3 = inlined_call_operand.vmem [shape: f32[32,32], index: 3, kind: input, shape index: {}]
  %s4 = inlined_call_operand.vmem [shape: f32[1,32], index: 4, kind: input, shape index: {}]
  %s5 = inlined_call_operand.vmem [shape: f32[1,32], index: 5, kind: input, shape index: {}]
  %s6 = inlined_call_operand.vmem [shape: f32[32,32], index: 6, kind: output, shape index: {}]
  %s7 = sld [smem:[#allocation0]]
  $region65: #{table_encoder_simple.12} parent=0
    _
  %s9 = ssub.s32 1, %s7
  %s10 = scalar_select 0, %s9, %s7
  loop: start=0, step=1, limit=6
  $region2: #{table_encoder_simple.12} parent=0 // loop_pre_header
    _
  $region3: #{table_encoder_simple.12} parent=0 // loop_header
    %s12 = sphi 0, %s16
    %p13 = scmp.ge.s32.totalorder %s12, 6
    %s19 = sphi 0, %s38
    %s20 = sphi 0, %s34
    %s21 = sphi 0, %s30
    %s22 = sphi 0, %s19
    %s23 = sphi 0, %s20
    %s24 = sphi 0, %s21
    %s25 = sphi 0, %s22
    %s26 = sphi 0, %s23
    %s27 = sphi 0, %s24
    %s43 = sphi 0, %s45
    %s46 = sphi 0, %s43
    %s47 = sphi 0, %s46
    %s63 = sphi 0, %s47
    %s71 = sphi 0, %s73
    %s74 = sphi 0, %s71
    %s75 = sphi 0, %s74
    %s91 = sphi 0, %s75
    %s97 = sphi 0, %s99
    %s100 = sphi 0, %s97
    %s101 = sphi 0, %s100
    %s117 = sphi 0, %s101
    %s125 = sphi 0, %s127
    %s128 = sphi 0, %s125
    %s129 = sphi 0, %s128
    %s145 = sphi 0, %s129
    %s151 = sphi 0, %s153
    %s154 = sphi 0, %s151
    %s155 = sphi 0, %s154
    %s171 = sphi 0, %s155
    %s177 = sphi 0, %s179
    %s180 = sphi 0, %s177
    %s181 = sphi 0, %s180
    %s197 = sphi 0, %s181
    %s205 = sphi 0, %s207
    %s208 = sphi 0, %s205
    %s209 = sphi 0, %s208
    %s225 = sphi 0, %s209
  $region4: #{table_encoder_simple.12} parent=0 // loop_header_branch
    %15 = sbr.rel (%p13) target = $region8
  $region5: #{table_encoder_simple.12} parent=0 // loop_body
    %s17 = ssub.s32 %s12, 1
    %s18 = ssub.s32 %s12, 2
    %s28 = sadd.s32 1, %s21
    %p29 = scmp.ge.s32.totalorder %s28, 1
    %s30 = scalar_select %p29, 0, %s28
    %s31 = sadd.s32 1, %s20
    %s32 = scalar_select %p29, %s31, %s20
    %p33 = scmp.ge.s32.totalorder %s32, 1
    %s34 = scalar_select %p33, 0, %s32
    %s35 = sadd.s32 1, %s19
    %s36 = scalar_select %p33, %s35, %s19
    %p37 = scmp.ge.s32.totalorder %s36, 4
    %s38 = scalar_select %p37, 0, %s36
    %s39 = ssub.s32 %s19, %s38
    %s40 = ssub.s32 %s21, %s30
    %s41 = sor.u32 %s39, %s40
    %p42 = scmp.eq.s32.totalorder %s41, 0
    %s44 = sadd.s32 %s43, 1
    %s45 = scalar_select %p42, %s43, %s44
    %p48 = pneg %p42
    %p49 = scmp.eq.s32.totalorder %s12, 3
    %p50 = por %p48, %p49
    %p51 = scmp.ne.s32.totalorder %s43, %s46
    %p52 = scmp.eq.s32.totalorder %s12, 0
    %p53 = por %p51, %p52
    %p54 = scmp.ne.s32.totalorder %s43, %s46
    %p55 = scmp.eq.s32.totalorder %s17, 3
    %p56 = por %p54, %p55
    %p57 = scmp.ne.s32.totalorder %s46, %s47
    %p58 = scmp.eq.s32.totalorder %s17, 0
    %p59 = por %p57, %p58
    %p60 = scmp.ne.s32.totalorder %s46, %s47
    %p61 = scmp.eq.s32.totalorder %s18, 3
    %p62 = por %p60, %p61
    %p64 = scmp.ne.s32.totalorder %s47, %s63
    %p65 = scmp.eq.s32.totalorder %s18, 0
    %p66 = por %p64, %p65
    %s67 = ssub.s32 %s21, %s30
    %s68 = ssub.s32 %s20, %s34
    %s69 = sor.u32 %s67, %s68
    %p70 = scmp.eq.s32.totalorder %s69, 0
    %s72 = sadd.s32 %s71, 1
    %s73 = scalar_select %p70, %s71, %s72
    %p76 = pneg %p70
    %p77 = scmp.eq.s32.totalorder %s12, 3
    %p78 = por %p76, %p77
    %p79 = scmp.ne.s32.totalorder %s71, %s74
    %p80 = scmp.eq.s32.totalorder %s12, 0
    %p81 = por %p79, %p80
    %p82 = scmp.ne.s32.totalorder %s71, %s74
    %p83 = scmp.eq.s32.totalorder %s17, 3
    %p84 = por %p82, %p83
    %p85 = scmp.ne.s32.totalorder %s74, %s75
    %p86 = scmp.eq.s32.totalorder %s17, 0
    %p87 = por %p85, %p86
    %p88 = scmp.ne.s32.totalorder %s74, %s75
    %p89 = scmp.eq.s32.totalorder %s18, 3
    %p90 = por %p88, %p89
    %p92 = scmp.ne.s32.totalorder %s75, %s91
    %p93 = scmp.eq.s32.totalorder %s18, 0
    %p94 = por %p92, %p93
    %s95 = ssub.s32 %s20, %s34
    %p96 = scmp.eq.s32.totalorder %s95, 0
    %s98 = sadd.s32 %s97, 1
    %s99 = scalar_select %p96, %s97, %s98
    %p102 = pneg %p96
    %p103 = scmp.eq.s32.totalorder %s12, 3
    %p104 = por %p102, %p103
    %p105 = scmp.ne.s32.totalorder %s97, %s100
    %p106 = scmp.eq.s32.totalorder %s12, 0
    %p107 = por %p105, %p106
    %p108 = scmp.ne.s32.totalorder %s97, %s100
    %p109 = scmp.eq.s32.totalorder %s17, 3
    %p110 = por %p108, %p109
    %p111 = scmp.ne.s32.totalorder %s100, %s101
    %p112 = scmp.eq.s32.totalorder %s17, 0
    %p113 = por %p111, %p112
    %p114 = scmp.ne.s32.totalorder %s100, %s101
    %p115 = scmp.eq.s32.totalorder %s18, 3
    %p116 = por %p114, %p115
    %p118 = scmp.ne.s32.totalorder %s101, %s117
    %p119 = scmp.eq.s32.totalorder %s18, 0
    %p120 = por %p118, %p119
    %s121 = ssub.s32 %s19, %s38
    %s122 = ssub.s32 %s20, %s34
    %s123 = sor.u32 %s121, %s122
    %p124 = scmp.eq.s32.totalorder %s123, 0
    %s126 = sadd.s32 %s125, 1
    %s127 = scalar_select %p124, %s125, %s126
    %p130 = pneg %p124
    %p131 = scmp.eq.s32.totalorder %s12, 3
    %p132 = por %p130, %p131
    %p133 = scmp.ne.s32.totalorder %s125, %s128
    %p134 = scmp.eq.s32.totalorder %s12, 0
    %p135 = por %p133, %p134
    %p136 = scmp.ne.s32.totalorder %s125, %s128
    %p137 = scmp.eq.s32.totalorder %s17, 3
    %p138 = por %p136, %p137
    %p139 = scmp.ne.s32.totalorder %s128, %s129
    %p140 = scmp.eq.s32.totalorder %s17, 0
    %p141 = por %p139, %p140
    %p142 = scmp.ne.s32.totalorder %s128, %s129
    %p143 = scmp.eq.s32.totalorder %s18, 3
    %p144 = por %p142, %p143
    %p146 = scmp.ne.s32.totalorder %s129, %s145
    %p147 = scmp.eq.s32.totalorder %s18, 0
    %p148 = por %p146, %p147
    %s149 = ssub.s32 %s20, %s34
    %p150 = scmp.eq.s32.totalorder %s149, 0
    %s152 = sadd.s32 %s151, 1
    %s153 = scalar_select %p150, %s151, %s152
    %p156 = pneg %p150
    %p157 = scmp.eq.s32.totalorder %s12, 3
    %p158 = por %p156, %p157
    %p159 = scmp.ne.s32.totalorder %s151, %s154
    %p160 = scmp.eq.s32.totalorder %s12, 0
    %p161 = por %p159, %p160
    %p162 = scmp.ne.s32.totalorder %s151, %s154
    %p163 = scmp.eq.s32.totalorder %s17, 3
    %p164 = por %p162, %p163
    %p165 = scmp.ne.s32.totalorder %s154, %s155
    %p166 = scmp.eq.s32.totalorder %s17, 0
    %p167 = por %p165, %p166
    %p168 = scmp.ne.s32.totalorder %s154, %s155
    %p169 = scmp.eq.s32.totalorder %s18, 3
    %p170 = por %p168, %p169
    %p172 = scmp.ne.s32.totalorder %s155, %s171
    %p173 = scmp.eq.s32.totalorder %s18, 0
    %p174 = por %p172, %p173
    %s175 = ssub.s32 %s20, %s34
    %p176 = scmp.eq.s32.totalorder %s175, 0
    %s178 = sadd.s32 %s177, 1
    %s179 = scalar_select %p176, %s177, %s178
    %p182 = pneg %p176
    %p183 = scmp.eq.s32.totalorder %s12, 3
    %p184 = por %p182, %p183
    %p185 = scmp.ne.s32.totalorder %s177, %s180
    %p186 = scmp.eq.s32.totalorder %s12, 0
    %p187 = por %p185, %p186
    %p188 = scmp.ne.s32.totalorder %s177, %s180
    %p189 = scmp.eq.s32.totalorder %s17, 3
    %p190 = por %p188, %p189
    %p191 = scmp.ne.s32.totalorder %s180, %s181
    %p192 = scmp.eq.s32.totalorder %s17, 0
    %p193 = por %p191, %p192
    %p194 = scmp.ne.s32.totalorder %s180, %s181
    %p195 = scmp.eq.s32.totalorder %s18, 3
    %p196 = por %p194, %p195
    %p198 = scmp.ne.s32.totalorder %s181, %s197
    %p199 = scmp.eq.s32.totalorder %s18, 0
    %p200 = por %p198, %p199
    %s201 = ssub.s32 %s19, %s38
    %s202 = ssub.s32 %s20, %s34
    %s203 = sor.u32 %s201, %s202
    %p204 = scmp.eq.s32.totalorder %s203, 0
    %s206 = sadd.s32 %s205, 1
    %s207 = scalar_select %p204, %s205, %s206
    %p210 = pneg %p204
    %p211 = scmp.eq.s32.totalorder %s12, 3
    %p212 = por %p210, %p211
    %p213 = scmp.ne.s32.totalorder %s205, %s208
    %p214 = scmp.eq.s32.totalorder %s12, 0
    %p215 = por %p213, %p214
    %p216 = scmp.ne.s32.totalorder %s205, %s208
    %p217 = scmp.eq.s32.totalorder %s17, 3
    %p218 = por %p216, %p217
    %p219 = scmp.ne.s32.totalorder %s208, %s209
    %p220 = scmp.eq.s32.totalorder %s17, 0
    %p221 = por %p219, %p220
    %p222 = scmp.ne.s32.totalorder %s208, %s209
    %p223 = scmp.eq.s32.totalorder %s18, 3
    %p224 = por %p222, %p223
    %p226 = scmp.ne.s32.totalorder %s209, %s225
    %p227 = scmp.eq.s32.totalorder %s18, 0
    %p228 = por %p226, %p227
    %p229 = scmp.le.s32.totalorder 1, %s12
    %p230 = scmp.lt.s32.totalorder %s12, 5
    %p231 = pnand %p229, %p230
    %p232 = pneg %p231
    // Predicated region
    $region9: #{table_encoder_simple.12} parent=5 // pred_check
      _
    $region10: #{table_encoder_simple.12} parent=5 // pred_check_branch
      %234 = sbr.rel (%p231) target = $region12
    $region11: #{table_encoder_simple.12} parent=5 // pred_region
      %s235 = ssub.s32 %s12, 1
      // Predicated region
      $region13: #{table_encoder_simple.12} parent=11 // pred_check
        %p236 = pneg %p87
      $region14: #{table_encoder_simple.12} parent=11 // pred_check_branch
        %238 = sbr.rel (%p236) target = $region16
      $region15: #{table_encoder_simple.12} parent=11 // pred_region
        %s239 = smul.u32 4, %s24
        %p240 = scmp.lt.s32.totalorder %s239, 3
        %s241 = scalar_select %p240, %s239, 3
        %p242 = scmp.lt.s32.totalorder %s23, 0
        %s243 = scalar_select %p242, %s23, 0
        %s244 = sadd.s32 %s243, %s241
        %s245 = smul.addr %s244, 8
        %s246 = scalar_lea.vmem %s1, %s245
        %s247 = smul.u32 4, %s24
      $region16: #{table_encoder_simple.12} parent=11 // pred_fallthru
        _
      // Predicated region
      $region17: #{table_encoder_simple.12} parent=11 // pred_check
        %p248 = pneg %p113
      $region18: #{table_encoder_simple.12} parent=11 // pred_check_branch
        %250 = sbr.rel (%p248) target = $region20
      $region19: #{table_encoder_simple.12} parent=11 // pred_region
        %p251 = scmp.lt.s32.totalorder %s23, 0
        %s252 = scalar_select %p251, %s23, 0
        %s253 = scalar_lea.vmem %s2, %s252
      $region20: #{table_encoder_simple.12} parent=11 // pred_fallthru
        _
      // Predicated region
      $region21: #{table_encoder_simple.12} parent=11 // pred_check
        %p254 = pneg %p167
      $region22: #{table_encoder_simple.12} parent=11 // pred_check_branch
        %256 = sbr.rel (%p254) target = $region24
      $region23: #{table_encoder_simple.12} parent=11 // pred_region
        %p257 = scmp.lt.s32.totalorder %s23, 0
        %s258 = scalar_select %p257, %s23, 0
        %s259 = scalar_lea.vmem %s4, %s258
      $region24: #{table_encoder_simple.12} parent=11 // pred_fallthru
        _
      // Predicated region
      $region25: #{table_encoder_simple.12} parent=11 // pred_check
        %p260 = pneg %p193
      $region26: #{table_encoder_simple.12} parent=11 // pred_check_branch
        %262 = sbr.rel (%p260) target = $region28
      $region27: #{table_encoder_simple.12} parent=11 // pred_region
        %p263 = scmp.lt.s32.totalorder %s23, 0
        %s264 = scalar_select %p263, %s23, 0
        %s265 = scalar_lea.vmem %s5, %s264
      $region28: #{table_encoder_simple.12} parent=11 // pred_fallthru
        _
    $region12: #{table_encoder_simple.12} parent=5 // pred_fallthru
      _
    %p266 = scmp.lt.s32.totalorder %s12, 4
    // Predicated region
    $region29: #{table_encoder_simple.12} parent=5 // pred_check
      %p267 = pneg %p266
    $region30: #{table_encoder_simple.12} parent=5 // pred_check_branch
      %269 = sbr.rel (%p267) target = $region32
    $region31: #{table_encoder_simple.12} parent=5 // pred_region
      // Predicated region
      $region33: #{table_encoder_simple.12} parent=31 // pred_check
        %p270 = pneg %p53
      $region34: #{table_encoder_simple.12} parent=31 // pred_check_branch
        %272 = sbr.rel (%p270) target = $region36
      $region35: #{table_encoder_simple.12} parent=31 // pred_region
        %p273 = scmp.lt.s32.totalorder %s19, 3
        %s274 = scalar_select %p273, %s19, 3
        %p275 = scmp.lt.s32.totalorder %s21, 0
        %s276 = scalar_select %p275, %s21, 0
        %s277 = sadd.s32 %s276, %s274
        %s278 = smul.addr %s277, 8
        %s279 = scalar_lea.vmem %s0, %s278
      $region36: #{table_encoder_simple.12} parent=31 // pred_fallthru
        _
      // Predicated region
      $region37: #{table_encoder_simple.12} parent=31 // pred_check
        %p280 = pneg %p135
      $region38: #{table_encoder_simple.12} parent=31 // pred_check_branch
        %282 = sbr.rel (%p280) target = $region40
      $region39: #{table_encoder_simple.12} parent=31 // pred_region
        %p283 = scmp.lt.s32.totalorder %s19, 3
        %s284 = scalar_select %p283, %s19, 3
        %p285 = scmp.lt.s32.totalorder %s20, 0
        %s286 = scalar_select %p285, %s20, 0
        %s287 = sadd.s32 %s286, %s284
        %s288 = smul.addr %s287, 8
        %s289 = scalar_lea.vmem %s3, %s288
      $region40: #{table_encoder_simple.12} parent=31 // pred_fallthru
        _
    $region32: #{table_encoder_simple.12} parent=5 // pred_fallthru
      _
    %p290 = scmp.le.s32.totalorder 1, %s12
    %p291 = scmp.lt.s32.totalorder %s12, 5
    %p292 = pnand %p290, %p291
    %p293 = pneg %p292
    // Predicated region
    $region41: #{table_encoder_simple.12} parent=5 // pred_check
      _
    $region42: #{table_encoder_simple.12} parent=5 // pred_check_branch
      %295 = sbr.rel (%p292) target = $region44
    $region43: #{table_encoder_simple.12} parent=5 // pred_region
      %s296 = ssub.s32 %s12, 1
      %p297 = scmp.lt.s32.totalorder %s22, 3
      %s298 = scalar_select %p297, %s22, 3
      %p299 = scmp.lt.s32.totalorder %s24, 0
      %s300 = scalar_select %p299, %s24, 0
      %s301 = sadd.s32 %s300, %s298
      %s302 = smul.addr %s301, 8
      %s303 = scalar_lea.vmem %s0, %s302
      %p304 = pneg %p59
      %p305 = pneg %p56
      %s306 = smul.u32 4, %s24
      %p307 = scmp.lt.s32.totalorder %s306, 3
      %s308 = scalar_select %p307, %s306, 3
      %p309 = scmp.lt.s32.totalorder %s23, 0
      %s310 = scalar_select %p309, %s23, 0
      %s311 = sadd.s32 %s310, %s308
      %s312 = smul.addr %s311, 8
      %s313 = scalar_lea.vmem %s1, %s312
      %p314 = pneg %p87
      %p315 = pneg %p84
      %p316 = scmp.lt.s32.totalorder %s23, 0
      %s317 = scalar_select %p316, %s23, 0
      %s318 = scalar_lea.vmem %s2, %s317
      %p319 = pneg %p113
      %p320 = pneg %p110
      %p321 = scmp.lt.s32.totalorder %s22, 3
      %s322 = scalar_select %p321, %s22, 3
      %p323 = scmp.lt.s32.totalorder %s23, 0
      %s324 = scalar_select %p323, %s23, 0
      %s325 = sadd.s32 %s324, %s322
      %s326 = smul.addr %s325, 8
      %s327 = scalar_lea.vmem %s3, %s326
      %p328 = pneg %p141
      %p329 = pneg %p138
      %p330 = scmp.lt.s32.totalorder %s23, 0
      %s331 = scalar_select %p330, %s23, 0
      %s332 = scalar_lea.vmem %s4, %s331
      %p333 = pneg %p167
      %p334 = pneg %p164
      %p335 = scmp.lt.s32.totalorder %s23, 0
      %s336 = scalar_select %p335, %s23, 0
      %s337 = scalar_lea.vmem %s5, %s336
      %p338 = pneg %p193
      %p339 = pneg %p190
      %p340 = pneg %p221
      %p341 = pneg %p218
      %p342 = scmp.lt.s32.totalorder %s22, 3
      %s343 = scalar_select %p342, %s22, 3
      %p344 = scmp.lt.s32.totalorder %s23, 0
      %s345 = scalar_select %p344, %s23, 0
      %s346 = sadd.s32 %s345, %s343
      %s347 = smul.addr %s346, 8
      %s348 = scalar_lea.vmem %s6, %s347
      %p349 = scmp.lt.s32.totalorder %s22, 3
      %s350 = scalar_select %p349, %s22, 3
      %p351 = scmp.lt.s32.totalorder %s24, 0
      %s352 = scalar_select %p351, %s24, 0
      %s353 = sadd.s32 %s352, %s350
      %s354 = smul.addr %s353, 8
      %s355 = scalar_lea.vmem %s0, %s354
      %s356 = smul.u32 4, %s24
      %p357 = scmp.lt.s32.totalorder %s356, 3
      %s358 = scalar_select %p357, %s356, 3
      %p359 = scmp.lt.s32.totalorder %s23, 0
      %s360 = scalar_select %p359, %s23, 0
      %s361 = sadd.s32 %s360, %s358
      %s362 = smul.addr %s361, 8
      %s363 = scalar_lea.vmem %s1, %s362
      %s364 = smul.u32 4, %s24
      %p365 = scmp.lt.s32.totalorder %s23, 0
      %s366 = scalar_select %p365, %s23, 0
      %s367 = scalar_lea.vmem %s2, %s366
      %p368 = scmp.lt.s32.totalorder %s22, 3
      %s369 = scalar_select %p368, %s22, 3
      %p370 = scmp.lt.s32.totalorder %s23, 0
      %s371 = scalar_select %p370, %s23, 0
      %s372 = sadd.s32 %s371, %s369
      %s373 = smul.addr %s372, 8
      %s374 = scalar_lea.vmem %s3, %s373
      %p375 = scmp.lt.s32.totalorder %s23, 0
      %s376 = scalar_select %p375, %s23, 0
      %s377 = scalar_lea.vmem %s4, %s376
      %p378 = scmp.lt.s32.totalorder %s23, 0
      %s379 = scalar_select %p378, %s23, 0
      %s380 = scalar_lea.vmem %s5, %s379
      %p381 = scmp.lt.s32.totalorder %s22, 3
      %s382 = scalar_select %p381, %s22, 3
      %p383 = scmp.lt.s32.totalorder %s23, 0
      %s384 = scalar_select %p383, %s23, 0
      %s385 = sadd.s32 %s384, %s382
      %s386 = smul.addr %s385, 8
      %s387 = scalar_lea.vmem %s6, %s386
      %p389 = scmp.eq.s32.totalorder %s24, 0
      // Predicated region
      $region45: #{table_encoder_simple.12} parent=43 // pred_check
        %p390 = pneg %p389
      $region46: #{table_encoder_simple.12} parent=43 // pred_check_branch
        %392 = sbr.rel (%p390) target = $region48
      $region47: #{table_encoder_simple.12} parent=43 // pred_region
        %vm393 = vcmask 261120
        %394 = vst.msk [vmem:[#allocation2] sm:$0xff] %vm393, 0.0
      $region48: #{table_encoder_simple.12} parent=43 // pred_fallthru
        _
      %v395 = vld [vmem:[#allocation2] sm:$0xff]
      %v396 = vld [vmem:[%s355] sm:$0xff]
      %v397 = vpack.c.bf16 %v396, %v396
      %v398 = vld [vmem:[%s363] sm:$0xff]
      %v399 = vld [vmem:[%s363 + $0x8] sm:$0xff]
      %v400 = vld [vmem:[%s363 + $0x10] sm:$0xff]
      %v401 = vld [vmem:[%s363 + $0x18] sm:$0xff]
      %v402 = vpack.c.bf16 %v399, %v398
      %v403 = vpack.c.bf16 %v401, %v400
      %vm404 = vcmask 261120
      %v406 = vsel %vm404, %v397, 0
      %408 = vmatpush.bf16.msra.mxu0 0
      %409 = vmatpush.bf16.msra.mxu0 0
      %410 = vmatpush.bf16.msra.mxu0 0
      %411 = vmatpush.bf16.msra.mxu0 0
      %412 = vmatpush.bf16.msra.mxu0 0
      %413 = vmatpush.bf16.msra.mxu0 0
      %414 = vmatpush.bf16.msra.mxu0 %v403
      %415 = vmatpush.bf16.msra.mxu0 %v402
      %416 = vmatmul.bf16.gmra.mxu0 %v406
      %v417 = vpop.f32.mrf.mxu0
      %v418 = vadd.f32 0.0, %v417
      %v419 = vpop.f32.mrf.mxu0
      %420 = vdwg.mxu0
      %v421 = vadd.f32 %v395, %v418
      %422 = vst.msk [vmem:[#allocation2] sm:$0xff] %vm404, %v421
      // Predicated region
      $region49: #{table_encoder_simple.12} parent=43 // pred_check
        %p423 = pneg %p389
      $region50: #{table_encoder_simple.12} parent=43 // pred_check_branch
        %425 = sbr.rel (%p423) target = $region52
      $region51: #{table_encoder_simple.12} parent=43 // pred_region
        %v426 = vld [vmem:[#allocation2] sm:$0xff]
        %v427 = vld [vmem:[%s367] sm:$0x1]
        %v429 = vperm.slane %v427, 0
        %v431 = vadd.f32 %v426, %v429
        %v432 = vld [vmem:[%s374] sm:$0xff]
        %v433 = vadd.f32 %v431, %v432
        %v434 = vsel %vm404, %v433, 0.0
        %435 = vadd.xlane.f32.xlu0 %v434
        %v436 = vpop.xlane.xlu0 %435
        %v437 = vrcp.pop 32.0
        %v438 = vmul.f32 32.0, %v437
        %v439 = vsub.f32 1.0, %v438
        %v440 = vmul.f32 %v437, %v439
        %v441 = vadd.f32 %v437, %v440
        %vm442 = vweird.f32 %v437
        %v443 = vsel %vm442, %v437, %v441
        %v444 = vmul.f32 %v436, %v443
        %v445 = vsub.f32 %v433, %v444
        %v446 = vmul.f32 %v445, %v445
        %v447 = vsel %vm404, %v446, 0.0
        %448 = vadd.xlane.f32.xlu0 %v447
        %v449 = vpop.xlane.xlu0 %448
        %v450 = vmul.f32 %v449, %v443
        %v451 = vadd.f32 %v450, 1e-12
        %v452 = vrsqrt.pop %v451
        %v453 = vmul.f32 %v452, %v451
        %v454 = vmul.f32 %v453, %v452
        %v455 = vmul.f32 0.5, %v454
        %v456 = vsub.f32 1.5, %v455
        %v457 = vmul.f32 %v452, %v456
        %vm458 = vweird.f32 %v451
        %vm459 = vweird.f32 %v452
        %vm460 = vmor %vm458, %vm459
        %v461 = vsel %vm460, %v452, %v457
        %v462 = vmul.f32 %v445, %v461
        %v463 = vld [vmem:[%s377] sm:$0x1]
        %v465 = vperm.slane %v463, 0
        %v467 = vmul.f32 %v462, %v465
        %v468 = vld [vmem:[%s380] sm:$0x1]
        %v470 = vperm.slane %v468, 0
        %v472 = vadd.f32 %v467, %v470
        %473 = vst.msk [vmem:[%s387] sm:$0xff] %vm404, %v472
      $region52: #{table_encoder_simple.12} parent=43 // pred_fallthru
        _
      %p474 = scmp.lt.s32.totalorder %s22, 3
      %s475 = scalar_select %p474, %s22, 3
      %p476 = scmp.lt.s32.totalorder %s23, 0
      %s477 = scalar_select %p476, %s23, 0
      %s478 = sadd.s32 %s477, %s475
      %s479 = smul.addr %s478, 8
      %s480 = scalar_lea.vmem %s6, %s479
      // Predicated region
      $region53: #{table_encoder_simple.12} parent=43 // pred_check
        %p481 = pneg %p218
      $region54: #{table_encoder_simple.12} parent=43 // pred_check_branch
        %483 = sbr.rel (%p481) target = $region56
      $region55: #{table_encoder_simple.12} parent=43 // pred_region
        _
      $region56: #{table_encoder_simple.12} parent=43 // pred_fallthru
        _
    $region44: #{table_encoder_simple.12} parent=5 // pred_fallthru
      _
    %p484 = scmp.le.s32.totalorder 2, %s12
    // Predicated region
    $region57: #{table_encoder_simple.12} parent=5 // pred_check
      %p485 = pneg %p484
    $region58: #{table_encoder_simple.12} parent=5 // pred_check_branch
      %487 = sbr.rel (%p485) target = $region60
    $region59: #{table_encoder_simple.12} parent=5 // pred_region
      %s488 = ssub.s32 %s12, 2
      // Predicated region
      $region61: #{table_encoder_simple.12} parent=59 // pred_check
        %p489 = pneg %p224
      $region62: #{table_encoder_simple.12} parent=59 // pred_check_branch
        %491 = sbr.rel (%p489) target = $region64
      $region63: #{table_encoder_simple.12} parent=59 // pred_region
        %p492 = scmp.lt.s32.totalorder %s25, 3
        %s493 = scalar_select %p492, %s25, 3
        %p494 = scmp.lt.s32.totalorder %s26, 0
        %s495 = scalar_select %p494, %s26, 0
        %s496 = sadd.s32 %s495, %s493
        %s497 = smul.addr %s496, 8
        %s498 = scalar_lea.vmem %s6, %s497
      $region64: #{table_encoder_simple.12} parent=59 // pred_fallthru
        _
    $region60: #{table_encoder_simple.12} parent=5 // pred_fallthru
      _
  $region6: #{table_encoder_simple.12} parent=0 // loop_footer
    %s16 = sadd.s32 1, %s12
  $region7: #{table_encoder_simple.12} parent=0 // loop_footer_branch
    %11 = sbr.rel target = $region3
  $region8: #{table_encoder_simple.12} parent=0 // loop_exit
    _

// kernel: table_encoder_simple.11
$region0: #{table_encoder_simple.11}
  #allocation0 [shape = 'u32[]', space=smem, size = 0x4, offset = 0x4, fixed_abs, tag = 'smem constant byte address 0x4 - core index']
  #allocation1 [shape = 'u32[72,128]{1,0:T(1,128)}', space=vmem, size = 0x9000, scoped, tag = 'internal scratch']
  %s0 = inlined_call_operand.vmem [shape: f32[2,16,32], index: 0, kind: input, shape index: {}]
  %s1 = inlined_call_operand.vmem [shape: f32[2,16,32], index: 1, kind: input, shape index: {}]
  %s2 = inlined_call_operand.vmem [shape: f32[2,16,32], index: 2, kind: input, shape index: {}]
  %s3 = inlined_call_operand.vmem [shape: f32[2,16,16], index: 3, kind: input, shape index: {}]
  %s4 = inlined_call_operand.vmem [shape: f32[2,16,32], index: 4, kind: output, shape index: {}]
  %s5 = sld [smem:[#allocation0]]
  $region49: #{table_encoder_simple.11} parent=0
    _
  %s7 = ssub.s32 1, %s5
  %s8 = scalar_select 0, %s7, %s5
  loop: start=0, step=1, limit=4
  $region2: #{table_encoder_simple.11} parent=0 // loop_pre_header
    _
  $region3: #{table_encoder_simple.11} parent=0 // loop_header
    %s10 = sphi 0, %s14
    %p11 = scmp.ge.s32.totalorder %s10, 4
    %s20 = sphi 0, %s22
    %s23 = sphi 0, %s20
    %s24 = sphi 0, %s23
    %s40 = sphi 0, %s24
    %s46 = sphi 0, %s48
    %s49 = sphi 0, %s46
    %s50 = sphi 0, %s49
    %s66 = sphi 0, %s50
    %s72 = sphi 0, %s74
    %s75 = sphi 0, %s72
    %s76 = sphi 0, %s75
    %s92 = sphi 0, %s76
    %s98 = sphi 0, %s100
    %s101 = sphi 0, %s98
    %s102 = sphi 0, %s101
    %s118 = sphi 0, %s102
    %s124 = sphi 0, %s126
    %s127 = sphi 0, %s124
    %s128 = sphi 0, %s127
    %s144 = sphi 0, %s128
  $region4: #{table_encoder_simple.11} parent=0 // loop_header_branch
    %13 = sbr.rel (%p11) target = $region8
  $region5: #{table_encoder_simple.11} parent=0 // loop_body
    %s15 = ssub.s32 %s10, 1
    %s16 = ssub.s32 %s10, 2
    %s17 = sadd.s32 %s10, 1
    %s18 = ssub.s32 %s10, %s17
    %p19 = scmp.eq.s32.totalorder %s18, 0
    %s21 = sadd.s32 %s20, 1
    %s22 = scalar_select %p19, %s20, %s21
    %p25 = pneg %p19
    %p26 = scmp.eq.s32.totalorder %s10, 1
    %p27 = por %p25, %p26
    %p28 = scmp.ne.s32.totalorder %s20, %s23
    %p29 = scmp.eq.s32.totalorder %s10, 0
    %p30 = por %p28, %p29
    %p31 = scmp.ne.s32.totalorder %s20, %s23
    %p32 = scmp.eq.s32.totalorder %s15, 1
    %p33 = por %p31, %p32
    %p34 = scmp.ne.s32.totalorder %s23, %s24
    %p35 = scmp.eq.s32.totalorder %s15, 0
    %p36 = por %p34, %p35
    %p37 = scmp.ne.s32.totalorder %s23, %s24
    %p38 = scmp.eq.s32.totalorder %s16, 1
    %p39 = por %p37, %p38
    %p41 = scmp.ne.s32.totalorder %s24, %s40
    %p42 = scmp.eq.s32.totalorder %s16, 0
    %p43 = por %p41, %p42
    %s44 = ssub.s32 %s10, %s17
    %p45 = scmp.eq.s32.totalorder %s44, 0
    %s47 = sadd.s32 %s46, 1
    %s48 = scalar_select %p45, %s46, %s47
    %p51 = pneg %p45
    %p52 = scmp.eq.s32.totalorder %s10, 1
    %p53 = por %p51, %p52
    %p54 = scmp.ne.s32.totalorder %s46, %s49
    %p55 = scmp.eq.s32.totalorder %s10, 0
    %p56 = por %p54, %p55
    %p57 = scmp.ne.s32.totalorder %s46, %s49
    %p58 = scmp.eq.s32.totalorder %s15, 1
    %p59 = por %p57, %p58
    %p60 = scmp.ne.s32.totalorder %s49, %s50
    %p61 = scmp.eq.s32.totalorder %s15, 0
    %p62 = por %p60, %p61
    %p63 = scmp.ne.s32.totalorder %s49, %s50
    %p64 = scmp.eq.s32.totalorder %s16, 1
    %p65 = por %p63, %p64
    %p67 = scmp.ne.s32.totalorder %s50, %s66
    %p68 = scmp.eq.s32.totalorder %s16, 0
    %p69 = por %p67, %p68
    %s70 = ssub.s32 %s10, %s17
    %p71 = scmp.eq.s32.totalorder %s70, 0
    %s73 = sadd.s32 %s72, 1
    %s74 = scalar_select %p71, %s72, %s73
    %p77 = pneg %p71
    %p78 = scmp.eq.s32.totalorder %s10, 1
    %p79 = por %p77, %p78
    %p80 = scmp.ne.s32.totalorder %s72, %s75
    %p81 = scmp.eq.s32.totalorder %s10, 0
    %p82 = por %p80, %p81
    %p83 = scmp.ne.s32.totalorder %s72, %s75
    %p84 = scmp.eq.s32.totalorder %s15, 1
    %p85 = por %p83, %p84
    %p86 = scmp.ne.s32.totalorder %s75, %s76
    %p87 = scmp.eq.s32.totalorder %s15, 0
    %p88 = por %p86, %p87
    %p89 = scmp.ne.s32.totalorder %s75, %s76
    %p90 = scmp.eq.s32.totalorder %s16, 1
    %p91 = por %p89, %p90
    %p93 = scmp.ne.s32.totalorder %s76, %s92
    %p94 = scmp.eq.s32.totalorder %s16, 0
    %p95 = por %p93, %p94
    %s96 = ssub.s32 %s10, %s17
    %p97 = scmp.eq.s32.totalorder %s96, 0
    %s99 = sadd.s32 %s98, 1
    %s100 = scalar_select %p97, %s98, %s99
    %p103 = pneg %p97
    %p104 = scmp.eq.s32.totalorder %s10, 1
    %p105 = por %p103, %p104
    %p106 = scmp.ne.s32.totalorder %s98, %s101
    %p107 = scmp.eq.s32.totalorder %s10, 0
    %p108 = por %p106, %p107
    %p109 = scmp.ne.s32.totalorder %s98, %s101
    %p110 = scmp.eq.s32.totalorder %s15, 1
    %p111 = por %p109, %p110
    %p112 = scmp.ne.s32.totalorder %s101, %s102
    %p113 = scmp.eq.s32.totalorder %s15, 0
    %p114 = por %p112, %p113
    %p115 = scmp.ne.s32.totalorder %s101, %s102
    %p116 = scmp.eq.s32.totalorder %s16, 1
    %p117 = por %p115, %p116
    %p119 = scmp.ne.s32.totalorder %s102, %s118
    %p120 = scmp.eq.s32.totalorder %s16, 0
    %p121 = por %p119, %p120
    %s122 = ssub.s32 %s10, %s17
    %p123 = scmp.eq.s32.totalorder %s122, 0
    %s125 = sadd.s32 %s124, 1
    %s126 = scalar_select %p123, %s124, %s125
    %p129 = pneg %p123
    %p130 = scmp.eq.s32.totalorder %s10, 1
    %p131 = por %p129, %p130
    %p132 = scmp.ne.s32.totalorder %s124, %s127
    %p133 = scmp.eq.s32.totalorder %s10, 0
    %p134 = por %p132, %p133
    %p135 = scmp.ne.s32.totalorder %s124, %s127
    %p136 = scmp.eq.s32.totalorder %s15, 1
    %p137 = por %p135, %p136
    %p138 = scmp.ne.s32.totalorder %s127, %s128
    %p139 = scmp.eq.s32.totalorder %s15, 0
    %p140 = por %p138, %p139
    %p141 = scmp.ne.s32.totalorder %s127, %s128
    %p142 = scmp.eq.s32.totalorder %s16, 1
    %p143 = por %p141, %p142
    %p145 = scmp.ne.s32.totalorder %s128, %s144
    %p146 = scmp.eq.s32.totalorder %s16, 0
    %p147 = por %p145, %p146
    %p148 = scmp.le.s32.totalorder 1, %s10
    %p149 = scmp.lt.s32.totalorder %s10, 3
    %p150 = pnand %p148, %p149
    %p151 = pneg %p150
    // Predicated region
    $region9: #{table_encoder_simple.11} parent=5 // pred_check
      _
    $region10: #{table_encoder_simple.11} parent=5 // pred_check_branch
      %153 = sbr.rel (%p150) target = $region12
    $region11: #{table_encoder_simple.11} parent=5 // pred_region
      %s154 = ssub.s32 %s10, 1
    $region12: #{table_encoder_simple.11} parent=5 // pred_fallthru
      _
    %p155 = scmp.lt.s32.totalorder %s10, 2
    // Predicated region
    $region13: #{table_encoder_simple.11} parent=5 // pred_check
      %p156 = pneg %p155
    $region14: #{table_encoder_simple.11} parent=5 // pred_check_branch
      %158 = sbr.rel (%p156) target = $region16
    $region15: #{table_encoder_simple.11} parent=5 // pred_region
      // Predicated region
      $region17: #{table_encoder_simple.11} parent=15 // pred_check
        %p159 = pneg %p30
      $region18: #{table_encoder_simple.11} parent=15 // pred_check_branch
        %161 = sbr.rel (%p159) target = $region20
      $region19: #{table_encoder_simple.11} parent=15 // pred_region
        %p162 = scmp.lt.s32.totalorder %s10, 1
        %s163 = scalar_select %p162, %s10, 1
        %s164 = smul.addr %s163, 2
        %s165 = smul.addr %s164, 8
        %s166 = scalar_lea.vmem %s0, %s165
      $region20: #{table_encoder_simple.11} parent=15 // pred_fallthru
        _
      // Predicated region
      $region21: #{table_encoder_simple.11} parent=15 // pred_check
        %p167 = pneg %p56
      $region22: #{table_encoder_simple.11} parent=15 // pred_check_branch
        %169 = sbr.rel (%p167) target = $region24
      $region23: #{table_encoder_simple.11} parent=15 // pred_region
        %p170 = scmp.lt.s32.totalorder %s10, 1
        %s171 = scalar_select %p170, %s10, 1
        %s172 = smul.addr %s171, 2
        %s173 = smul.addr %s172, 8
        %s174 = scalar_lea.vmem %s1, %s173
      $region24: #{table_encoder_simple.11} parent=15 // pred_fallthru
        _
      // Predicated region
      $region25: #{table_encoder_simple.11} parent=15 // pred_check
        %p175 = pneg %p82
      $region26: #{table_encoder_simple.11} parent=15 // pred_check_branch
        %177 = sbr.rel (%p175) target = $region28
      $region27: #{table_encoder_simple.11} parent=15 // pred_region
        %p178 = scmp.lt.s32.totalorder %s10, 1
        %s179 = scalar_select %p178, %s10, 1
        %s180 = smul.addr %s179, 2
        %s181 = smul.addr %s180, 8
        %s182 = scalar_lea.vmem %s2, %s181
      $region28: #{table_encoder_simple.11} parent=15 // pred_fallthru
        _
      // Predicated region
      $region29: #{table_encoder_simple.11} parent=15 // pred_check
        %p183 = pneg %p108
      $region30: #{table_encoder_simple.11} parent=15 // pred_check_branch
        %185 = sbr.rel (%p183) target = $region32
      $region31: #{table_encoder_simple.11} parent=15 // pred_region
        %p186 = scmp.lt.s32.totalorder %s10, 1
        %s187 = scalar_select %p186, %s10, 1
        %s188 = smul.addr %s187, 2
        %s189 = smul.addr %s188, 8
        %s190 = scalar_lea.vmem %s3, %s189
      $region32: #{table_encoder_simple.11} parent=15 // pred_fallthru
        _
    $region16: #{table_encoder_simple.11} parent=5 // pred_fallthru
      _
    %p191 = scmp.le.s32.totalorder 1, %s10
    %p192 = scmp.lt.s32.totalorder %s10, 3
    %p193 = pnand %p191, %p192
    %p194 = pneg %p193
    // Predicated region
    $region33: #{table_encoder_simple.11} parent=5 // pred_check
      _
    $region34: #{table_encoder_simple.11} parent=5 // pred_check_branch
      %196 = sbr.rel (%p193) target = $region36
    $region35: #{table_encoder_simple.11} parent=5 // pred_region
      %s197 = ssub.s32 %s10, 1
      %p198 = scmp.lt.s32.totalorder %s15, 1
      %s199 = scalar_select %p198, %s15, 1
      %s200 = smul.addr %s199, 2
      %s201 = smul.addr %s200, 8
      %s202 = scalar_lea.vmem %s0, %s201
      %p203 = pneg %p36
      %p204 = pneg %p33
      %p205 = scmp.lt.s32.totalorder %s15, 1
      %s206 = scalar_select %p205, %s15, 1
      %s207 = smul.addr %s206, 2
      %s208 = smul.addr %s207, 8
      %s209 = scalar_lea.vmem %s1, %s208
      %p210 = pneg %p62
      %p211 = pneg %p59
      %p212 = scmp.lt.s32.totalorder %s15, 1
      %s213 = scalar_select %p212, %s15, 1
      %s214 = smul.addr %s213, 2
      %s215 = smul.addr %s214, 8
      %s216 = scalar_lea.vmem %s2, %s215
      %p217 = pneg %p88
      %p218 = pneg %p85
      %p219 = scmp.lt.s32.totalorder %s15, 1
      %s220 = scalar_select %p219, %s15, 1
      %s221 = smul.addr %s220, 2
      %s222 = smul.addr %s221, 8
      %s223 = scalar_lea.vmem %s3, %s222
      %p224 = pneg %p114
      %p225 = pneg %p111
      %p226 = pneg %p140
      %p227 = pneg %p137
      %p228 = scmp.lt.s32.totalorder %s15, 1
      %s229 = scalar_select %p228, %s15, 1
      %s230 = smul.addr %s229, 2
      %s231 = smul.addr %s230, 8
      %s232 = scalar_lea.vmem %s4, %s231
      %p233 = scmp.lt.s32.totalorder %s15, 1
      %s234 = scalar_select %p233, %s15, 1
      %s235 = smul.addr %s234, 2
      %s236 = smul.addr %s235, 8
      %s237 = scalar_lea.vmem %s0, %s236
      %p238 = scmp.lt.s32.totalorder %s15, 1
      %s239 = scalar_select %p238, %s15, 1
      %s240 = smul.addr %s239, 2
      %s241 = smul.addr %s240, 8
      %s242 = scalar_lea.vmem %s1, %s241
      %p243 = scmp.lt.s32.totalorder %s15, 1
      %s244 = scalar_select %p243, %s15, 1
      %s245 = smul.addr %s244, 2
      %s246 = smul.addr %s245, 8
      %s247 = scalar_lea.vmem %s2, %s246
      %p248 = scmp.lt.s32.totalorder %s15, 1
      %s249 = scalar_select %p248, %s15, 1
      %s250 = smul.addr %s249, 2
      %s251 = smul.addr %s250, 8
      %s252 = scalar_lea.vmem %s3, %s251
      %p253 = scmp.lt.s32.totalorder %s15, 1
      %s254 = scalar_select %p253, %s15, 1
      %s255 = smul.addr %s254, 2
      %s256 = smul.addr %s255, 8
      %s257 = scalar_lea.vmem %s4, %s256
      %v259 = vld [vmem:[%s237] sm:$0xff]
      %v260 = vld [vmem:[%s237 + $0x8] sm:$0xff]
      %v261 = vld [vmem:[%s242] sm:$0xff]
      %v262 = vld [vmem:[%s242 + $0x8] sm:$0xff]
      %v263 = vld [vmem:[%s247] sm:$0xff]
      %v264 = vld [vmem:[%s247 + $0x8] sm:$0xff]
      %v265 = vld [vmem:[%s252] sm:$0xff]
      %v266 = vld [vmem:[%s252 + $0x8] sm:$0xff]
      %v267 = vpack.c.bf16 %v260, %v259
      %v268 = vpack.c.bf16 %v262, %v261
      %v269 = vpack.c.bf16 %v264, %v263
      %vm270 = vcmask 64512
      %v272 = vsel %vm270, %v267, 0
      %v275 = vsel %vm270, %v268, 0
      %277 = vmatpush.bf16.xpose.msra.mxu0 0
      %278 = vmatpush.bf16.xpose.msra.mxu0 0
      %279 = vmatpush.bf16.xpose.msra.mxu0 0
      %280 = vmatpush.bf16.xpose.msra.mxu0 0
      %281 = vmatpush.bf16.xpose.msra.mxu0 0
      %282 = vmatpush.bf16.xpose.msra.mxu0 0
      %283 = vmatpush.bf16.xpose.msra.mxu0 0
      %284 = vmatpush.bf16.xpose.msra.mxu0 %v275
      %285 = vmatmul.bf16.gmra.mxu0 %v272
      %v286 = vpop.f32.mrf.mxu0
      %v287 = vadd.f32 0.0, %v286
      %v288 = vpop.f32.mrf.mxu0
      %v289 = vadd.f32 0.0, %v288
      %290 = vdwg.mxu0
      %v291 = vmul.f32 %v287, 0.35355338
      %v292 = vmul.f32 %v289, 0.35355338
      %v293 = vadd.f32 %v291, %v265
      %v294 = vadd.f32 %v292, %v266
      %vm295 = vcmask 130048
      %v296 = vsel %vm295, %v293, -inf
      %297 = vmax.xlane.f32.xlu0 %v296
      %v298 = vpop.xlane.xlu0 %297
      %v299 = vsel %vm295, %v294, -inf
      %300 = vmax.xlane.f32.xlu0 %v299
      %v301 = vpop.xlane.xlu0 %300
      %v302 = vsub.f32 %v293, %v298
      %v303 = vsub.f32 %v294, %v301
      %v304 = vmul.f32 %v302, 1.442695
      %v305 = vpow.pop %v304
      %v306 = vmul.f32 %v303, 1.442695
      %v307 = vpow.pop %v306
      %v308 = vsel %vm295, %v305, 0.0
      %309 = vadd.xlane.f32.xlu0 %v308
      %v310 = vpop.xlane.xlu0 %309
      %v311 = vsel %vm295, %v307, 0.0
      %312 = vadd.xlane.f32.xlu0 %v311
      %v313 = vpop.xlane.xlu0 %312
      %v314 = vrcp.pop %v310
      %v315 = vrcp.pop %v313
      %v316 = vmul.f32 %v305, %v314
      %v317 = vmul.f32 %v307, %v315
      %v318 = vpack.c.bf16 %v317, %v316
      %v320 = vsel %vm295, %v318, 0
      %322 = vmatpush.bf16.msra.mxu0 0
      %323 = vmatpush.bf16.msra.mxu0 0
      %324 = vmatpush.bf16.msra.mxu0 0
      %325 = vmatpush.bf16.msra.mxu0 0
      %326 = vmatpush.bf16.msra.mxu0 0
      %327 = vmatpush.bf16.msra.mxu0 0
      %328 = vmatpush.bf16.msra.mxu0 0
      %329 = vmatpush.bf16.msra.mxu0 %v269
      %330 = vmatmul.bf16.gmra.mxu0 %v320
      %v331 = vpop.f32.mrf.mxu0
      %v332 = vadd.f32 0.0, %v331
      %v333 = vpop.f32.mrf.mxu0
      %v334 = vadd.f32 0.0, %v333
      %335 = vdwg.mxu0
      %337 = vrot.lane.b32.xlu0 %v267, 120
      %v338 = vpop.permute.xlu0 %337
      %340 = vrot.lane.b32.xlu0 %v268, 120
      %v341 = vpop.permute.xlu0 %340
      %v343 = vsel %vm270, %v338, 0
      %v346 = vsel %vm270, %v341, 0
      %348 = vmatpush.bf16.xpose.msra.mxu0 0
      %349 = vmatpush.bf16.xpose.msra.mxu0 0
      %350 = vmatpush.bf16.xpose.msra.mxu0 0
      %351 = vmatpush.bf16.xpose.msra.mxu0 0
      %352 = vmatpush.bf16.xpose.msra.mxu0 0
      %353 = vmatpush.bf16.xpose.msra.mxu0 0
      %354 = vmatpush.bf16.xpose.msra.mxu0 0
      %355 = vmatpush.bf16.xpose.msra.mxu0 %v346
      %356 = vmatmul.bf16.gmra.mxu0 %v343
      %v357 = vpop.f32.mrf.mxu0
      %v358 = vadd.f32 0.0, %v357
      %v359 = vpop.f32.mrf.mxu0
      %v360 = vadd.f32 0.0, %v359
      %361 = vdwg.mxu0
      %v362 = vmul.f32 %v358, 0.35355338
      %v363 = vmul.f32 %v360, 0.35355338
      %v364 = vadd.f32 %v362, %v265
      %v365 = vadd.f32 %v363, %v266
      %v366 = vsel %vm295, %v364, -inf
      %367 = vmax.xlane.f32.xlu0 %v366
      %v368 = vpop.xlane.xlu0 %367
      %v369 = vsel %vm295, %v365, -inf
      %370 = vmax.xlane.f32.xlu0 %v369
      %v371 = vpop.xlane.xlu0 %370
      %v372 = vsub.f32 %v364, %v368
      %v373 = vsub.f32 %v365, %v371
      %v374 = vmul.f32 %v372, 1.442695
      %v375 = vpow.pop %v374
      %v376 = vmul.f32 %v373, 1.442695
      %v377 = vpow.pop %v376
      %v378 = vsel %vm295, %v375, 0.0
      %379 = vadd.xlane.f32.xlu0 %v378
      %v380 = vpop.xlane.xlu0 %379
      %v381 = vsel %vm295, %v377, 0.0
      %382 = vadd.xlane.f32.xlu0 %v381
      %v383 = vpop.xlane.xlu0 %382
      %v384 = vrcp.pop %v380
      %v385 = vrcp.pop %v383
      %v386 = vmul.f32 %v375, %v384
      %v387 = vmul.f32 %v377, %v385
      %v388 = vpack.c.bf16 %v387, %v386
      %390 = vrot.lane.b32.xlu0 %v269, 120
      %v391 = vpop.permute.xlu0 %390
      %v394 = vsel %vm295, %v388, 0
      %396 = vmatpush.bf16.msra.mxu0 0
      %397 = vmatpush.bf16.msra.mxu0 0
      %398 = vmatpush.bf16.msra.mxu0 0
      %399 = vmatpush.bf16.msra.mxu0 0
      %400 = vmatpush.bf16.msra.mxu0 0
      %401 = vmatpush.bf16.msra.mxu0 0
      %402 = vmatpush.bf16.msra.mxu0 0
      %403 = vmatpush.bf16.msra.mxu0 %v391
      %404 = vmatmul.bf16.gmra.mxu0 %v394
      %v405 = vpop.f32.mrf.mxu0
      %v406 = vadd.f32 0.0, %v405
      %v407 = vpop.f32.mrf.mxu0
      %v408 = vadd.f32 0.0, %v407
      %409 = vdwg.mxu0
      %410 = vrot.lane.b32.xlu0 %v267, 112
      %v411 = vpop.permute.xlu0 %410
      %412 = vrot.lane.b32.xlu0 %v268, 112
      %v413 = vpop.permute.xlu0 %412
      %v415 = vsel %vm270, %v411, 0
      %v418 = vsel %vm270, %v413, 0
      %420 = vmatpush.bf16.xpose.msra.mxu0 0
      %421 = vmatpush.bf16.xpose.msra.mxu0 0
      %422 = vmatpush.bf16.xpose.msra.mxu0 0
      %423 = vmatpush.bf16.xpose.msra.mxu0 0
      %424 = vmatpush.bf16.xpose.msra.mxu0 0
      %425 = vmatpush.bf16.xpose.msra.mxu0 0
      %426 = vmatpush.bf16.xpose.msra.mxu0 0
      %427 = vmatpush.bf16.xpose.msra.mxu0 %v418
      %428 = vmatmul.bf16.gmra.mxu0 %v415
      %v429 = vpop.f32.mrf.mxu0
      %v430 = vadd.f32 0.0, %v429
      %v431 = vpop.f32.mrf.mxu0
      %v432 = vadd.f32 0.0, %v431
      %433 = vdwg.mxu0
      %v434 = vmul.f32 %v430, 0.35355338
      %v435 = vmul.f32 %v432, 0.35355338
      %v436 = vadd.f32 %v434, %v265
      %v437 = vadd.f32 %v435, %v266
      %v438 = vsel %vm295, %v436, -inf
      %439 = vmax.xlane.f32.xlu0 %v438
      %v440 = vpop.xlane.xlu0 %439
      %v441 = vsel %vm295, %v437, -inf
      %442 = vmax.xlane.f32.xlu0 %v441
      %v443 = vpop.xlane.xlu0 %442
      %v444 = vsub.f32 %v436, %v440
      %v445 = vsub.f32 %v437, %v443
      %v446 = vmul.f32 %v444, 1.442695
      %v447 = vpow.pop %v446
      %v448 = vmul.f32 %v445, 1.442695
      %v449 = vpow.pop %v448
      %v450 = vsel %vm295, %v447, 0.0
      %451 = vadd.xlane.f32.xlu0 %v450
      %v452 = vpop.xlane.xlu0 %451
      %v453 = vsel %vm295, %v449, 0.0
      %454 = vadd.xlane.f32.xlu0 %v453
      %v455 = vpop.xlane.xlu0 %454
      %v456 = vrcp.pop %v452
      %v457 = vrcp.pop %v455
      %v458 = vmul.f32 %v447, %v456
      %v459 = vmul.f32 %v449, %v457
      %v460 = vpack.c.bf16 %v459, %v458
      %461 = vrot.lane.b32.xlu0 %v269, 112
      %v462 = vpop.permute.xlu0 %461
      %v465 = vsel %vm295, %v460, 0
      %467 = vmatpush.bf16.msra.mxu0 0
      %468 = vmatpush.bf16.msra.mxu0 0
      %469 = vmatpush.bf16.msra.mxu0 0
      %470 = vmatpush.bf16.msra.mxu0 0
      %471 = vmatpush.bf16.msra.mxu0 0
      %472 = vmatpush.bf16.msra.mxu0 0
      %473 = vmatpush.bf16.msra.mxu0 0
      %474 = vmatpush.bf16.msra.mxu0 %v462
      %475 = vmatmul.bf16.gmra.mxu0 %v465
      %v476 = vpop.f32.mrf.mxu0
      %v477 = vadd.f32 0.0, %v476
      %v478 = vpop.f32.mrf.mxu0
      %v479 = vadd.f32 0.0, %v478
      %480 = vdwg.mxu0
      %481 = vrot.lane.b32.xlu0 %v267, 104
      %v482 = vpop.permute.xlu0 %481
      %483 = vrot.lane.b32.xlu0 %v268, 104
      %v484 = vpop.permute.xlu0 %483
      %v486 = vsel %vm270, %v482, 0
      %v489 = vsel %vm270, %v484, 0
      %491 = vmatpush.bf16.xpose.msra.mxu0 0
      %492 = vmatpush.bf16.xpose.msra.mxu0 0
      %493 = vmatpush.bf16.xpose.msra.mxu0 0
      %494 = vmatpush.bf16.xpose.msra.mxu0 0
      %495 = vmatpush.bf16.xpose.msra.mxu0 0
      %496 = vmatpush.bf16.xpose.msra.mxu0 0
      %497 = vmatpush.bf16.xpose.msra.mxu0 0
      %498 = vmatpush.bf16.xpose.msra.mxu0 %v489
      %499 = vmatmul.bf16.gmra.mxu0 %v486
      %v500 = vpop.f32.mrf.mxu0
      %v501 = vadd.f32 0.0, %v500
      %v502 = vpop.f32.mrf.mxu0
      %v503 = vadd.f32 0.0, %v502
      %504 = vdwg.mxu0
      %v505 = vmul.f32 %v501, 0.35355338
      %v506 = vmul.f32 %v503, 0.35355338
      %v507 = vadd.f32 %v505, %v265
      %v508 = vadd.f32 %v506, %v266
      %v509 = vsel %vm295, %v507, -inf
      %510 = vmax.xlane.f32.xlu0 %v509
      %v511 = vpop.xlane.xlu0 %510
      %v512 = vsel %vm295, %v508, -inf
      %513 = vmax.xlane.f32.xlu0 %v512
      %v514 = vpop.xlane.xlu0 %513
      %v515 = vsub.f32 %v507, %v511
      %v516 = vsub.f32 %v508, %v514
      %v517 = vmul.f32 %v515, 1.442695
      %v518 = vpow.pop %v517
      %v519 = vmul.f32 %v516, 1.442695
      %v520 = vpow.pop %v519
      %v521 = vsel %vm295, %v518, 0.0
      %522 = vadd.xlane.f32.xlu0 %v521
      %v523 = vpop.xlane.xlu0 %522
      %v524 = vsel %vm295, %v520, 0.0
      %525 = vadd.xlane.f32.xlu0 %v524
      %v526 = vpop.xlane.xlu0 %525
      %v527 = vrcp.pop %v523
      %v528 = vrcp.pop %v526
      %v529 = vmul.f32 %v518, %v527
      %v530 = vmul.f32 %v520, %v528
      %v531 = vpack.c.bf16 %v530, %v529
      %532 = vrot.lane.b32.xlu0 %v269, 104
      %v533 = vpop.permute.xlu0 %532
      %v536 = vsel %vm295, %v531, 0
      %538 = vmatpush.bf16.msra.mxu0 0
      %539 = vmatpush.bf16.msra.mxu0 0
      %540 = vmatpush.bf16.msra.mxu0 0
      %541 = vmatpush.bf16.msra.mxu0 0
      %542 = vmatpush.bf16.msra.mxu0 0
      %543 = vmatpush.bf16.msra.mxu0 0
      %544 = vmatpush.bf16.msra.mxu0 0
      %545 = vmatpush.bf16.msra.mxu0 %v533
      %546 = vmatmul.bf16.gmra.mxu0 %v536
      %v547 = vpop.f32.mrf.mxu0
      %v548 = vadd.f32 0.0, %v547
      %v549 = vpop.f32.mrf.mxu0
      %v550 = vadd.f32 0.0, %v549
      %551 = vdwg.mxu0
      %554 = vrot.lane.b32.xlu0 %v406, 8
      %v555 = vpop.permute.xlu0 %554
      %556 = vrot.lane.b32.xlu0 %v408, 8
      %v557 = vpop.permute.xlu0 %556
      %562 = vrot.lane.b32.xlu0 %v477, 16
      %v563 = vpop.permute.xlu0 %562
      %564 = vrot.lane.b32.xlu0 %v479, 16
      %v565 = vpop.permute.xlu0 %564
      %570 = vrot.lane.b32.xlu0 %v548, 24
      %v571 = vpop.permute.xlu0 %570
      %572 = vrot.lane.b32.xlu0 %v550, 24
      %v573 = vpop.permute.xlu0 %572
      %v576 = vsel %vm270, %v332, %v555
      %v577 = vsel %vm270, %v334, %v557
      %v578 = vsel %vm295, %v576, %v563
      %v579 = vsel %vm295, %v577, %v565
      %vm580 = vcmask 195584
      %v581 = vsel %vm580, %v578, %v571
      %v582 = vsel %vm580, %v579, %v573
      %vm583 = vcmask 261120
      %584 = vst.msk [vmem:[%s257] sm:$0xff] %vm583, %v581
      %585 = vst.msk [vmem:[%s257 + $0x8] sm:$0xff] %vm583, %v582
      %p586 = scmp.lt.s32.totalorder %s15, 1
      %s587 = scalar_select %p586, %s15, 1
      %s588 = smul.addr %s587, 2
      %s589 = smul.addr %s588, 8
      %s590 = scalar_lea.vmem %s4, %s589
      // Predicated region
      $region37: #{table_encoder_simple.11} parent=35 // pred_check
        %p591 = pneg %p137
      $region38: #{table_encoder_simple.11} parent=35 // pred_check_branch
        %593 = sbr.rel (%p591) target = $region40
      $region39: #{table_encoder_simple.11} parent=35 // pred_region
        _
      $region40: #{table_encoder_simple.11} parent=35 // pred_fallthru
        _
    $region36: #{table_encoder_simple.11} parent=5 // pred_fallthru
      _
    %p594 = scmp.le.s32.totalorder 2, %s10
    // Predicated region
    $region41: #{table_encoder_simple.11} parent=5 // pred_check
      %p595 = pneg %p594
    $region42: #{table_encoder_simple.11} parent=5 // pred_check_branch
      %597 = sbr.rel (%p595) target = $region44
    $region43: #{table_encoder_simple.11} parent=5 // pred_region
      %s598 = ssub.s32 %s10, 2
      // Predicated region
      $region45: #{table_encoder_simple.11} parent=43 // pred_check
        %p599 = pneg %p143
      $region46: #{table_encoder_simple.11} parent=43 // pred_check_branch
        %601 = sbr.rel (%p599) target = $region48
      $region47: #{table_encoder_simple.11} parent=43 // pred_region
        %p602 = scmp.lt.s32.totalorder %s16, 1
        %s603 = scalar_select %p602, %s16, 1
        %s604 = smul.addr %s603, 2
        %s605 = smul.addr %s604, 8
        %s606 = scalar_lea.vmem %s4, %s605
      $region48: #{table_encoder_simple.11} parent=43 // pred_fallthru
        _
    $region44: #{table_encoder_simple.11} parent=5 // pred_fallthru
      _
  $region6: #{table_encoder_simple.11} parent=0 // loop_footer
    %s14 = sadd.s32 1, %s10
  $region7: #{table_encoder_simple.11} parent=0 // loop_footer_branch
    %9 = sbr.rel target = $region3
  $region8: #{table_encoder_simple.11} parent=0 // loop_exit
    _

// kernel: table_encoder_simple.14
$region0: #{table_encoder_simple.14}
  #allocation0 [shape = 'u32[]', space=smem, size = 0x4, offset = 0x4, fixed_abs, tag = 'smem constant byte address 0x4 - core index']
  #allocation1 [shape = 'u32[72,128]{1,0:T(1,128)}', space=vmem, size = 0x9000, scoped, tag = 'internal scratch']
  #allocation2 [shape = 'f32[8,32]{1,0:T(8,128)}', space=vmem, size = 0x1000, scoped, tag = 'scratch operand']
  %s0 = inlined_call_operand.vmem [shape: f32[32,64], index: 0, kind: input, shape index: {}]
  %s1 = inlined_call_operand.vmem [shape: f32[64,32], index: 1, kind: input, shape index: {}]
  %s2 = inlined_call_operand.vmem [shape: f32[1,32], index: 2, kind: input, shape index: {}]
  %s3 = inlined_call_operand.vmem [shape: f32[32,32], index: 3, kind: input, shape index: {}]
  %s4 = inlined_call_operand.vmem [shape: f32[1,32], index: 4, kind: input, shape index: {}]
  %s5 = inlined_call_operand.vmem [shape: f32[1,32], index: 5, kind: input, shape index: {}]
  %s6 = inlined_call_operand.vmem [shape: f32[32,32], index: 6, kind: output, shape index: {}]
  %s7 = sld [smem:[#allocation0]]
  $region65: #{table_encoder_simple.14} parent=0
    _
  %s9 = ssub.s32 1, %s7
  %s10 = scalar_select 0, %s9, %s7
  loop: start=0, step=1, limit=6
  $region2: #{table_encoder_simple.14} parent=0 // loop_pre_header
    _
  $region3: #{table_encoder_simple.14} parent=0 // loop_header
    %s12 = sphi 0, %s16
    %p13 = scmp.ge.s32.totalorder %s12, 6
    %s19 = sphi 0, %s38
    %s20 = sphi 0, %s34
    %s21 = sphi 0, %s30
    %s22 = sphi 0, %s19
    %s23 = sphi 0, %s20
    %s24 = sphi 0, %s21
    %s25 = sphi 0, %s22
    %s26 = sphi 0, %s23
    %s27 = sphi 0, %s24
    %s43 = sphi 0, %s45
    %s46 = sphi 0, %s43
    %s47 = sphi 0, %s46
    %s63 = sphi 0, %s47
    %s71 = sphi 0, %s73
    %s74 = sphi 0, %s71
    %s75 = sphi 0, %s74
    %s91 = sphi 0, %s75
    %s97 = sphi 0, %s99
    %s100 = sphi 0, %s97
    %s101 = sphi 0, %s100
    %s117 = sphi 0, %s101
    %s125 = sphi 0, %s127
    %s128 = sphi 0, %s125
    %s129 = sphi 0, %s128
    %s145 = sphi 0, %s129
    %s151 = sphi 0, %s153
    %s154 = sphi 0, %s151
    %s155 = sphi 0, %s154
    %s171 = sphi 0, %s155
    %s177 = sphi 0, %s179
    %s180 = sphi 0, %s177
    %s181 = sphi 0, %s180
    %s197 = sphi 0, %s181
    %s205 = sphi 0, %s207
    %s208 = sphi 0, %s205
    %s209 = sphi 0, %s208
    %s225 = sphi 0, %s209
  $region4: #{table_encoder_simple.14} parent=0 // loop_header_branch
    %15 = sbr.rel (%p13) target = $region8
  $region5: #{table_encoder_simple.14} parent=0 // loop_body
    %s17 = ssub.s32 %s12, 1
    %s18 = ssub.s32 %s12, 2
    %s28 = sadd.s32 1, %s21
    %p29 = scmp.ge.s32.totalorder %s28, 1
    %s30 = scalar_select %p29, 0, %s28
    %s31 = sadd.s32 1, %s20
    %s32 = scalar_select %p29, %s31, %s20
    %p33 = scmp.ge.s32.totalorder %s32, 1
    %s34 = scalar_select %p33, 0, %s32
    %s35 = sadd.s32 1, %s19
    %s36 = scalar_select %p33, %s35, %s19
    %p37 = scmp.ge.s32.totalorder %s36, 4
    %s38 = scalar_select %p37, 0, %s36
    %s39 = ssub.s32 %s19, %s38
    %s40 = ssub.s32 %s21, %s30
    %s41 = sor.u32 %s39, %s40
    %p42 = scmp.eq.s32.totalorder %s41, 0
    %s44 = sadd.s32 %s43, 1
    %s45 = scalar_select %p42, %s43, %s44
    %p48 = pneg %p42
    %p49 = scmp.eq.s32.totalorder %s12, 3
    %p50 = por %p48, %p49
    %p51 = scmp.ne.s32.totalorder %s43, %s46
    %p52 = scmp.eq.s32.totalorder %s12, 0
    %p53 = por %p51, %p52
    %p54 = scmp.ne.s32.totalorder %s43, %s46
    %p55 = scmp.eq.s32.totalorder %s17, 3
    %p56 = por %p54, %p55
    %p57 = scmp.ne.s32.totalorder %s46, %s47
    %p58 = scmp.eq.s32.totalorder %s17, 0
    %p59 = por %p57, %p58
    %p60 = scmp.ne.s32.totalorder %s46, %s47
    %p61 = scmp.eq.s32.totalorder %s18, 3
    %p62 = por %p60, %p61
    %p64 = scmp.ne.s32.totalorder %s47, %s63
    %p65 = scmp.eq.s32.totalorder %s18, 0
    %p66 = por %p64, %p65
    %s67 = ssub.s32 %s21, %s30
    %s68 = ssub.s32 %s20, %s34
    %s69 = sor.u32 %s67, %s68
    %p70 = scmp.eq.s32.totalorder %s69, 0
    %s72 = sadd.s32 %s71, 1
    %s73 = scalar_select %p70, %s71, %s72
    %p76 = pneg %p70
    %p77 = scmp.eq.s32.totalorder %s12, 3
    %p78 = por %p76, %p77
    %p79 = scmp.ne.s32.totalorder %s71, %s74
    %p80 = scmp.eq.s32.totalorder %s12, 0
    %p81 = por %p79, %p80
    %p82 = scmp.ne.s32.totalorder %s71, %s74
    %p83 = scmp.eq.s32.totalorder %s17, 3
    %p84 = por %p82, %p83
    %p85 = scmp.ne.s32.totalorder %s74, %s75
    %p86 = scmp.eq.s32.totalorder %s17, 0
    %p87 = por %p85, %p86
    %p88 = scmp.ne.s32.totalorder %s74, %s75
    %p89 = scmp.eq.s32.totalorder %s18, 3
    %p90 = por %p88, %p89
    %p92 = scmp.ne.s32.totalorder %s75, %s91
    %p93 = scmp.eq.s32.totalorder %s18, 0
    %p94 = por %p92, %p93
    %s95 = ssub.s32 %s20, %s34
    %p96 = scmp.eq.s32.totalorder %s95, 0
    %s98 = sadd.s32 %s97, 1
    %s99 = scalar_select %p96, %s97, %s98
    %p102 = pneg %p96
    %p103 = scmp.eq.s32.totalorder %s12, 3
    %p104 = por %p102, %p103
    %p105 = scmp.ne.s32.totalorder %s97, %s100
    %p106 = scmp.eq.s32.totalorder %s12, 0
    %p107 = por %p105, %p106
    %p108 = scmp.ne.s32.totalorder %s97, %s100
    %p109 = scmp.eq.s32.totalorder %s17, 3
    %p110 = por %p108, %p109
    %p111 = scmp.ne.s32.totalorder %s100, %s101
    %p112 = scmp.eq.s32.totalorder %s17, 0
    %p113 = por %p111, %p112
    %p114 = scmp.ne.s32.totalorder %s100, %s101
    %p115 = scmp.eq.s32.totalorder %s18, 3
    %p116 = por %p114, %p115
    %p118 = scmp.ne.s32.totalorder %s101, %s117
    %p119 = scmp.eq.s32.totalorder %s18, 0
    %p120 = por %p118, %p119
    %s121 = ssub.s32 %s19, %s38
    %s122 = ssub.s32 %s20, %s34
    %s123 = sor.u32 %s121, %s122
    %p124 = scmp.eq.s32.totalorder %s123, 0
    %s126 = sadd.s32 %s125, 1
    %s127 = scalar_select %p124, %s125, %s126
    %p130 = pneg %p124
    %p131 = scmp.eq.s32.totalorder %s12, 3
    %p132 = por %p130, %p131
    %p133 = scmp.ne.s32.totalorder %s125, %s128
    %p134 = scmp.eq.s32.totalorder %s12, 0
    %p135 = por %p133, %p134
    %p136 = scmp.ne.s32.totalorder %s125, %s128
    %p137 = scmp.eq.s32.totalorder %s17, 3
    %p138 = por %p136, %p137
    %p139 = scmp.ne.s32.totalorder %s128, %s129
    %p140 = scmp.eq.s32.totalorder %s17, 0
    %p141 = por %p139, %p140
    %p142 = scmp.ne.s32.totalorder %s128, %s129
    %p143 = scmp.eq.s32.totalorder %s18, 3
    %p144 = por %p142, %p143
    %p146 = scmp.ne.s32.totalorder %s129, %s145
    %p147 = scmp.eq.s32.totalorder %s18, 0
    %p148 = por %p146, %p147
    %s149 = ssub.s32 %s20, %s34
    %p150 = scmp.eq.s32.totalorder %s149, 0
    %s152 = sadd.s32 %s151, 1
    %s153 = scalar_select %p150, %s151, %s152
    %p156 = pneg %p150
    %p157 = scmp.eq.s32.totalorder %s12, 3
    %p158 = por %p156, %p157
    %p159 = scmp.ne.s32.totalorder %s151, %s154
    %p160 = scmp.eq.s32.totalorder %s12, 0
    %p161 = por %p159, %p160
    %p162 = scmp.ne.s32.totalorder %s151, %s154
    %p163 = scmp.eq.s32.totalorder %s17, 3
    %p164 = por %p162, %p163
    %p165 = scmp.ne.s32.totalorder %s154, %s155
    %p166 = scmp.eq.s32.totalorder %s17, 0
    %p167 = por %p165, %p166
    %p168 = scmp.ne.s32.totalorder %s154, %s155
    %p169 = scmp.eq.s32.totalorder %s18, 3
    %p170 = por %p168, %p169
    %p172 = scmp.ne.s32.totalorder %s155, %s171
    %p173 = scmp.eq.s32.totalorder %s18, 0
    %p174 = por %p172, %p173
    %s175 = ssub.s32 %s20, %s34
    %p176 = scmp.eq.s32.totalorder %s175, 0
    %s178 = sadd.s32 %s177, 1
    %s179 = scalar_select %p176, %s177, %s178
    %p182 = pneg %p176
    %p183 = scmp.eq.s32.totalorder %s12, 3
    %p184 = por %p182, %p183
    %p185 = scmp.ne.s32.totalorder %s177, %s180
    %p186 = scmp.eq.s32.totalorder %s12, 0
    %p187 = por %p185, %p186
    %p188 = scmp.ne.s32.totalorder %s177, %s180
    %p189 = scmp.eq.s32.totalorder %s17, 3
    %p190 = por %p188, %p189
    %p191 = scmp.ne.s32.totalorder %s180, %s181
    %p192 = scmp.eq.s32.totalorder %s17, 0
    %p193 = por %p191, %p192
    %p194 = scmp.ne.s32.totalorder %s180, %s181
    %p195 = scmp.eq.s32.totalorder %s18, 3
    %p196 = por %p194, %p195
    %p198 = scmp.ne.s32.totalorder %s181, %s197
    %p199 = scmp.eq.s32.totalorder %s18, 0
    %p200 = por %p198, %p199
    %s201 = ssub.s32 %s19, %s38
    %s202 = ssub.s32 %s20, %s34
    %s203 = sor.u32 %s201, %s202
    %p204 = scmp.eq.s32.totalorder %s203, 0
    %s206 = sadd.s32 %s205, 1
    %s207 = scalar_select %p204, %s205, %s206
    %p210 = pneg %p204
    %p211 = scmp.eq.s32.totalorder %s12, 3
    %p212 = por %p210, %p211
    %p213 = scmp.ne.s32.totalorder %s205, %s208
    %p214 = scmp.eq.s32.totalorder %s12, 0
    %p215 = por %p213, %p214
    %p216 = scmp.ne.s32.totalorder %s205, %s208
    %p217 = scmp.eq.s32.totalorder %s17, 3
    %p218 = por %p216, %p217
    %p219 = scmp.ne.s32.totalorder %s208, %s209
    %p220 = scmp.eq.s32.totalorder %s17, 0
    %p221 = por %p219, %p220
    %p222 = scmp.ne.s32.totalorder %s208, %s209
    %p223 = scmp.eq.s32.totalorder %s18, 3
    %p224 = por %p222, %p223
    %p226 = scmp.ne.s32.totalorder %s209, %s225
    %p227 = scmp.eq.s32.totalorder %s18, 0
    %p228 = por %p226, %p227
    %p229 = scmp.le.s32.totalorder 1, %s12
    %p230 = scmp.lt.s32.totalorder %s12, 5
    %p231 = pnand %p229, %p230
    %p232 = pneg %p231
    // Predicated region
    $region9: #{table_encoder_simple.14} parent=5 // pred_check
      _
    $region10: #{table_encoder_simple.14} parent=5 // pred_check_branch
      %234 = sbr.rel (%p231) target = $region12
    $region11: #{table_encoder_simple.14} parent=5 // pred_region
      %s235 = ssub.s32 %s12, 1
      // Predicated region
      $region13: #{table_encoder_simple.14} parent=11 // pred_check
        %p236 = pneg %p87
      $region14: #{table_encoder_simple.14} parent=11 // pred_check_branch
        %238 = sbr.rel (%p236) target = $region16
      $region15: #{table_encoder_simple.14} parent=11 // pred_region
        %s239 = smul.u32 8, %s24
        %p240 = scmp.lt.s32.totalorder %s239, 7
        %s241 = scalar_select %p240, %s239, 7
        %p242 = scmp.lt.s32.totalorder %s23, 0
        %s243 = scalar_select %p242, %s23, 0
        %s244 = sadd.s32 %s243, %s241
        %s245 = smul.addr %s244, 8
        %s246 = scalar_lea.vmem %s1, %s245
        %s247 = smul.u32 8, %s24
      $region16: #{table_encoder_simple.14} parent=11 // pred_fallthru
        _
      // Predicated region
      $region17: #{table_encoder_simple.14} parent=11 // pred_check
        %p248 = pneg %p113
      $region18: #{table_encoder_simple.14} parent=11 // pred_check_branch
        %250 = sbr.rel (%p248) target = $region20
      $region19: #{table_encoder_simple.14} parent=11 // pred_region
        %p251 = scmp.lt.s32.totalorder %s23, 0
        %s252 = scalar_select %p251, %s23, 0
        %s253 = scalar_lea.vmem %s2, %s252
      $region20: #{table_encoder_simple.14} parent=11 // pred_fallthru
        _
      // Predicated region
      $region21: #{table_encoder_simple.14} parent=11 // pred_check
        %p254 = pneg %p167
      $region22: #{table_encoder_simple.14} parent=11 // pred_check_branch
        %256 = sbr.rel (%p254) target = $region24
      $region23: #{table_encoder_simple.14} parent=11 // pred_region
        %p257 = scmp.lt.s32.totalorder %s23, 0
        %s258 = scalar_select %p257, %s23, 0
        %s259 = scalar_lea.vmem %s4, %s258
      $region24: #{table_encoder_simple.14} parent=11 // pred_fallthru
        _
      // Predicated region
      $region25: #{table_encoder_simple.14} parent=11 // pred_check
        %p260 = pneg %p193
      $region26: #{table_encoder_simple.14} parent=11 // pred_check_branch
        %262 = sbr.rel (%p260) target = $region28
      $region27: #{table_encoder_simple.14} parent=11 // pred_region
        %p263 = scmp.lt.s32.totalorder %s23, 0
        %s264 = scalar_select %p263, %s23, 0
        %s265 = scalar_lea.vmem %s5, %s264
      $region28: #{table_encoder_simple.14} parent=11 // pred_fallthru
        _
    $region12: #{table_encoder_simple.14} parent=5 // pred_fallthru
      _
    %p266 = scmp.lt.s32.totalorder %s12, 4
    // Predicated region
    $region29: #{table_encoder_simple.14} parent=5 // pred_check
      %p267 = pneg %p266
    $region30: #{table_encoder_simple.14} parent=5 // pred_check_branch
      %269 = sbr.rel (%p267) target = $region32
    $region31: #{table_encoder_simple.14} parent=5 // pred_region
      // Predicated region
      $region33: #{table_encoder_simple.14} parent=31 // pred_check
        %p270 = pneg %p53
      $region34: #{table_encoder_simple.14} parent=31 // pred_check_branch
        %272 = sbr.rel (%p270) target = $region36
      $region35: #{table_encoder_simple.14} parent=31 // pred_region
        %p273 = scmp.lt.s32.totalorder %s19, 3
        %s274 = scalar_select %p273, %s19, 3
        %p275 = scmp.lt.s32.totalorder %s21, 0
        %s276 = scalar_select %p275, %s21, 0
        %s277 = sadd.s32 %s276, %s274
        %s278 = smul.addr %s277, 8
        %s279 = scalar_lea.vmem %s0, %s278
      $region36: #{table_encoder_simple.14} parent=31 // pred_fallthru
        _
      // Predicated region
      $region37: #{table_encoder_simple.14} parent=31 // pred_check
        %p280 = pneg %p135
      $region38: #{table_encoder_simple.14} parent=31 // pred_check_branch
        %282 = sbr.rel (%p280) target = $region40
      $region39: #{table_encoder_simple.14} parent=31 // pred_region
        %p283 = scmp.lt.s32.totalorder %s19, 3
        %s284 = scalar_select %p283, %s19, 3
        %p285 = scmp.lt.s32.totalorder %s20, 0
        %s286 = scalar_select %p285, %s20, 0
        %s287 = sadd.s32 %s286, %s284
        %s288 = smul.addr %s287, 8
        %s289 = scalar_lea.vmem %s3, %s288
      $region40: #{table_encoder_simple.14} parent=31 // pred_fallthru
        _
    $region32: #{table_encoder_simple.14} parent=5 // pred_fallthru
      _
    %p290 = scmp.le.s32.totalorder 1, %s12
    %p291 = scmp.lt.s32.totalorder %s12, 5
    %p292 = pnand %p290, %p291
    %p293 = pneg %p292
    // Predicated region
    $region41: #{table_encoder_simple.14} parent=5 // pred_check
      _
    $region42: #{table_encoder_simple.14} parent=5 // pred_check_branch
      %295 = sbr.rel (%p292) target = $region44
    $region43: #{table_encoder_simple.14} parent=5 // pred_region
      %s296 = ssub.s32 %s12, 1
      %p297 = scmp.lt.s32.totalorder %s22, 3
      %s298 = scalar_select %p297, %s22, 3
      %p299 = scmp.lt.s32.totalorder %s24, 0
      %s300 = scalar_select %p299, %s24, 0
      %s301 = sadd.s32 %s300, %s298
      %s302 = smul.addr %s301, 8
      %s303 = scalar_lea.vmem %s0, %s302
      %p304 = pneg %p59
      %p305 = pneg %p56
      %s306 = smul.u32 8, %s24
      %p307 = scmp.lt.s32.totalorder %s306, 7
      %s308 = scalar_select %p307, %s306, 7
      %p309 = scmp.lt.s32.totalorder %s23, 0
      %s310 = scalar_select %p309, %s23, 0
      %s311 = sadd.s32 %s310, %s308
      %s312 = smul.addr %s311, 8
      %s313 = scalar_lea.vmem %s1, %s312
      %p314 = pneg %p87
      %p315 = pneg %p84
      %p316 = scmp.lt.s32.totalorder %s23, 0
      %s317 = scalar_select %p316, %s23, 0
      %s318 = scalar_lea.vmem %s2, %s317
      %p319 = pneg %p113
      %p320 = pneg %p110
      %p321 = scmp.lt.s32.totalorder %s22, 3
      %s322 = scalar_select %p321, %s22, 3
      %p323 = scmp.lt.s32.totalorder %s23, 0
      %s324 = scalar_select %p323, %s23, 0
      %s325 = sadd.s32 %s324, %s322
      %s326 = smul.addr %s325, 8
      %s327 = scalar_lea.vmem %s3, %s326
      %p328 = pneg %p141
      %p329 = pneg %p138
      %p330 = scmp.lt.s32.totalorder %s23, 0
      %s331 = scalar_select %p330, %s23, 0
      %s332 = scalar_lea.vmem %s4, %s331
      %p333 = pneg %p167
      %p334 = pneg %p164
      %p335 = scmp.lt.s32.totalorder %s23, 0
      %s336 = scalar_select %p335, %s23, 0
      %s337 = scalar_lea.vmem %s5, %s336
      %p338 = pneg %p193
      %p339 = pneg %p190
      %p340 = pneg %p221
      %p341 = pneg %p218
      %p342 = scmp.lt.s32.totalorder %s22, 3
      %s343 = scalar_select %p342, %s22, 3
      %p344 = scmp.lt.s32.totalorder %s23, 0
      %s345 = scalar_select %p344, %s23, 0
      %s346 = sadd.s32 %s345, %s343
      %s347 = smul.addr %s346, 8
      %s348 = scalar_lea.vmem %s6, %s347
      %p349 = scmp.lt.s32.totalorder %s22, 3
      %s350 = scalar_select %p349, %s22, 3
      %p351 = scmp.lt.s32.totalorder %s24, 0
      %s352 = scalar_select %p351, %s24, 0
      %s353 = sadd.s32 %s352, %s350
      %s354 = smul.addr %s353, 8
      %s355 = scalar_lea.vmem %s0, %s354
      %s356 = smul.u32 8, %s24
      %p357 = scmp.lt.s32.totalorder %s356, 7
      %s358 = scalar_select %p357, %s356, 7
      %p359 = scmp.lt.s32.totalorder %s23, 0
      %s360 = scalar_select %p359, %s23, 0
      %s361 = sadd.s32 %s360, %s358
      %s362 = smul.addr %s361, 8
      %s363 = scalar_lea.vmem %s1, %s362
      %s364 = smul.u32 8, %s24
      %p365 = scmp.lt.s32.totalorder %s23, 0
      %s366 = scalar_select %p365, %s23, 0
      %s367 = scalar_lea.vmem %s2, %s366
      %p368 = scmp.lt.s32.totalorder %s22, 3
      %s369 = scalar_select %p368, %s22, 3
      %p370 = scmp.lt.s32.totalorder %s23, 0
      %s371 = scalar_select %p370, %s23, 0
      %s372 = sadd.s32 %s371, %s369
      %s373 = smul.addr %s372, 8
      %s374 = scalar_lea.vmem %s3, %s373
      %p375 = scmp.lt.s32.totalorder %s23, 0
      %s376 = scalar_select %p375, %s23, 0
      %s377 = scalar_lea.vmem %s4, %s376
      %p378 = scmp.lt.s32.totalorder %s23, 0
      %s379 = scalar_select %p378, %s23, 0
      %s380 = scalar_lea.vmem %s5, %s379
      %p381 = scmp.lt.s32.totalorder %s22, 3
      %s382 = scalar_select %p381, %s22, 3
      %p383 = scmp.lt.s32.totalorder %s23, 0
      %s384 = scalar_select %p383, %s23, 0
      %s385 = sadd.s32 %s384, %s382
      %s386 = smul.addr %s385, 8
      %s387 = scalar_lea.vmem %s6, %s386
      %p389 = scmp.eq.s32.totalorder %s24, 0
      // Predicated region
      $region45: #{table_encoder_simple.14} parent=43 // pred_check
        %p390 = pneg %p389
      $region46: #{table_encoder_simple.14} parent=43 // pred_check_branch
        %392 = sbr.rel (%p390) target = $region48
      $region47: #{table_encoder_simple.14} parent=43 // pred_region
        %vm393 = vcmask 261120
        %394 = vst.msk [vmem:[#allocation2] sm:$0xff] %vm393, 0.0
      $region48: #{table_encoder_simple.14} parent=43 // pred_fallthru
        _
      %v395 = vld [vmem:[#allocation2] sm:$0xff]
      %v396 = vld [vmem:[%s355] sm:$0xff]
      %v397 = vpack.c.bf16 %v396, %v396
      %v398 = vld [vmem:[%s363] sm:$0xff]
      %v399 = vld [vmem:[%s363 + $0x8] sm:$0xff]
      %v400 = vld [vmem:[%s363 + $0x10] sm:$0xff]
      %v401 = vld [vmem:[%s363 + $0x18] sm:$0xff]
      %v402 = vld [vmem:[%s363 + $0x20] sm:$0xff]
      %v403 = vld [vmem:[%s363 + $0x28] sm:$0xff]
      %v404 = vld [vmem:[%s363 + $0x30] sm:$0xff]
      %v405 = vld [vmem:[%s363 + $0x38] sm:$0xff]
      %v406 = vpack.c.bf16 %v399, %v398
      %v407 = vpack.c.bf16 %v401, %v400
      %v408 = vpack.c.bf16 %v403, %v402
      %v409 = vpack.c.bf16 %v405, %v404
      %vm410 = vcmask 523264
      %v412 = vsel %vm410, %v397, 0
      %414 = vmatpush.bf16.msra.mxu0 0
      %415 = vmatpush.bf16.msra.mxu0 0
      %416 = vmatpush.bf16.msra.mxu0 0
      %417 = vmatpush.bf16.msra.mxu0 0
      %418 = vmatpush.bf16.msra.mxu0 %v409
      %419 = vmatpush.bf16.msra.mxu0 %v408
      %420 = vmatpush.bf16.msra.mxu0 %v407
      %421 = vmatpush.bf16.msra.mxu0 %v406
      %422 = vmatmul.bf16.gmra.mxu0 %v412
      %v423 = vpop.f32.mrf.mxu0
      %v424 = vadd.f32 0.0, %v423
      %v425 = vpop.f32.mrf.mxu0
      %426 = vdwg.mxu0
      %v427 = vadd.f32 %v395, %v424
      %vm428 = vcmask 261120
      %429 = vst.msk [vmem:[#allocation2] sm:$0xff] %vm428, %v427
      // Predicated region
      $region49: #{table_encoder_simple.14} parent=43 // pred_check
        %p430 = pneg %p389
      $region50: #{table_encoder_simple.14} parent=43 // pred_check_branch
        %432 = sbr.rel (%p430) target = $region52
      $region51: #{table_encoder_simple.14} parent=43 // pred_region
        %v433 = vld [vmem:[#allocation2] sm:$0xff]
        %v434 = vld [vmem:[%s367] sm:$0x1]
        %v436 = vperm.slane %v434, 0
        %v438 = vadd.f32 %v433, %v436
        %v439 = vld [vmem:[%s374] sm:$0xff]
        %v440 = vadd.f32 %v438, %v439
        %v441 = vsel %vm428, %v440, 0.0
        %442 = vadd.xlane.f32.xlu0 %v441
        %v443 = vpop.xlane.xlu0 %442
        %v444 = vrcp.pop 32.0
        %v445 = vmul.f32 32.0, %v444
        %v446 = vsub.f32 1.0, %v445
        %v447 = vmul.f32 %v444, %v446
        %v448 = vadd.f32 %v444, %v447
        %vm449 = vweird.f32 %v444
        %v450 = vsel %vm449, %v444, %v448
        %v451 = vmul.f32 %v443, %v450
        %v452 = vsub.f32 %v440, %v451
        %v453 = vmul.f32 %v452, %v452
        %v454 = vsel %vm428, %v453, 0.0
        %455 = vadd.xlane.f32.xlu0 %v454
        %v456 = vpop.xlane.xlu0 %455
        %v457 = vmul.f32 %v456, %v450
        %v458 = vadd.f32 %v457, 1e-12
        %v459 = vrsqrt.pop %v458
        %v460 = vmul.f32 %v459, %v458
        %v461 = vmul.f32 %v460, %v459
        %v462 = vmul.f32 0.5, %v461
        %v463 = vsub.f32 1.5, %v462
        %v464 = vmul.f32 %v459, %v463
        %vm465 = vweird.f32 %v458
        %vm466 = vweird.f32 %v459
        %vm467 = vmor %vm465, %vm466
        %v468 = vsel %vm467, %v459, %v464
        %v469 = vmul.f32 %v452, %v468
        %v470 = vld [vmem:[%s377] sm:$0x1]
        %v472 = vperm.slane %v470, 0
        %v474 = vmul.f32 %v469, %v472
        %v475 = vld [vmem:[%s380] sm:$0x1]
        %v477 = vperm.slane %v475, 0
        %v479 = vadd.f32 %v474, %v477
        %480 = vst.msk [vmem:[%s387] sm:$0xff] %vm428, %v479
      $region52: #{table_encoder_simple.14} parent=43 // pred_fallthru
        _
      %p481 = scmp.lt.s32.totalorder %s22, 3
      %s482 = scalar_select %p481, %s22, 3
      %p483 = scmp.lt.s32.totalorder %s23, 0
      %s484 = scalar_select %p483, %s23, 0
      %s485 = sadd.s32 %s484, %s482
      %s486 = smul.addr %s485, 8
      %s487 = scalar_lea.vmem %s6, %s486
      // Predicated region
      $region53: #{table_encoder_simple.14} parent=43 // pred_check
        %p488 = pneg %p218
      $region54: #{table_encoder_simple.14} parent=43 // pred_check_branch
        %490 = sbr.rel (%p488) target = $region56
      $region55: #{table_encoder_simple.14} parent=43 // pred_region
        _
      $region56: #{table_encoder_simple.14} parent=43 // pred_fallthru
        _
    $region44: #{table_encoder_simple.14} parent=5 // pred_fallthru
      _
    %p491 = scmp.le.s32.totalorder 2, %s12
    // Predicated region
    $region57: #{table_encoder_simple.14} parent=5 // pred_check
      %p492 = pneg %p491
    $region58: #{table_encoder_simple.14} parent=5 // pred_check_branch
      %494 = sbr.rel (%p492) target = $region60
    $region59: #{table_encoder_simple.14} parent=5 // pred_region
      %s495 = ssub.s32 %s12, 2
      // Predicated region
      $region61: #{table_encoder_simple.14} parent=59 // pred_check
        %p496 = pneg %p224
      $region62: #{table_encoder_simple.14} parent=59 // pred_check_branch
        %498 = sbr.rel (%p496) target = $region64
      $region63: #{table_encoder_simple.14} parent=59 // pred_region
        %p499 = scmp.lt.s32.totalorder %s25, 3
        %s500 = scalar_select %p499, %s25, 3
        %p501 = scmp.lt.s32.totalorder %s26, 0
        %s502 = scalar_select %p501, %s26, 0
        %s503 = sadd.s32 %s502, %s500
        %s504 = smul.addr %s503, 8
        %s505 = scalar_lea.vmem %s6, %s504
      $region64: #{table_encoder_simple.14} parent=59 // pred_fallthru
        _
    $region60: #{table_encoder_simple.14} parent=5 // pred_fallthru
      _
  $region6: #{table_encoder_simple.14} parent=0 // loop_footer
    %s16 = sadd.s32 1, %s12
  $region7: #{table_encoder_simple.14} parent=0 // loop_footer_branch
    %11 = sbr.rel target = $region3
  $region8: #{table_encoder_simple.14} parent=0 // loop_exit
    _

</llo_original>
